<compile_context>
chip_gen: v7x
topology: tpu7x:2x2x1
jax: 0.10.0
libtpu: 0.0.40
codegen_flags: <defaults>
</compile_context>

<pallas_src>
import functools

import jax
import jax.numpy as jnp
from jax import lax
from jax.experimental import pallas as pl
from jax.experimental.pallas import tpu as pltpu


# ----------------------------------------------------------------------------- #
# In-kernel separable max pools
# ----------------------------------------------------------------------------- #
def _pool_rows(a, r):
    """(2r+1) max over the leading (row) axis, 'valid': output has 2r fewer rows.

    Row slices are major-axis address offsets (cheap); the band halo supplies
    the out-of-band rows, so no padding or concatenation is needed here.
    """
    ro = a.shape[0] - 2 * r
    m = a[0:ro]
    for d in range(1, 2 * r + 1):
        m = jnp.maximum(m, a[d:d + ro])
    return m


def _pool_cols(a, r):
    """(2r+1) max over axis 1 (W / sublane axis), same size, zero padded.

    Zero padding == PyTorch -inf padding because the pooled activations are
    post-ReLU (>= 0) and every window contains its own valid center.  The
    padded buffer is built once per level.
    """
    w = a.shape[1]
    zpad = jnp.zeros((a.shape[0], r, a.shape[2]), a.dtype)
    ap = jnp.concatenate([zpad, a, zpad], axis=1)
    m = a
    for d in range(2 * r + 1):
        if d == r:
            continue
        m = jnp.maximum(m, ap[:, d:d + w, :])
    return m


def _pool(a, r):
    # Rows first: major-axis slices are free and shrink the array before the
    # more expensive sublane-axis pass.
    return _pool_cols(_pool_rows(a, r), r)


# ----------------------------------------------------------------------------- #
# Fused kernel: conv3x3+BN+ReLU -> maxpool(3/5/9, stride 1) -> concat -> conv1x1
# ----------------------------------------------------------------------------- #
def spp_fused_kernel(xband_ref, w3_ref, s1_ref, b1_ref, w1_ref, s2_ref, b2_ref,
                     out_ref, *, img_h, band, pool_dtype):
    # xband_ref: (1, band+10, W+2, C) bf16  row band of the padded NHWC input
    #                                       (5-row + 1-col zero halo each side)
    # w3_ref   : (9, C, C)            bf16  3x3 weights, tap-major [cin, cout]
    # s1, b1   : (1, C)               f32   folded BN of conv311
    # w1_ref   : (4, C, C)            bf16  1x1 weights split per source
    # s2, b2   : (1, C)               f32   folded BN of conv101
    # out_ref  : (1, band, W, C)            one output row band
    B = band
    Hb = B + 8                              # y rows computed per band (4-row halo)
    W = out_ref.shape[2]
    C = out_ref.shape[3]
    b = pl.program_id(1)

    # ---- stage 1: 3x3 conv (stride 1, pad 1) + BN + ReLU --------------------
    # bf16 taps sliced directly from the ref -> MXU; accumulate in f32.
    if C % 128 == 0:
        # im2col: one (Hb*W, 9C) x (9C, C) dot for better MXU K-fill.
        taps = [xband_ref[0, kh:kh + Hb, kw:kw + W, :].reshape(Hb * W, C)
                for kh in range(3) for kw in range(3)]
        patch = jnp.concatenate(taps, axis=-1)                      # (Hb*W, 9C)
        acc = jnp.dot(patch, w3_ref[...].reshape(9 * C, C),
                      preferred_element_type=jnp.float32)
    else:
        acc = jnp.zeros((Hb * W, C), jnp.float32)
        for kh in range(3):
            for kw in range(3):
                win = xband_ref[0, kh:kh + Hb, kw:kw + W, :].reshape(Hb * W, C)
                acc = acc + jnp.dot(win, w3_ref[kh * 3 + kw],
                                    preferred_element_type=jnp.float32)

    y2d = jnp.maximum(acc * s1_ref[...] + b1_ref[...], 0.0)        # (Hb*W, C) f32
    y_ext = y2d.astype(pool_dtype).reshape(Hb, W, C)

    # Halo rows outside the real image were computed from the zero row-padding
    # (conv(0) + BN bias, ReLU) and must not leak into the pools; force them to
    # 0 (== -inf padding given post-ReLU activations >= 0).
    row0 = b * B - 4
    rid = lax.broadcasted_iota(jnp.int32, (Hb, 1, 1), 0) + row0
    valid = jnp.logical_and(rid >= 0, rid < img_h)
    y_ext = jnp.where(valid, y_ext, 0.0).astype(pool_dtype)

    # ---- stage 2: separable + cascaded max pools ----------------------------
    p3_ext = _pool(y_ext, 1)                # (B+6, W, C)  3x3 pool of y
    p5_ext = _pool(p3_ext, 1)               # (B+4, W, C)  5x5 pool of y (1+1)
    p9 = _pool(p5_ext, 2)                   # (B,   W, C)  9x9 pool of y (2+2)

    y_c = y_ext[4:4 + B]                    # rows aligned with the output band
    p3_c = p3_ext[3:3 + B]
    p5_c = p5_ext[2:2 + B]

    # ---- stage 3: 1x1 conv over [y, p3, p5, p9] + BN + ReLU -----------------
    if C % 128 == 0:
        cat = jnp.concatenate(
            [y_c.reshape(B * W, C), p3_c.reshape(B * W, C),
             p5_c.reshape(B * W, C), p9.reshape(B * W, C)],
            axis=-1).astype(jnp.bfloat16)                           # (B*W, 4C)
        out = jnp.dot(cat, w1_ref[...].reshape(4 * C, C),
                      preferred_element_type=jnp.float32)
    else:
        def contrib(a, j):
            return jnp.dot(a.reshape(B * W, C).astype(jnp.bfloat16), w1_ref[j],
                           preferred_element_type=jnp.float32)
        out = contrib(y_c, 0) + contrib(p3_c, 1) + contrib(p5_c, 2) + contrib(p9, 3)

    out = jnp.maximum(out * s2_ref[...] + b2_ref[...], 0.0)
    out_ref[0] = out.reshape(B, W, C).astype(out_ref.dtype)


# ----------------------------------------------------------------------------- #
# Wrappers
# ----------------------------------------------------------------------------- #
def spp_forward_nhwc(x_nhwc, params, *, band_rows=8, out_dtype=jnp.float32):
    (w311, scale1, bias1, w101, scale2, bias2) = params
    N, H, W, C = x_nhwc.shape

    if H % band_rows != 0:
        band_rows = H                       # fall back to one band per image
    B = band_rows
    NB = H // B
    Hb = B + 8

    # v5e has no bf16 VPU: keep the pools in f32 there; bf16 everywhere else.
    kind = jax.devices()[0].device_kind.lower()
    is_v5e = ("v5e" in kind) or ("v5 lite" in kind) or ("v5lite" in kind)
    pool_dtype = jnp.float32 if is_v5e else jnp.bfloat16

    # bf16 before padding / band-gather (halves those HBM passes).
    xb = x_nhwc.astype(jnp.bfloat16)
    # 1 col of conv padding; 5 rows = 1 (conv) + 4 (9x9-pool halo) per side.
    xpad = jnp.pad(xb, ((0, 0), (5, 5), (1, 1), (0, 0)))
    # Overlapping row bands (10-row halo), duplicated wrapper-side so a plain
    # BlockSpec can address them; band b produces output rows [b*B, b*B + B).
    xbands = jnp.stack(
        [lax.slice_in_dim(xpad, b * B, b * B + B + 10, axis=1)
         for b in range(NB)], axis=1)
    xbands = xbands.reshape(N * NB, B + 10, W + 2, C)

    # 3x3 weights: OIHW -> (kh*3+kw, cin, cout), bf16.
    w3 = jnp.transpose(w311, (2, 3, 1, 0)).reshape(9, C, C).astype(jnp.bfloat16)
    # 1x1 weights: OIHW (C,4C,1,1) -> (4C, C) -> (4, C, C), one block per source
    # in concat order [y, p3, p5, p9].
    w1 = jnp.transpose(w101[:, :, 0, 0], (1, 0)).reshape(4, C, C).astype(jnp.bfloat16)
    s1 = scale1.reshape(1, C).astype(jnp.float32)
    b1 = bias1.reshape(1, C).astype(jnp.float32)
    s2 = scale2.reshape(1, C).astype(jnp.float32)
    b2 = bias2.reshape(1, C).astype(jnp.float32)

    out_bpe = jnp.dtype(out_dtype).itemsize
    # Scoped-VMEM budget: double-buffered in/out blocks + weights + live temps.
    work = (2 * (B + 10) * (W + 2) * C * 2          # input band, bf16, 2 bufs
            + 2 * B * W * C * out_bpe               # output band, 2 bufs
            + 2 * (13 * C * C * 2 + 4 * C * 4)      # weights + scales, 2 bufs
            + 8 * Hb * W * C * 4)                   # live temps (upper bound)
    vmem_limit = int(min(max(2 * work, 32 * 1024 * 1024), 96 * 1024 * 1024))

    flops = (2 * N * NB * Hb * W * C * C * 9        # 3x3 conv (incl. halo rows)
             + 2 * N * H * W * C * C * 4            # 1x1 conv
             + N * NB * Hb * W * C * 16)            # ~16 max-pool passes
    bytes_accessed = (xbands.size * 2 + w3.size * 2 + w1.size * 2 + 16 * C
                      + N * H * W * C * out_bpe)

    kernel = functools.partial(spp_fused_kernel, img_h=H, band=B,
                               pool_dtype=pool_dtype)

    out = pl.pallas_call(
        kernel,
        out_shape=jax.ShapeDtypeStruct((N, H, W, C), out_dtype),
        grid_spec=pltpu.PrefetchScalarGridSpec(
            num_scalar_prefetch=0,
            grid=(N, NB),
            in_specs=[
                pl.BlockSpec((1, B + 10, W + 2, C),
                             lambda n, b: (n * NB + b, 0, 0, 0)),
                pl.BlockSpec((9, C, C), lambda n, b: (0, 0, 0)),
                pl.BlockSpec((1, C), lambda n, b: (0, 0)),
                pl.BlockSpec((1, C), lambda n, b: (0, 0)),
                pl.BlockSpec((4, C, C), lambda n, b: (0, 0, 0)),
                pl.BlockSpec((1, C), lambda n, b: (0, 0)),
                pl.BlockSpec((1, C), lambda n, b: (0, 0)),
            ],
            out_specs=pl.BlockSpec((1, B, W, C), lambda n, b: (n, b, 0, 0)),
        ),
        compiler_params=pltpu.CompilerParams(
            dimension_semantics=("parallel", "parallel"),
            vmem_limit_bytes=vmem_limit),
        cost_estimate=pl.CostEstimate(flops=flops, transcendentals=0,
                                      bytes_accessed=bytes_accessed),
    )(xbands, w3, s1, b1, w1, s2, b2)
    return out


def spp_forward(x_nchw, params, *, band_rows=8, out_dtype=jnp.float32):
    # NCHW -> NHWC fused with the bf16 downcast (halves the transpose traffic).
    x_nhwc = jnp.transpose(x_nchw.astype(jnp.bfloat16), (0, 2, 3, 1))
    z = spp_forward_nhwc(x_nhwc, params, band_rows=band_rows, out_dtype=out_dtype)
    return jnp.transpose(z, (0, 3, 1, 2))                           # NHWC -> NCHW


# ----------------------------------------------------------------------------- #
# Pure-JAX f32 reference (module semantics)
# ----------------------------------------------------------------------------- #
def spp_reference(x_nchw, params):
    (w311, scale1, bias1, w101, scale2, bias2) = params
    dn = ("NCHW", "OIHW", "NCHW")

    y = lax.conv_general_dilated(x_nchw, w311, (1, 1), [(1, 1), (1, 1)],
                                 dimension_numbers=dn)
    y = jnp.maximum(y * scale1[None, :, None, None] + bias1[None, :, None, None], 0.0)

    def maxpool(a, k, p):
        return lax.reduce_window(a, -jnp.inf, lax.max, (1, 1, k, k), (1, 1, 1, 1),
                                 [(0, 0), (0, 0), (p, p), (p, p)])

    p3 = maxpool(y, 3, 1)
    p5 = maxpool(y, 5, 2)
    p9 = maxpool(y, 9, 4)
    cat = jnp.concatenate([y, p3, p5, p9], axis=1)

    z = lax.conv_general_dilated(cat, w101, (1, 1), [(0, 0), (0, 0)],
                                 dimension_numbers=dn)
    z = jnp.maximum(z * scale2[None, :, None, None] + bias2[None, :, None, None], 0.0)
    return z


# ----------------------------------------------------------------------------- #
def make_params(channel, key):
    C = channel
    ks = jax.random.split(key, 10)

    def fold_bn(kg, kb, km, kv, c):
        gamma = 0.5 + jax.random.uniform(kg, (c,), jnp.float32)
        beta = 0.1 * jax.random.normal(kb, (c,), jnp.float32)
        mean = 0.1 * jax.random.normal(km, (c,), jnp.float32)
        var = 0.5 + jax.random.uniform(kv, (c,), jnp.float32)
        scale = gamma / jnp.sqrt(var + 1e-5)
        bias = beta - mean * scale
        return scale, bias

    w311 = 0.1 * jax.random.normal(ks[0], (C, C, 3, 3), jnp.float32)       # OIHW
    scale1, bias1 = fold_bn(ks[1], ks[2], ks[3], ks[4], C)
    w101 = 0.1 * jax.random.normal(ks[5], (C, 4 * C, 1, 1), jnp.float32)   # OIHW
    scale2, bias2 = fold_bn(ks[6], ks[7], ks[8], ks[9], C)
    return (w311, scale1, bias1, w101, scale2, bias2)


if __name__ == "__main__":
    key = jax.random.PRNGKey(0)
    kx, kp = jax.random.split(key)

    N, C, H, W = 2, 4, 16, 16
    x = jax.random.normal(kx, (N, C, H, W), jnp.float32)
    params = make_params(C, kp)

    # band_rows=8 -> 2 row bands per image (exercises the banded grid path).
    out = jax.block_until_ready(spp_forward(x, params, band_rows=8))
    ref = jax.block_until_ready(spp_reference(x, params))

    assert out.shape == (N, C, H, W), out.shape
    max_err = float(jnp.max(jnp.abs(out - ref)))
    # bf16 MXU operands / bf16 pooling with f32 accumulation -> looser tolerance.
    assert jnp.allclose(out, ref, rtol=2e-2, atol=2e-2), max_err

    print("KERNEL_OK")
</pallas_src>

<mosaic_0001>
module attributes {stable_mosaic.version = 11 : i64} {
  func.func @spp_fused_kernel(%arg0: i32, %arg1: i32, %arg2: memref<1x18x18x4xbf16, #tpu.memory_space<vmem>>, %arg3: memref<9x4x4xbf16, #tpu.memory_space<vmem>>, %arg4: memref<1x4xf32, #tpu.memory_space<vmem>>, %arg5: memref<1x4xf32, #tpu.memory_space<vmem>>, %arg6: memref<4x4x4xbf16, #tpu.memory_space<vmem>>, %arg7: memref<1x4xf32, #tpu.memory_space<vmem>>, %arg8: memref<1x4xf32, #tpu.memory_space<vmem>>, %arg9: memref<1x8x16x4xf32, #tpu.memory_space<vmem>>) attributes {dimension_semantics = [#tpu.dimension_semantics<parallel>, #tpu.dimension_semantics<parallel>], iteration_bounds = array<i64: 2, 2>, scalar_prefetch = 0 : i64, scratch_operands = 0 : i64, tpu.core_type = #tpu.core_type<tc>, window_params = [{transform_indices = @transform_0, window_bounds = array<i64: 1, 18, 18, 4>}, {pipeline_mode = #tpu.pipeline_mode<synchronous>, transform_indices = @transform_1, window_bounds = array<i64: 9, 4, 4>}, {pipeline_mode = #tpu.pipeline_mode<synchronous>, transform_indices = @transform_2, window_bounds = array<i64: 1, 4>}, {pipeline_mode = #tpu.pipeline_mode<synchronous>, transform_indices = @transform_3, window_bounds = array<i64: 1, 4>}, {pipeline_mode = #tpu.pipeline_mode<synchronous>, transform_indices = @transform_4, window_bounds = array<i64: 4, 4, 4>}, {pipeline_mode = #tpu.pipeline_mode<synchronous>, transform_indices = @transform_5, window_bounds = array<i64: 1, 4>}, {pipeline_mode = #tpu.pipeline_mode<synchronous>, transform_indices = @transform_6, window_bounds = array<i64: 1, 4>}, {transform_indices = @transform_7, window_bounds = array<i64: 1, 8, 16, 4>}]} {
    %cst = arith.constant 0.000000e+00 : f32
    %0 = vector.broadcast %cst : f32 to vector<256x4xf32>
    %c0 = arith.constant 0 : index
    %c0_0 = arith.constant 0 : index
    %c0_1 = arith.constant 0 : index
    %c0_2 = arith.constant 0 : index
    %1 = vector.load %arg2[%c0, %c0_0, %c0_1, %c0_2] : memref<1x18x18x4xbf16, #tpu.memory_space<vmem>>, vector<1x16x16x4xbf16>
    %2 = vector.shape_cast %1 : vector<1x16x16x4xbf16> to vector<16x16x4xbf16>
    %3 = vector.shape_cast %2 : vector<16x16x4xbf16> to vector<256x4xbf16>
    %c0_3 = arith.constant 0 : index
    %c0_4 = arith.constant 0 : index
    %c0_5 = arith.constant 0 : index
    %4 = vector.load %arg3[%c0_3, %c0_4, %c0_5] : memref<9x4x4xbf16, #tpu.memory_space<vmem>>, vector<1x4x4xbf16>
    %5 = vector.shape_cast %4 : vector<1x4x4xbf16> to vector<4x4xbf16>
    %cst_6 = arith.constant dense<0.000000e+00> : vector<256x4xf32>
    %6 = tpu.matmul %3, %5, %cst_6 {dimension_numbers = #tpu.dot_dimension_numbers<[1], [0], [0], [1], [0, 0, 1, 1], [], []>} : vector<256x4xbf16>, vector<4x4xbf16>, vector<256x4xf32> -> vector<256x4xf32>
    %7 = arith.addf %0, %6 : vector<256x4xf32>
    %c0_7 = arith.constant 0 : index
    %c0_8 = arith.constant 0 : index
    %c1 = arith.constant 1 : index
    %c0_9 = arith.constant 0 : index
    %8 = vector.load %arg2[%c0_7, %c0_8, %c1, %c0_9] : memref<1x18x18x4xbf16, #tpu.memory_space<vmem>>, vector<1x16x16x4xbf16>
    %9 = vector.shape_cast %8 : vector<1x16x16x4xbf16> to vector<16x16x4xbf16>
    %10 = vector.shape_cast %9 : vector<16x16x4xbf16> to vector<256x4xbf16>
    %c1_10 = arith.constant 1 : index
    %c0_11 = arith.constant 0 : index
    %c0_12 = arith.constant 0 : index
    %11 = vector.load %arg3[%c1_10, %c0_11, %c0_12] : memref<9x4x4xbf16, #tpu.memory_space<vmem>>, vector<1x4x4xbf16>
    %12 = vector.shape_cast %11 : vector<1x4x4xbf16> to vector<4x4xbf16>
    %cst_13 = arith.constant dense<0.000000e+00> : vector<256x4xf32>
    %13 = tpu.matmul %10, %12, %cst_13 {dimension_numbers = #tpu.dot_dimension_numbers<[1], [0], [0], [1], [0, 0, 1, 1], [], []>} : vector<256x4xbf16>, vector<4x4xbf16>, vector<256x4xf32> -> vector<256x4xf32>
    %14 = arith.addf %7, %13 : vector<256x4xf32>
    %c0_14 = arith.constant 0 : index
    %c0_15 = arith.constant 0 : index
    %c2 = arith.constant 2 : index
    %c0_16 = arith.constant 0 : index
    %15 = vector.load %arg2[%c0_14, %c0_15, %c2, %c0_16] : memref<1x18x18x4xbf16, #tpu.memory_space<vmem>>, vector<1x16x16x4xbf16>
    %16 = vector.shape_cast %15 : vector<1x16x16x4xbf16> to vector<16x16x4xbf16>
    %17 = vector.shape_cast %16 : vector<16x16x4xbf16> to vector<256x4xbf16>
    %c2_17 = arith.constant 2 : index
    %c0_18 = arith.constant 0 : index
    %c0_19 = arith.constant 0 : index
    %18 = vector.load %arg3[%c2_17, %c0_18, %c0_19] : memref<9x4x4xbf16, #tpu.memory_space<vmem>>, vector<1x4x4xbf16>
    %19 = vector.shape_cast %18 : vector<1x4x4xbf16> to vector<4x4xbf16>
    %cst_20 = arith.constant dense<0.000000e+00> : vector<256x4xf32>
    %20 = tpu.matmul %17, %19, %cst_20 {dimension_numbers = #tpu.dot_dimension_numbers<[1], [0], [0], [1], [0, 0, 1, 1], [], []>} : vector<256x4xbf16>, vector<4x4xbf16>, vector<256x4xf32> -> vector<256x4xf32>
    %21 = arith.addf %14, %20 : vector<256x4xf32>
    %c0_21 = arith.constant 0 : index
    %c1_22 = arith.constant 1 : index
    %c0_23 = arith.constant 0 : index
    %c0_24 = arith.constant 0 : index
    %22 = vector.load %arg2[%c0_21, %c1_22, %c0_23, %c0_24] : memref<1x18x18x4xbf16, #tpu.memory_space<vmem>>, vector<1x16x16x4xbf16>
    %23 = vector.shape_cast %22 : vector<1x16x16x4xbf16> to vector<16x16x4xbf16>
    %24 = vector.shape_cast %23 : vector<16x16x4xbf16> to vector<256x4xbf16>
    %c3 = arith.constant 3 : index
    %c0_25 = arith.constant 0 : index
    %c0_26 = arith.constant 0 : index
    %25 = vector.load %arg3[%c3, %c0_25, %c0_26] : memref<9x4x4xbf16, #tpu.memory_space<vmem>>, vector<1x4x4xbf16>
    %26 = vector.shape_cast %25 : vector<1x4x4xbf16> to vector<4x4xbf16>
    %cst_27 = arith.constant dense<0.000000e+00> : vector<256x4xf32>
    %27 = tpu.matmul %24, %26, %cst_27 {dimension_numbers = #tpu.dot_dimension_numbers<[1], [0], [0], [1], [0, 0, 1, 1], [], []>} : vector<256x4xbf16>, vector<4x4xbf16>, vector<256x4xf32> -> vector<256x4xf32>
    %28 = arith.addf %21, %27 : vector<256x4xf32>
    %c0_28 = arith.constant 0 : index
    %c1_29 = arith.constant 1 : index
    %c1_30 = arith.constant 1 : index
    %c0_31 = arith.constant 0 : index
    %29 = vector.load %arg2[%c0_28, %c1_29, %c1_30, %c0_31] : memref<1x18x18x4xbf16, #tpu.memory_space<vmem>>, vector<1x16x16x4xbf16>
    %30 = vector.shape_cast %29 : vector<1x16x16x4xbf16> to vector<16x16x4xbf16>
    %31 = vector.shape_cast %30 : vector<16x16x4xbf16> to vector<256x4xbf16>
    %c4 = arith.constant 4 : index
    %c0_32 = arith.constant 0 : index
    %c0_33 = arith.constant 0 : index
    %32 = vector.load %arg3[%c4, %c0_32, %c0_33] : memref<9x4x4xbf16, #tpu.memory_space<vmem>>, vector<1x4x4xbf16>
    %33 = vector.shape_cast %32 : vector<1x4x4xbf16> to vector<4x4xbf16>
    %cst_34 = arith.constant dense<0.000000e+00> : vector<256x4xf32>
    %34 = tpu.matmul %31, %33, %cst_34 {dimension_numbers = #tpu.dot_dimension_numbers<[1], [0], [0], [1], [0, 0, 1, 1], [], []>} : vector<256x4xbf16>, vector<4x4xbf16>, vector<256x4xf32> -> vector<256x4xf32>
    %35 = arith.addf %28, %34 : vector<256x4xf32>
    %c0_35 = arith.constant 0 : index
    %c1_36 = arith.constant 1 : index
    %c2_37 = arith.constant 2 : index
    %c0_38 = arith.constant 0 : index
    %36 = vector.load %arg2[%c0_35, %c1_36, %c2_37, %c0_38] : memref<1x18x18x4xbf16, #tpu.memory_space<vmem>>, vector<1x16x16x4xbf16>
    %37 = vector.shape_cast %36 : vector<1x16x16x4xbf16> to vector<16x16x4xbf16>
    %38 = vector.shape_cast %37 : vector<16x16x4xbf16> to vector<256x4xbf16>
    %c5 = arith.constant 5 : index
    %c0_39 = arith.constant 0 : index
    %c0_40 = arith.constant 0 : index
    %39 = vector.load %arg3[%c5, %c0_39, %c0_40] : memref<9x4x4xbf16, #tpu.memory_space<vmem>>, vector<1x4x4xbf16>
    %40 = vector.shape_cast %39 : vector<1x4x4xbf16> to vector<4x4xbf16>
    %cst_41 = arith.constant dense<0.000000e+00> : vector<256x4xf32>
    %41 = tpu.matmul %38, %40, %cst_41 {dimension_numbers = #tpu.dot_dimension_numbers<[1], [0], [0], [1], [0, 0, 1, 1], [], []>} : vector<256x4xbf16>, vector<4x4xbf16>, vector<256x4xf32> -> vector<256x4xf32>
    %42 = arith.addf %35, %41 : vector<256x4xf32>
    %c0_42 = arith.constant 0 : index
    %c2_43 = arith.constant 2 : index
    %c0_44 = arith.constant 0 : index
    %c0_45 = arith.constant 0 : index
    %43 = vector.load %arg2[%c0_42, %c2_43, %c0_44, %c0_45] : memref<1x18x18x4xbf16, #tpu.memory_space<vmem>>, vector<1x16x16x4xbf16>
    %44 = vector.shape_cast %43 : vector<1x16x16x4xbf16> to vector<16x16x4xbf16>
    %45 = vector.shape_cast %44 : vector<16x16x4xbf16> to vector<256x4xbf16>
    %c6 = arith.constant 6 : index
    %c0_46 = arith.constant 0 : index
    %c0_47 = arith.constant 0 : index
    %46 = vector.load %arg3[%c6, %c0_46, %c0_47] : memref<9x4x4xbf16, #tpu.memory_space<vmem>>, vector<1x4x4xbf16>
    %47 = vector.shape_cast %46 : vector<1x4x4xbf16> to vector<4x4xbf16>
    %cst_48 = arith.constant dense<0.000000e+00> : vector<256x4xf32>
    %48 = tpu.matmul %45, %47, %cst_48 {dimension_numbers = #tpu.dot_dimension_numbers<[1], [0], [0], [1], [0, 0, 1, 1], [], []>} : vector<256x4xbf16>, vector<4x4xbf16>, vector<256x4xf32> -> vector<256x4xf32>
    %49 = arith.addf %42, %48 : vector<256x4xf32>
    %c0_49 = arith.constant 0 : index
    %c2_50 = arith.constant 2 : index
    %c1_51 = arith.constant 1 : index
    %c0_52 = arith.constant 0 : index
    %50 = vector.load %arg2[%c0_49, %c2_50, %c1_51, %c0_52] : memref<1x18x18x4xbf16, #tpu.memory_space<vmem>>, vector<1x16x16x4xbf16>
    %51 = vector.shape_cast %50 : vector<1x16x16x4xbf16> to vector<16x16x4xbf16>
    %52 = vector.shape_cast %51 : vector<16x16x4xbf16> to vector<256x4xbf16>
    %c7 = arith.constant 7 : index
    %c0_53 = arith.constant 0 : index
    %c0_54 = arith.constant 0 : index
    %53 = vector.load %arg3[%c7, %c0_53, %c0_54] : memref<9x4x4xbf16, #tpu.memory_space<vmem>>, vector<1x4x4xbf16>
    %54 = vector.shape_cast %53 : vector<1x4x4xbf16> to vector<4x4xbf16>
    %cst_55 = arith.constant dense<0.000000e+00> : vector<256x4xf32>
    %55 = tpu.matmul %52, %54, %cst_55 {dimension_numbers = #tpu.dot_dimension_numbers<[1], [0], [0], [1], [0, 0, 1, 1], [], []>} : vector<256x4xbf16>, vector<4x4xbf16>, vector<256x4xf32> -> vector<256x4xf32>
    %56 = arith.addf %49, %55 : vector<256x4xf32>
    %c0_56 = arith.constant 0 : index
    %c2_57 = arith.constant 2 : index
    %c2_58 = arith.constant 2 : index
    %c0_59 = arith.constant 0 : index
    %57 = vector.load %arg2[%c0_56, %c2_57, %c2_58, %c0_59] : memref<1x18x18x4xbf16, #tpu.memory_space<vmem>>, vector<1x16x16x4xbf16>
    %58 = vector.shape_cast %57 : vector<1x16x16x4xbf16> to vector<16x16x4xbf16>
    %59 = vector.shape_cast %58 : vector<16x16x4xbf16> to vector<256x4xbf16>
    %c8 = arith.constant 8 : index
    %c0_60 = arith.constant 0 : index
    %c0_61 = arith.constant 0 : index
    %60 = vector.load %arg3[%c8, %c0_60, %c0_61] : memref<9x4x4xbf16, #tpu.memory_space<vmem>>, vector<1x4x4xbf16>
    %61 = vector.shape_cast %60 : vector<1x4x4xbf16> to vector<4x4xbf16>
    %cst_62 = arith.constant dense<0.000000e+00> : vector<256x4xf32>
    %62 = tpu.matmul %59, %61, %cst_62 {dimension_numbers = #tpu.dot_dimension_numbers<[1], [0], [0], [1], [0, 0, 1, 1], [], []>} : vector<256x4xbf16>, vector<4x4xbf16>, vector<256x4xf32> -> vector<256x4xf32>
    %63 = arith.addf %56, %62 : vector<256x4xf32>
    %c0_63 = arith.constant 0 : index
    %c0_64 = arith.constant 0 : index
    %64 = vector.load %arg4[%c0_63, %c0_64] : memref<1x4xf32, #tpu.memory_space<vmem>>, vector<1x4xf32>
    %65 = vector.broadcast %64 : vector<1x4xf32> to vector<256x4xf32>
    %66 = arith.mulf %63, %65 : vector<256x4xf32>
    %c0_65 = arith.constant 0 : index
    %c0_66 = arith.constant 0 : index
    %67 = vector.load %arg5[%c0_65, %c0_66] : memref<1x4xf32, #tpu.memory_space<vmem>>, vector<1x4xf32>
    %68 = vector.broadcast %67 : vector<1x4xf32> to vector<256x4xf32>
    %69 = arith.addf %66, %68 : vector<256x4xf32>
    %cst_67 = arith.constant 0.000000e+00 : f32
    %70 = vector.broadcast %cst_67 : f32 to vector<256x4xf32>
    %71 = arith.maximumf %69, %70 : vector<256x4xf32>
    %72 = arith.truncf %71 : vector<256x4xf32> to vector<256x4xbf16>
    %73 = vector.shape_cast %72 : vector<256x4xbf16> to vector<16x16x4xbf16>
    %c8_i32 = arith.constant 8 : i32
    %74 = arith.muli %arg1, %c8_i32 : i32
    %c4_i32 = arith.constant 4 : i32
    %75 = arith.subi %74, %c4_i32 : i32
    %76 = tpu.iota {dimensions = array<i32: 0>} : vector<16x1x1xi32>
    %77 = vector.broadcast %75 : i32 to vector<16x1x1xi32>
    %78 = arith.addi %76, %77 : vector<16x1x1xi32>
    %c0_i32 = arith.constant 0 : i32
    %79 = vector.broadcast %c0_i32 : i32 to vector<16x1x1xi32>
    %80 = arith.cmpi sge, %78, %79 : vector<16x1x1xi32>
    %c16_i32 = arith.constant 16 : i32
    %81 = vector.broadcast %c16_i32 : i32 to vector<16x1x1xi32>
    %82 = arith.cmpi slt, %78, %81 : vector<16x1x1xi32>
    %83 = arith.andi %80, %82 : vector<16x1x1xi1>
    %cst_68 = arith.constant 0.000000e+00 : f32
    %84 = arith.truncf %cst_68 : f32 to bf16
    %85 = vector.shape_cast %83 : vector<16x1x1xi1> to vector<16x1x1xi1>
    %86 = vector.broadcast %85 : vector<16x1x1xi1> to vector<16x16x4xi1>
    %87 = vector.broadcast %84 : bf16 to vector<16x16x4xbf16>
    %88 = arith.select %86, %73, %87 : vector<16x16x4xi1>, vector<16x16x4xbf16>
    %89 = vector.extract_strided_slice %88 {offsets = [0, 0, 0], sizes = [14, 16, 4], strides = [1, 1, 1]} : vector<16x16x4xbf16> to vector<14x16x4xbf16>
    %90 = vector.extract_strided_slice %88 {offsets = [1, 0, 0], sizes = [14, 16, 4], strides = [1, 1, 1]} : vector<16x16x4xbf16> to vector<14x16x4xbf16>
    %91 = arith.maximumf %89, %90 : vector<14x16x4xbf16>
    %92 = vector.extract_strided_slice %88 {offsets = [2, 0, 0], sizes = [14, 16, 4], strides = [1, 1, 1]} : vector<16x16x4xbf16> to vector<14x16x4xbf16>
    %93 = arith.maximumf %91, %92 : vector<14x16x4xbf16>
    %cst_69 = arith.constant 0.000000e+00 : bf16
    %94 = vector.broadcast %cst_69 : bf16 to vector<14x1x4xbf16>
    %95 = tpu.concatenate %94, %93, %94 in 1 : vector<14x1x4xbf16>, vector<14x16x4xbf16>, vector<14x1x4xbf16> -> vector<14x18x4xbf16>
    %96 = vector.extract_strided_slice %95 {offsets = [0, 0, 0], sizes = [14, 16, 4], strides = [1, 1, 1]} : vector<14x18x4xbf16> to vector<14x16x4xbf16>
    %97 = arith.maximumf %93, %96 : vector<14x16x4xbf16>
    %98 = vector.extract_strided_slice %95 {offsets = [0, 2, 0], sizes = [14, 16, 4], strides = [1, 1, 1]} : vector<14x18x4xbf16> to vector<14x16x4xbf16>
    %99 = arith.maximumf %97, %98 : vector<14x16x4xbf16>
    %100 = vector.extract_strided_slice %99 {offsets = [0, 0, 0], sizes = [12, 16, 4], strides = [1, 1, 1]} : vector<14x16x4xbf16> to vector<12x16x4xbf16>
    %101 = vector.extract_strided_slice %99 {offsets = [1, 0, 0], sizes = [12, 16, 4], strides = [1, 1, 1]} : vector<14x16x4xbf16> to vector<12x16x4xbf16>
    %102 = arith.maximumf %100, %101 : vector<12x16x4xbf16>
    %103 = vector.extract_strided_slice %99 {offsets = [2, 0, 0], sizes = [12, 16, 4], strides = [1, 1, 1]} : vector<14x16x4xbf16> to vector<12x16x4xbf16>
    %104 = arith.maximumf %102, %103 : vector<12x16x4xbf16>
    %cst_70 = arith.constant 0.000000e+00 : bf16
    %105 = vector.broadcast %cst_70 : bf16 to vector<12x1x4xbf16>
    %106 = tpu.concatenate %105, %104, %105 in 1 : vector<12x1x4xbf16>, vector<12x16x4xbf16>, vector<12x1x4xbf16> -> vector<12x18x4xbf16>
    %107 = vector.extract_strided_slice %106 {offsets = [0, 0, 0], sizes = [12, 16, 4], strides = [1, 1, 1]} : vector<12x18x4xbf16> to vector<12x16x4xbf16>
    %108 = arith.maximumf %104, %107 : vector<12x16x4xbf16>
    %109 = vector.extract_strided_slice %106 {offsets = [0, 2, 0], sizes = [12, 16, 4], strides = [1, 1, 1]} : vector<12x18x4xbf16> to vector<12x16x4xbf16>
    %110 = arith.maximumf %108, %109 : vector<12x16x4xbf16>
    %111 = vector.extract_strided_slice %110 {offsets = [0, 0, 0], sizes = [8, 16, 4], strides = [1, 1, 1]} : vector<12x16x4xbf16> to vector<8x16x4xbf16>
    %112 = vector.extract_strided_slice %110 {offsets = [1, 0, 0], sizes = [8, 16, 4], strides = [1, 1, 1]} : vector<12x16x4xbf16> to vector<8x16x4xbf16>
    %113 = arith.maximumf %111, %112 : vector<8x16x4xbf16>
    %114 = vector.extract_strided_slice %110 {offsets = [2, 0, 0], sizes = [8, 16, 4], strides = [1, 1, 1]} : vector<12x16x4xbf16> to vector<8x16x4xbf16>
    %115 = arith.maximumf %113, %114 : vector<8x16x4xbf16>
    %116 = vector.extract_strided_slice %110 {offsets = [3, 0, 0], sizes = [8, 16, 4], strides = [1, 1, 1]} : vector<12x16x4xbf16> to vector<8x16x4xbf16>
    %117 = arith.maximumf %115, %116 : vector<8x16x4xbf16>
    %118 = vector.extract_strided_slice %110 {offsets = [4, 0, 0], sizes = [8, 16, 4], strides = [1, 1, 1]} : vector<12x16x4xbf16> to vector<8x16x4xbf16>
    %119 = arith.maximumf %117, %118 : vector<8x16x4xbf16>
    %cst_71 = arith.constant 0.000000e+00 : bf16
    %120 = vector.broadcast %cst_71 : bf16 to vector<8x2x4xbf16>
    %121 = tpu.concatenate %120, %119, %120 in 1 : vector<8x2x4xbf16>, vector<8x16x4xbf16>, vector<8x2x4xbf16> -> vector<8x20x4xbf16>
    %122 = vector.extract_strided_slice %121 {offsets = [0, 0, 0], sizes = [8, 16, 4], strides = [1, 1, 1]} : vector<8x20x4xbf16> to vector<8x16x4xbf16>
    %123 = arith.maximumf %119, %122 : vector<8x16x4xbf16>
    %124 = vector.extract_strided_slice %121 {offsets = [0, 1, 0], sizes = [8, 16, 4], strides = [1, 1, 1]} : vector<8x20x4xbf16> to vector<8x16x4xbf16>
    %125 = arith.maximumf %123, %124 : vector<8x16x4xbf16>
    %126 = vector.extract_strided_slice %121 {offsets = [0, 3, 0], sizes = [8, 16, 4], strides = [1, 1, 1]} : vector<8x20x4xbf16> to vector<8x16x4xbf16>
    %127 = arith.maximumf %125, %126 : vector<8x16x4xbf16>
    %128 = vector.extract_strided_slice %121 {offsets = [0, 4, 0], sizes = [8, 16, 4], strides = [1, 1, 1]} : vector<8x20x4xbf16> to vector<8x16x4xbf16>
    %129 = arith.maximumf %127, %128 : vector<8x16x4xbf16>
    %130 = vector.extract_strided_slice %88 {offsets = [4, 0, 0], sizes = [8, 16, 4], strides = [1, 1, 1]} : vector<16x16x4xbf16> to vector<8x16x4xbf16>
    %131 = vector.extract_strided_slice %99 {offsets = [3, 0, 0], sizes = [8, 16, 4], strides = [1, 1, 1]} : vector<14x16x4xbf16> to vector<8x16x4xbf16>
    %132 = vector.extract_strided_slice %110 {offsets = [2, 0, 0], sizes = [8, 16, 4], strides = [1, 1, 1]} : vector<12x16x4xbf16> to vector<8x16x4xbf16>
    %133 = vector.shape_cast %130 : vector<8x16x4xbf16> to vector<128x4xbf16>
    %c0_72 = arith.constant 0 : index
    %c0_73 = arith.constant 0 : index
    %c0_74 = arith.constant 0 : index
    %134 = vector.load %arg6[%c0_72, %c0_73, %c0_74] : memref<4x4x4xbf16, #tpu.memory_space<vmem>>, vector<1x4x4xbf16>
    %135 = vector.shape_cast %134 : vector<1x4x4xbf16> to vector<4x4xbf16>
    %cst_75 = arith.constant dense<0.000000e+00> : vector<128x4xf32>
    %136 = tpu.matmul %133, %135, %cst_75 {dimension_numbers = #tpu.dot_dimension_numbers<[1], [0], [0], [1], [0, 0, 1, 1], [], []>} : vector<128x4xbf16>, vector<4x4xbf16>, vector<128x4xf32> -> vector<128x4xf32>
    %137 = vector.shape_cast %131 : vector<8x16x4xbf16> to vector<128x4xbf16>
    %c1_76 = arith.constant 1 : index
    %c0_77 = arith.constant 0 : index
    %c0_78 = arith.constant 0 : index
    %138 = vector.load %arg6[%c1_76, %c0_77, %c0_78] : memref<4x4x4xbf16, #tpu.memory_space<vmem>>, vector<1x4x4xbf16>
    %139 = vector.shape_cast %138 : vector<1x4x4xbf16> to vector<4x4xbf16>
    %cst_79 = arith.constant dense<0.000000e+00> : vector<128x4xf32>
    %140 = tpu.matmul %137, %139, %cst_79 {dimension_numbers = #tpu.dot_dimension_numbers<[1], [0], [0], [1], [0, 0, 1, 1], [], []>} : vector<128x4xbf16>, vector<4x4xbf16>, vector<128x4xf32> -> vector<128x4xf32>
    %141 = arith.addf %136, %140 : vector<128x4xf32>
    %142 = vector.shape_cast %132 : vector<8x16x4xbf16> to vector<128x4xbf16>
    %c2_80 = arith.constant 2 : index
    %c0_81 = arith.constant 0 : index
    %c0_82 = arith.constant 0 : index
    %143 = vector.load %arg6[%c2_80, %c0_81, %c0_82] : memref<4x4x4xbf16, #tpu.memory_space<vmem>>, vector<1x4x4xbf16>
    %144 = vector.shape_cast %143 : vector<1x4x4xbf16> to vector<4x4xbf16>
    %cst_83 = arith.constant dense<0.000000e+00> : vector<128x4xf32>
    %145 = tpu.matmul %142, %144, %cst_83 {dimension_numbers = #tpu.dot_dimension_numbers<[1], [0], [0], [1], [0, 0, 1, 1], [], []>} : vector<128x4xbf16>, vector<4x4xbf16>, vector<128x4xf32> -> vector<128x4xf32>
    %146 = arith.addf %141, %145 : vector<128x4xf32>
    %147 = vector.shape_cast %129 : vector<8x16x4xbf16> to vector<128x4xbf16>
    %c3_84 = arith.constant 3 : index
    %c0_85 = arith.constant 0 : index
    %c0_86 = arith.constant 0 : index
    %148 = vector.load %arg6[%c3_84, %c0_85, %c0_86] : memref<4x4x4xbf16, #tpu.memory_space<vmem>>, vector<1x4x4xbf16>
    %149 = vector.shape_cast %148 : vector<1x4x4xbf16> to vector<4x4xbf16>
    %cst_87 = arith.constant dense<0.000000e+00> : vector<128x4xf32>
    %150 = tpu.matmul %147, %149, %cst_87 {dimension_numbers = #tpu.dot_dimension_numbers<[1], [0], [0], [1], [0, 0, 1, 1], [], []>} : vector<128x4xbf16>, vector<4x4xbf16>, vector<128x4xf32> -> vector<128x4xf32>
    %151 = arith.addf %146, %150 : vector<128x4xf32>
    %c0_88 = arith.constant 0 : index
    %c0_89 = arith.constant 0 : index
    %152 = vector.load %arg7[%c0_88, %c0_89] : memref<1x4xf32, #tpu.memory_space<vmem>>, vector<1x4xf32>
    %153 = vector.broadcast %152 : vector<1x4xf32> to vector<128x4xf32>
    %154 = arith.mulf %151, %153 : vector<128x4xf32>
    %c0_90 = arith.constant 0 : index
    %c0_91 = arith.constant 0 : index
    %155 = vector.load %arg8[%c0_90, %c0_91] : memref<1x4xf32, #tpu.memory_space<vmem>>, vector<1x4xf32>
    %156 = vector.broadcast %155 : vector<1x4xf32> to vector<128x4xf32>
    %157 = arith.addf %154, %156 : vector<128x4xf32>
    %cst_92 = arith.constant 0.000000e+00 : f32
    %158 = vector.broadcast %cst_92 : f32 to vector<128x4xf32>
    %159 = arith.maximumf %157, %158 : vector<128x4xf32>
    %160 = vector.shape_cast %159 : vector<128x4xf32> to vector<8x16x4xf32>
    %c0_93 = arith.constant 0 : index
    %c0_94 = arith.constant 0 : index
    %c0_95 = arith.constant 0 : index
    %c0_96 = arith.constant 0 : index
    %161 = vector.load %arg9[%c0_93, %c0_94, %c0_95, %c0_96] : memref<1x8x16x4xf32, #tpu.memory_space<vmem>>, vector<1x8x16x4xf32>
    %162 = vector.shape_cast %161 : vector<1x8x16x4xf32> to vector<8x16x4xf32>
    %163 = vector.shape_cast %160 : vector<8x16x4xf32> to vector<1x8x16x4xf32>
    tpu.vector_store %arg9[%c0_93, %c0_94, %c0_95, %c0_96], %163 {strides = array<i32>} : memref<1x8x16x4xf32, #tpu.memory_space<vmem>>, vector<1x8x16x4xf32>,
    return
  }
  func.func @transform_0(%arg0: i32, %arg1: i32) -> (i32, i32, i32, i32) {
    %c2_i32 = arith.constant 2 : i32
    %0 = arith.muli %arg0, %c2_i32 : i32
    %1 = arith.addi %0, %arg1 : i32
    %c0_i32 = arith.constant 0 : i32
    %c0_i32_0 = arith.constant 0 : i32
    %c0_i32_1 = arith.constant 0 : i32
    %c0_i32_2 = arith.constant 0 : i32
    return %1, %c0_i32, %c0_i32_0, %c0_i32_1 : i32, i32, i32, i32
  }
  func.func @transform_1(%arg0: i32, %arg1: i32) -> (i32, i32, i32) {
    %c0_i32 = arith.constant 0 : i32
    %c0_i32_0 = arith.constant 0 : i32
    %c0_i32_1 = arith.constant 0 : i32
    %c0_i32_2 = arith.constant 0 : i32
    return %c0_i32, %c0_i32_0, %c0_i32_1 : i32, i32, i32
  }
  func.func @transform_2(%arg0: i32, %arg1: i32) -> (i32, i32) {
    %c0_i32 = arith.constant 0 : i32
    %c0_i32_0 = arith.constant 0 : i32
    %c0_i32_1 = arith.constant 0 : i32
    return %c0_i32, %c0_i32_0 : i32, i32
  }
  func.func @transform_3(%arg0: i32, %arg1: i32) -> (i32, i32) {
    %c0_i32 = arith.constant 0 : i32
    %c0_i32_0 = arith.constant 0 : i32
    %c0_i32_1 = arith.constant 0 : i32
    return %c0_i32, %c0_i32_0 : i32, i32
  }
  func.func @transform_4(%arg0: i32, %arg1: i32) -> (i32, i32, i32) {
    %c0_i32 = arith.constant 0 : i32
    %c0_i32_0 = arith.constant 0 : i32
    %c0_i32_1 = arith.constant 0 : i32
    %c0_i32_2 = arith.constant 0 : i32
    return %c0_i32, %c0_i32_0, %c0_i32_1 : i32, i32, i32
  }
  func.func @transform_5(%arg0: i32, %arg1: i32) -> (i32, i32) {
    %c0_i32 = arith.constant 0 : i32
    %c0_i32_0 = arith.constant 0 : i32
    %c0_i32_1 = arith.constant 0 : i32
    return %c0_i32, %c0_i32_0 : i32, i32
  }
  func.func @transform_6(%arg0: i32, %arg1: i32) -> (i32, i32) {
    %c0_i32 = arith.constant 0 : i32
    %c0_i32_0 = arith.constant 0 : i32
    %c0_i32_1 = arith.constant 0 : i32
    return %c0_i32, %c0_i32_0 : i32, i32
  }
  func.func @transform_7(%arg0: i32, %arg1: i32) -> (i32, i32, i32, i32) {
    %c0_i32 = arith.constant 0 : i32
    %c0_i32_0 = arith.constant 0 : i32
    %c0_i32_1 = arith.constant 0 : i32
    return %arg0, %arg1, %c0_i32, %c0_i32_0 : i32, i32, i32, i32
  }
}

</mosaic_0001>

<llo_original>
// kernel: tpu_custom_call.1
$region0: #{tpu_custom_call.1}
  #allocation0 [shape = 'u32[]', space=smem, size = 0x4, offset = 0x4, fixed_abs, tag = 'smem constant byte address 0x4 - core index']
  #allocation1 [shape = 'u32[144,128]{1,0:T(1,128)}', space=vmem, size = 0x12000, scoped, tag = 'internal scratch']
  %s0 = inlined_call_operand.vmem [shape: bf16[4,18,18,4], index: 0, kind: input, shape index: {}]
  %s1 = inlined_call_operand.vmem [shape: bf16[9,4,4], index: 1, kind: input, shape index: {}]
  %s2 = inlined_call_operand.vmem [shape: f32[1,4], index: 2, kind: input, shape index: {}]
  %s3 = inlined_call_operand.vmem [shape: f32[1,4], index: 3, kind: input, shape index: {}]
  %s4 = inlined_call_operand.vmem [shape: bf16[4,4,4], index: 4, kind: input, shape index: {}]
  %s5 = inlined_call_operand.vmem [shape: f32[1,4], index: 5, kind: input, shape index: {}]
  %s6 = inlined_call_operand.vmem [shape: f32[1,4], index: 6, kind: input, shape index: {}]
  %s7 = inlined_call_operand.vmem [shape: f32[2,16,16,4], index: 7, kind: output, shape index: {}]
  %s8 = sld [smem:[#allocation0]]
  $region61: #{tpu_custom_call.1} parent=0
    _
  %s10 = ssub.s32 1, %s8
  %s11 = scalar_select 0, %s10, %s8
  loop: start=0, step=1, limit=6
  $region2: #{tpu_custom_call.1} parent=0 // loop_pre_header
    _
  $region3: #{tpu_custom_call.1} parent=0 // loop_header
    %s13 = sphi 0, %s17
    %p14 = scmp.ge.s32.totalorder %s13, 6
    %s20 = sphi 0, %s32
    %s21 = sphi 0, %s28
    %s22 = sphi 0, %s20
    %s23 = sphi 0, %s21
    %s24 = sphi 0, %s22
    %s25 = sphi 0, %s23
    %s39 = sphi 0, %s41
    %s42 = sphi 0, %s39
    %s43 = sphi 0, %s42
    %s59 = sphi 0, %s43
    %s63 = sphi 0, %s63
    %s65 = sphi 0, %s63
    %s66 = sphi 0, %s65
    %s80 = sphi 0, %s66
    %s84 = sphi 0, %s84
    %s86 = sphi 0, %s84
    %s87 = sphi 0, %s86
    %s101 = sphi 0, %s87
    %s105 = sphi 0, %s105
    %s107 = sphi 0, %s105
    %s108 = sphi 0, %s107
    %s122 = sphi 0, %s108
    %s126 = sphi 0, %s126
    %s128 = sphi 0, %s126
    %s129 = sphi 0, %s128
    %s143 = sphi 0, %s129
    %s147 = sphi 0, %s147
    %s149 = sphi 0, %s147
    %s150 = sphi 0, %s149
    %s164 = sphi 0, %s150
    %s168 = sphi 0, %s168
    %s170 = sphi 0, %s168
    %s171 = sphi 0, %s170
    %s185 = sphi 0, %s171
    %s193 = sphi 0, %s195
    %s196 = sphi 0, %s193
    %s197 = sphi 0, %s196
    %s213 = sphi 0, %s197
  $region4: #{tpu_custom_call.1} parent=0 // loop_header_branch
    %16 = sbr.rel (%p14) target = $region8
  $region5: #{tpu_custom_call.1} parent=0 // loop_body
    %s18 = ssub.s32 %s13, 1
    %s19 = ssub.s32 %s13, 2
    %s26 = sadd.s32 1, %s21
    %p27 = scmp.ge.s32.totalorder %s26, 2
    %s28 = scalar_select %p27, 0, %s26
    %s29 = sadd.s32 1, %s20
    %s30 = scalar_select %p27, %s29, %s20
    %p31 = scmp.ge.s32.totalorder %s30, 2
    %s32 = scalar_select %p31, 0, %s30
    %s33 = smul.u32 %s20, 2
    %s34 = sadd.s32 %s33, %s21
    %s35 = smul.u32 %s32, 2
    %s36 = sadd.s32 %s35, %s28
    %s37 = ssub.s32 %s34, %s36
    %p38 = scmp.eq.s32.totalorder %s37, 0
    %s40 = sadd.s32 %s39, 1
    %s41 = scalar_select %p38, %s39, %s40
    %p44 = pneg %p38
    %p45 = scmp.eq.s32.totalorder %s13, 3
    %p46 = por %p44, %p45
    %p47 = scmp.ne.s32.totalorder %s39, %s42
    %p48 = scmp.eq.s32.totalorder %s13, 0
    %p49 = por %p47, %p48
    %p50 = scmp.ne.s32.totalorder %s39, %s42
    %p51 = scmp.eq.s32.totalorder %s18, 3
    %p52 = por %p50, %p51
    %p53 = scmp.ne.s32.totalorder %s42, %s43
    %p54 = scmp.eq.s32.totalorder %s18, 0
    %p55 = por %p53, %p54
    %p56 = scmp.ne.s32.totalorder %s42, %s43
    %p57 = scmp.eq.s32.totalorder %s19, 3
    %p58 = por %p56, %p57
    %p60 = scmp.ne.s32.totalorder %s43, %s59
    %p61 = scmp.eq.s32.totalorder %s19, 0
    %p62 = por %p60, %p61
    %s64 = sadd.s32 %s63, 1
    %p67 = scmp.eq.s32.totalorder %s13, 3
    %p68 = scmp.ne.s32.totalorder %s63, %s65
    %p69 = scmp.eq.s32.totalorder %s13, 0
    %p70 = por %p68, %p69
    %p71 = scmp.ne.s32.totalorder %s63, %s65
    %p72 = scmp.eq.s32.totalorder %s18, 3
    %p73 = por %p71, %p72
    %p74 = scmp.ne.s32.totalorder %s65, %s66
    %p75 = scmp.eq.s32.totalorder %s18, 0
    %p76 = por %p74, %p75
    %p77 = scmp.ne.s32.totalorder %s65, %s66
    %p78 = scmp.eq.s32.totalorder %s19, 3
    %p79 = por %p77, %p78
    %p81 = scmp.ne.s32.totalorder %s66, %s80
    %p82 = scmp.eq.s32.totalorder %s19, 0
    %p83 = por %p81, %p82
    %s85 = sadd.s32 %s84, 1
    %p88 = scmp.eq.s32.totalorder %s13, 3
    %p89 = scmp.ne.s32.totalorder %s84, %s86
    %p90 = scmp.eq.s32.totalorder %s13, 0
    %p91 = por %p89, %p90
    %p92 = scmp.ne.s32.totalorder %s84, %s86
    %p93 = scmp.eq.s32.totalorder %s18, 3
    %p94 = por %p92, %p93
    %p95 = scmp.ne.s32.totalorder %s86, %s87
    %p96 = scmp.eq.s32.totalorder %s18, 0
    %p97 = por %p95, %p96
    %p98 = scmp.ne.s32.totalorder %s86, %s87
    %p99 = scmp.eq.s32.totalorder %s19, 3
    %p100 = por %p98, %p99
    %p102 = scmp.ne.s32.totalorder %s87, %s101
    %p103 = scmp.eq.s32.totalorder %s19, 0
    %p104 = por %p102, %p103
    %s106 = sadd.s32 %s105, 1
    %p109 = scmp.eq.s32.totalorder %s13, 3
    %p110 = scmp.ne.s32.totalorder %s105, %s107
    %p111 = scmp.eq.s32.totalorder %s13, 0
    %p112 = por %p110, %p111
    %p113 = scmp.ne.s32.totalorder %s105, %s107
    %p114 = scmp.eq.s32.totalorder %s18, 3
    %p115 = por %p113, %p114
    %p116 = scmp.ne.s32.totalorder %s107, %s108
    %p117 = scmp.eq.s32.totalorder %s18, 0
    %p118 = por %p116, %p117
    %p119 = scmp.ne.s32.totalorder %s107, %s108
    %p120 = scmp.eq.s32.totalorder %s19, 3
    %p121 = por %p119, %p120
    %p123 = scmp.ne.s32.totalorder %s108, %s122
    %p124 = scmp.eq.s32.totalorder %s19, 0
    %p125 = por %p123, %p124
    %s127 = sadd.s32 %s126, 1
    %p130 = scmp.eq.s32.totalorder %s13, 3
    %p131 = scmp.ne.s32.totalorder %s126, %s128
    %p132 = scmp.eq.s32.totalorder %s13, 0
    %p133 = por %p131, %p132
    %p134 = scmp.ne.s32.totalorder %s126, %s128
    %p135 = scmp.eq.s32.totalorder %s18, 3
    %p136 = por %p134, %p135
    %p137 = scmp.ne.s32.totalorder %s128, %s129
    %p138 = scmp.eq.s32.totalorder %s18, 0
    %p139 = por %p137, %p138
    %p140 = scmp.ne.s32.totalorder %s128, %s129
    %p141 = scmp.eq.s32.totalorder %s19, 3
    %p142 = por %p140, %p141
    %p144 = scmp.ne.s32.totalorder %s129, %s143
    %p145 = scmp.eq.s32.totalorder %s19, 0
    %p146 = por %p144, %p145
    %s148 = sadd.s32 %s147, 1
    %p151 = scmp.eq.s32.totalorder %s13, 3
    %p152 = scmp.ne.s32.totalorder %s147, %s149
    %p153 = scmp.eq.s32.totalorder %s13, 0
    %p154 = por %p152, %p153
    %p155 = scmp.ne.s32.totalorder %s147, %s149
    %p156 = scmp.eq.s32.totalorder %s18, 3
    %p157 = por %p155, %p156
    %p158 = scmp.ne.s32.totalorder %s149, %s150
    %p159 = scmp.eq.s32.totalorder %s18, 0
    %p160 = por %p158, %p159
    %p161 = scmp.ne.s32.totalorder %s149, %s150
    %p162 = scmp.eq.s32.totalorder %s19, 3
    %p163 = por %p161, %p162
    %p165 = scmp.ne.s32.totalorder %s150, %s164
    %p166 = scmp.eq.s32.totalorder %s19, 0
    %p167 = por %p165, %p166
    %s169 = sadd.s32 %s168, 1
    %p172 = scmp.eq.s32.totalorder %s13, 3
    %p173 = scmp.ne.s32.totalorder %s168, %s170
    %p174 = scmp.eq.s32.totalorder %s13, 0
    %p175 = por %p173, %p174
    %p176 = scmp.ne.s32.totalorder %s168, %s170
    %p177 = scmp.eq.s32.totalorder %s18, 3
    %p178 = por %p176, %p177
    %p179 = scmp.ne.s32.totalorder %s170, %s171
    %p180 = scmp.eq.s32.totalorder %s18, 0
    %p181 = por %p179, %p180
    %p182 = scmp.ne.s32.totalorder %s170, %s171
    %p183 = scmp.eq.s32.totalorder %s19, 3
    %p184 = por %p182, %p183
    %p186 = scmp.ne.s32.totalorder %s171, %s185
    %p187 = scmp.eq.s32.totalorder %s19, 0
    %p188 = por %p186, %p187
    %s189 = ssub.s32 %s20, %s32
    %s190 = ssub.s32 %s21, %s28
    %s191 = sor.u32 %s189, %s190
    %p192 = scmp.eq.s32.totalorder %s191, 0
    %s194 = sadd.s32 %s193, 1
    %s195 = scalar_select %p192, %s193, %s194
    %p198 = pneg %p192
    %p199 = scmp.eq.s32.totalorder %s13, 3
    %p200 = por %p198, %p199
    %p201 = scmp.ne.s32.totalorder %s193, %s196
    %p202 = scmp.eq.s32.totalorder %s13, 0
    %p203 = por %p201, %p202
    %p204 = scmp.ne.s32.totalorder %s193, %s196
    %p205 = scmp.eq.s32.totalorder %s18, 3
    %p206 = por %p204, %p205
    %p207 = scmp.ne.s32.totalorder %s196, %s197
    %p208 = scmp.eq.s32.totalorder %s18, 0
    %p209 = por %p207, %p208
    %p210 = scmp.ne.s32.totalorder %s196, %s197
    %p211 = scmp.eq.s32.totalorder %s19, 3
    %p212 = por %p210, %p211
    %p214 = scmp.ne.s32.totalorder %s197, %s213
    %p215 = scmp.eq.s32.totalorder %s19, 0
    %p216 = por %p214, %p215
    %p217 = scmp.le.s32.totalorder 1, %s13
    %p218 = scmp.lt.s32.totalorder %s13, 5
    %p219 = pnand %p217, %p218
    %p220 = pneg %p219
    // Predicated region
    $region9: #{tpu_custom_call.1} parent=5 // pred_check
      _
    $region10: #{tpu_custom_call.1} parent=5 // pred_check_branch
      %222 = sbr.rel (%p219) target = $region12
    $region11: #{tpu_custom_call.1} parent=5 // pred_region
      %s223 = ssub.s32 %s13, 1
      // Predicated region
      $region13: #{tpu_custom_call.1} parent=11 // pred_check
        %p224 = pneg %p76
      $region14: #{tpu_custom_call.1} parent=11 // pred_check_branch
        %226 = sbr.rel (%p224) target = $region16
      $region15: #{tpu_custom_call.1} parent=11 // pred_region
        _
      $region16: #{tpu_custom_call.1} parent=11 // pred_fallthru
        _
      // Predicated region
      $region17: #{tpu_custom_call.1} parent=11 // pred_check
        %p227 = pneg %p97
      $region18: #{tpu_custom_call.1} parent=11 // pred_check_branch
        %229 = sbr.rel (%p227) target = $region20
      $region19: #{tpu_custom_call.1} parent=11 // pred_region
        _
      $region20: #{tpu_custom_call.1} parent=11 // pred_fallthru
        _
      // Predicated region
      $region21: #{tpu_custom_call.1} parent=11 // pred_check
        %p230 = pneg %p118
      $region22: #{tpu_custom_call.1} parent=11 // pred_check_branch
        %232 = sbr.rel (%p230) target = $region24
      $region23: #{tpu_custom_call.1} parent=11 // pred_region
        _
      $region24: #{tpu_custom_call.1} parent=11 // pred_fallthru
        _
      // Predicated region
      $region25: #{tpu_custom_call.1} parent=11 // pred_check
        %p233 = pneg %p139
      $region26: #{tpu_custom_call.1} parent=11 // pred_check_branch
        %235 = sbr.rel (%p233) target = $region28
      $region27: #{tpu_custom_call.1} parent=11 // pred_region
        _
      $region28: #{tpu_custom_call.1} parent=11 // pred_fallthru
        _
      // Predicated region
      $region29: #{tpu_custom_call.1} parent=11 // pred_check
        %p236 = pneg %p160
      $region30: #{tpu_custom_call.1} parent=11 // pred_check_branch
        %238 = sbr.rel (%p236) target = $region32
      $region31: #{tpu_custom_call.1} parent=11 // pred_region
        _
      $region32: #{tpu_custom_call.1} parent=11 // pred_fallthru
        _
      // Predicated region
      $region33: #{tpu_custom_call.1} parent=11 // pred_check
        %p239 = pneg %p181
      $region34: #{tpu_custom_call.1} parent=11 // pred_check_branch
        %241 = sbr.rel (%p239) target = $region36
      $region35: #{tpu_custom_call.1} parent=11 // pred_region
        _
      $region36: #{tpu_custom_call.1} parent=11 // pred_fallthru
        _
    $region12: #{tpu_custom_call.1} parent=5 // pred_fallthru
      _
    %p242 = scmp.lt.s32.totalorder %s13, 4
    // Predicated region
    $region37: #{tpu_custom_call.1} parent=5 // pred_check
      %p243 = pneg %p242
    $region38: #{tpu_custom_call.1} parent=5 // pred_check_branch
      %245 = sbr.rel (%p243) target = $region40
    $region39: #{tpu_custom_call.1} parent=5 // pred_region
      // Predicated region
      $region41: #{tpu_custom_call.1} parent=39 // pred_check
        %p246 = pneg %p49
      $region42: #{tpu_custom_call.1} parent=39 // pred_check_branch
        %248 = sbr.rel (%p246) target = $region44
      $region43: #{tpu_custom_call.1} parent=39 // pred_region
        %s249 = smul.u32 %s20, 2
        %s250 = sadd.s32 %s249, %s21
        %p251 = scmp.lt.s32.totalorder %s250, 3
        %s252 = scalar_select %p251, %s250, 3
        %s253 = smul.addr %s252, 54
        %s254 = smul.addr %s253, 4
        %s255 = scalar_lea.vmem %s0, %s254
        %s256 = smul.u32 %s20, 2
        %s257 = sadd.s32 %s256, %s21
      $region44: #{tpu_custom_call.1} parent=39 // pred_fallthru
        _
    $region40: #{tpu_custom_call.1} parent=5 // pred_fallthru
      _
    %p258 = scmp.le.s32.totalorder 1, %s13
    %p259 = scmp.lt.s32.totalorder %s13, 5
    %p260 = pnand %p258, %p259
    %p261 = pneg %p260
    // Predicated region
    $region45: #{tpu_custom_call.1} parent=5 // pred_check
      _
    $region46: #{tpu_custom_call.1} parent=5 // pred_check_branch
      %263 = sbr.rel (%p260) target = $region48
    $region47: #{tpu_custom_call.1} parent=5 // pred_region
      %s264 = ssub.s32 %s13, 1
      %s265 = smul.u32 %s22, 2
      %s266 = sadd.s32 %s265, %s23
      %p267 = scmp.lt.s32.totalorder %s266, 3
      %s268 = scalar_select %p267, %s266, 3
      %s269 = smul.addr %s268, 54
      %s270 = smul.addr %s269, 4
      %s271 = scalar_lea.vmem %s0, %s270
      %p272 = pneg %p55
      %p273 = pneg %p52
      %p274 = pneg %p76
      %p275 = pneg %p73
      %p276 = pneg %p97
      %p277 = pneg %p94
      %p278 = pneg %p118
      %p279 = pneg %p115
      %p280 = pneg %p139
      %p281 = pneg %p136
      %p282 = pneg %p160
      %p283 = pneg %p157
      %p284 = pneg %p181
      %p285 = pneg %p178
      %p286 = pneg %p209
      %p287 = pneg %p206
      %s288 = smul.u32 8, %s23
      %p289 = scmp.lt.s32.totalorder %s22, 1
      %s290 = scalar_select %p289, %s22, 1
      %p291 = scmp.lt.s32.totalorder %s288, 15
      %s292 = scalar_select %p291, %s288, 15
      %s293 = smul.addr %s292, 2
      %s294 = smul.addr %s290, 32
      %s295 = sadd.s32 %s293, %s294
      %s296 = smul.addr %s295, 8
      %s297 = scalar_lea.vmem %s7, %s296
      %s298 = smul.u32 %s22, 2
      %s299 = sadd.s32 %s298, %s23
      %p300 = scmp.lt.s32.totalorder %s299, 3
      %s301 = scalar_select %p300, %s299, 3
      %s302 = smul.addr %s301, 54
      %s303 = smul.addr %s302, 4
      %s304 = scalar_lea.vmem %s0, %s303
      %s305 = smul.u32 %s22, 2
      %s306 = sadd.s32 %s305, %s23
      %s307 = smul.u32 8, %s23
      %p308 = scmp.lt.s32.totalorder %s22, 1
      %s309 = scalar_select %p308, %s22, 1
      %p310 = scmp.lt.s32.totalorder %s307, 15
      %s311 = scalar_select %p310, %s307, 15
      %s312 = smul.addr %s311, 2
      %s313 = smul.addr %s309, 32
      %s314 = sadd.s32 %s312, %s313
      %s315 = smul.addr %s314, 8
      %s316 = scalar_lea.vmem %s7, %s315
      %s317 = smul.u32 8, %s23
      %v319 = vld [vmem:[%s304] sm:$0xf]
      %v320 = vld [vmem:[%s304 + $0x4] sm:$0xf]
      %v321 = vld [vmem:[%s304 + $0xc] sm:$0xf]
      %v322 = vld [vmem:[%s304 + $0x10] sm:$0xf]
      %v323 = vld [vmem:[%s304 + $0x18] sm:$0xf]
      %v324 = vld [vmem:[%s304 + $0x1c] sm:$0xf]
      %v325 = vld [vmem:[%s304 + $0x24] sm:$0xf]
      %v326 = vld [vmem:[%s304 + $0x28] sm:$0xf]
      %v327 = vld [vmem:[%s304 + $0x30] sm:$0xf]
      %v328 = vld [vmem:[%s304 + $0x34] sm:$0xf]
      %v329 = vld [vmem:[%s304 + $0x3c] sm:$0xf]
      %v330 = vld [vmem:[%s304 + $0x40] sm:$0xf]
      %v331 = vld [vmem:[%s304 + $0x48] sm:$0xf]
      %v332 = vld [vmem:[%s304 + $0x4c] sm:$0xf]
      %v333 = vld [vmem:[%s304 + $0x54] sm:$0xf]
      %v334 = vld [vmem:[%s304 + $0x58] sm:$0xf]
      %v335 = vld [vmem:[%s304 + $0x60] sm:$0xf]
      %v336 = vld [vmem:[%s304 + $0x64] sm:$0xf]
      %v337 = vld [vmem:[%s304 + $0x6c] sm:$0xf]
      %v338 = vld [vmem:[%s304 + $0x70] sm:$0xf]
      %v339 = vld [vmem:[%s304 + $0x78] sm:$0xf]
      %v340 = vld [vmem:[%s304 + $0x7c] sm:$0xf]
      %v341 = vld [vmem:[%s304 + $0x84] sm:$0xf]
      %v342 = vld [vmem:[%s304 + $0x88] sm:$0xf]
      %v343 = vld [vmem:[%s304 + $0x90] sm:$0xf]
      %v344 = vld [vmem:[%s304 + $0x94] sm:$0xf]
      %v345 = vld [vmem:[%s304 + $0x9c] sm:$0xf]
      %v346 = vld [vmem:[%s304 + $0xa0] sm:$0xf]
      %v347 = vld [vmem:[%s304 + $0xa8] sm:$0xf]
      %v348 = vld [vmem:[%s304 + $0xac] sm:$0xf]
      %v349 = vld [vmem:[%s304 + $0xb4] sm:$0xf]
      %v350 = vld [vmem:[%s304 + $0xb8] sm:$0xf]
      %v351 = vld [vmem:[%s1] sm:$0x3]
      %v352 = vld [vmem:[%s304 + $0x8] sm:$0x1]
      %v353 = vld [vmem:[%s304 + $0x14] sm:$0x1]
      %v354 = vld [vmem:[%s304 + $0x20] sm:$0x1]
      %v355 = vld [vmem:[%s304 + $0x2c] sm:$0x1]
      %v356 = vld [vmem:[%s304 + $0x38] sm:$0x1]
      %v357 = vld [vmem:[%s304 + $0x44] sm:$0x1]
      %v358 = vld [vmem:[%s304 + $0x50] sm:$0x1]
      %v359 = vld [vmem:[%s304 + $0x5c] sm:$0x1]
      %v360 = vld [vmem:[%s304 + $0x68] sm:$0x1]
      %v361 = vld [vmem:[%s304 + $0x74] sm:$0x1]
      %v362 = vld [vmem:[%s304 + $0x80] sm:$0x1]
      %v363 = vld [vmem:[%s304 + $0x8c] sm:$0x1]
      %v364 = vld [vmem:[%s304 + $0x98] sm:$0x1]
      %v365 = vld [vmem:[%s304 + $0xa4] sm:$0x1]
      %v366 = vld [vmem:[%s304 + $0xb0] sm:$0x1]
      %v367 = vld [vmem:[%s304 + $0xbc] sm:$0x1]
      %vm368 = vsmask.f32 3328
      %vm369 = vsmask.f32 7440
      %vm370 = vmor %vm368, %vm369
      %v372 = vshrl.u32 %v319, 16
      %v374 = vrot.slane %v372, 4
      %v375 = vshll.u32 %v319, 16
      %v377 = vrot.slane %v375, 5
      %v378 = vor.u32 %v374, %v377
      %v379 = vrot.slane %v378, 4
      %v381 = vshll.u32 %v320, 16
      %v383 = vrot.slane %v381, 5
      %v384 = vsel %vm370, %v379, %v383
      %v385 = vshrl.u32 %v320, 16
      %v387 = vrot.slane %v385, 4
      %v388 = vor.u32 %v387, %v383
      %v389 = vrot.slane %v388, 4
      %v391 = vshll.u32 %v352, 16
      %v393 = vrot.slane %v391, 5
      %v394 = vsel %vm370, %v389, %v393
      %v396 = vshrl.u32 %v321, 16
      %v398 = vrot.slane %v396, 4
      %v399 = vshll.u32 %v321, 16
      %v401 = vrot.slane %v399, 5
      %v402 = vor.u32 %v398, %v401
      %v403 = vrot.slane %v402, 4
      %v405 = vshll.u32 %v322, 16
      %v407 = vrot.slane %v405, 5
      %v408 = vsel %vm370, %v403, %v407
      %v409 = vshrl.u32 %v322, 16
      %v411 = vrot.slane %v409, 4
      %v412 = vor.u32 %v411, %v407
      %v413 = vrot.slane %v412, 4
      %v415 = vshll.u32 %v353, 16
      %v417 = vrot.slane %v415, 5
      %v418 = vsel %vm370, %v413, %v417
      %v420 = vshrl.u32 %v323, 16
      %v422 = vrot.slane %v420, 4
      %v423 = vshll.u32 %v323, 16
      %v425 = vrot.slane %v423, 5
      %v426 = vor.u32 %v422, %v425
      %v427 = vrot.slane %v426, 4
      %v429 = vshll.u32 %v324, 16
      %v431 = vrot.slane %v429, 5
      %v432 = vsel %vm370, %v427, %v431
      %v433 = vshrl.u32 %v324, 16
      %v435 = vrot.slane %v433, 4
      %v436 = vor.u32 %v435, %v431
      %v437 = vrot.slane %v436, 4
      %v439 = vshll.u32 %v354, 16
      %v441 = vrot.slane %v439, 5
      %v442 = vsel %vm370, %v437, %v441
      %v444 = vshrl.u32 %v325, 16
      %v446 = vrot.slane %v444, 4
      %v447 = vshll.u32 %v325, 16
      %v449 = vrot.slane %v447, 5
      %v450 = vor.u32 %v446, %v449
      %v451 = vrot.slane %v450, 4
      %v453 = vshll.u32 %v326, 16
      %v455 = vrot.slane %v453, 5
      %v456 = vsel %vm370, %v451, %v455
      %v457 = vshrl.u32 %v326, 16
      %v459 = vrot.slane %v457, 4
      %v460 = vor.u32 %v459, %v455
      %v461 = vrot.slane %v460, 4
      %v463 = vshll.u32 %v355, 16
      %v465 = vrot.slane %v463, 5
      %v466 = vsel %vm370, %v461, %v465
      %v468 = vshrl.u32 %v327, 16
      %v470 = vrot.slane %v468, 4
      %v471 = vshll.u32 %v327, 16
      %v473 = vrot.slane %v471, 5
      %v474 = vor.u32 %v470, %v473
      %v475 = vrot.slane %v474, 4
      %v477 = vshll.u32 %v328, 16
      %v479 = vrot.slane %v477, 5
      %v480 = vsel %vm370, %v475, %v479
      %v481 = vshrl.u32 %v328, 16
      %v483 = vrot.slane %v481, 4
      %v484 = vor.u32 %v483, %v479
      %v485 = vrot.slane %v484, 4
      %v487 = vshll.u32 %v356, 16
      %v489 = vrot.slane %v487, 5
      %v490 = vsel %vm370, %v485, %v489
      %v492 = vshrl.u32 %v329, 16
      %v494 = vrot.slane %v492, 4
      %v495 = vshll.u32 %v329, 16
      %v497 = vrot.slane %v495, 5
      %v498 = vor.u32 %v494, %v497
      %v499 = vrot.slane %v498, 4
      %v501 = vshll.u32 %v330, 16
      %v503 = vrot.slane %v501, 5
      %v504 = vsel %vm370, %v499, %v503
      %v505 = vshrl.u32 %v330, 16
      %v507 = vrot.slane %v505, 4
      %v508 = vor.u32 %v507, %v503
      %v509 = vrot.slane %v508, 4
      %v511 = vshll.u32 %v357, 16
      %v513 = vrot.slane %v511, 5
      %v514 = vsel %vm370, %v509, %v513
      %v516 = vshrl.u32 %v331, 16
      %v518 = vrot.slane %v516, 4
      %v519 = vshll.u32 %v331, 16
      %v521 = vrot.slane %v519, 5
      %v522 = vor.u32 %v518, %v521
      %v523 = vrot.slane %v522, 4
      %v525 = vshll.u32 %v332, 16
      %v527 = vrot.slane %v525, 5
      %v528 = vsel %vm370, %v523, %v527
      %v529 = vshrl.u32 %v332, 16
      %v531 = vrot.slane %v529, 4
      %v532 = vor.u32 %v531, %v527
      %v533 = vrot.slane %v532, 4
      %v535 = vshll.u32 %v358, 16
      %v537 = vrot.slane %v535, 5
      %v538 = vsel %vm370, %v533, %v537
      %v540 = vshrl.u32 %v333, 16
      %v542 = vrot.slane %v540, 4
      %v543 = vshll.u32 %v333, 16
      %v545 = vrot.slane %v543, 5
      %v546 = vor.u32 %v542, %v545
      %v547 = vrot.slane %v546, 4
      %v549 = vshll.u32 %v334, 16
      %v551 = vrot.slane %v549, 5
      %v552 = vsel %vm370, %v547, %v551
      %v553 = vshrl.u32 %v334, 16
      %v555 = vrot.slane %v553, 4
      %v556 = vor.u32 %v555, %v551
      %v557 = vrot.slane %v556, 4
      %v559 = vshll.u32 %v359, 16
      %v561 = vrot.slane %v559, 5
      %v562 = vsel %vm370, %v557, %v561
      %v564 = vshrl.u32 %v335, 16
      %v566 = vrot.slane %v564, 4
      %v567 = vshll.u32 %v335, 16
      %v569 = vrot.slane %v567, 5
      %v570 = vor.u32 %v566, %v569
      %v571 = vrot.slane %v570, 4
      %v573 = vshll.u32 %v336, 16
      %v575 = vrot.slane %v573, 5
      %v576 = vsel %vm370, %v571, %v575
      %v577 = vshrl.u32 %v336, 16
      %v579 = vrot.slane %v577, 4
      %v580 = vor.u32 %v579, %v575
      %v581 = vrot.slane %v580, 4
      %v583 = vshll.u32 %v360, 16
      %v585 = vrot.slane %v583, 5
      %v586 = vsel %vm370, %v581, %v585
      %v588 = vshrl.u32 %v337, 16
      %v590 = vrot.slane %v588, 4
      %v591 = vshll.u32 %v337, 16
      %v593 = vrot.slane %v591, 5
      %v594 = vor.u32 %v590, %v593
      %v595 = vrot.slane %v594, 4
      %v597 = vshll.u32 %v338, 16
      %v599 = vrot.slane %v597, 5
      %v600 = vsel %vm370, %v595, %v599
      %v601 = vshrl.u32 %v338, 16
      %v603 = vrot.slane %v601, 4
      %v604 = vor.u32 %v603, %v599
      %v605 = vrot.slane %v604, 4
      %v607 = vshll.u32 %v361, 16
      %v609 = vrot.slane %v607, 5
      %v610 = vsel %vm370, %v605, %v609
      %v612 = vshrl.u32 %v339, 16
      %v614 = vrot.slane %v612, 4
      %v615 = vshll.u32 %v339, 16
      %v617 = vrot.slane %v615, 5
      %v618 = vor.u32 %v614, %v617
      %v619 = vrot.slane %v618, 4
      %v621 = vshll.u32 %v340, 16
      %v623 = vrot.slane %v621, 5
      %v624 = vsel %vm370, %v619, %v623
      %v625 = vshrl.u32 %v340, 16
      %v627 = vrot.slane %v625, 4
      %v628 = vor.u32 %v627, %v623
      %v629 = vrot.slane %v628, 4
      %v631 = vshll.u32 %v362, 16
      %v633 = vrot.slane %v631, 5
      %v634 = vsel %vm370, %v629, %v633
      %v636 = vshrl.u32 %v341, 16
      %v638 = vrot.slane %v636, 4
      %v639 = vshll.u32 %v341, 16
      %v641 = vrot.slane %v639, 5
      %v642 = vor.u32 %v638, %v641
      %v643 = vrot.slane %v642, 4
      %v645 = vshll.u32 %v342, 16
      %v647 = vrot.slane %v645, 5
      %v648 = vsel %vm370, %v643, %v647
      %v649 = vshrl.u32 %v342, 16
      %v651 = vrot.slane %v649, 4
      %v652 = vor.u32 %v651, %v647
      %v653 = vrot.slane %v652, 4
      %v655 = vshll.u32 %v363, 16
      %v657 = vrot.slane %v655, 5
      %v658 = vsel %vm370, %v653, %v657
      %v660 = vshrl.u32 %v343, 16
      %v662 = vrot.slane %v660, 4
      %v663 = vshll.u32 %v343, 16
      %v665 = vrot.slane %v663, 5
      %v666 = vor.u32 %v662, %v665
      %v667 = vrot.slane %v666, 4
      %v669 = vshll.u32 %v344, 16
      %v671 = vrot.slane %v669, 5
      %v672 = vsel %vm370, %v667, %v671
      %v673 = vshrl.u32 %v344, 16
      %v675 = vrot.slane %v673, 4
      %v676 = vor.u32 %v675, %v671
      %v677 = vrot.slane %v676, 4
      %v679 = vshll.u32 %v364, 16
      %v681 = vrot.slane %v679, 5
      %v682 = vsel %vm370, %v677, %v681
      %v684 = vshrl.u32 %v345, 16
      %v686 = vrot.slane %v684, 4
      %v687 = vshll.u32 %v345, 16
      %v689 = vrot.slane %v687, 5
      %v690 = vor.u32 %v686, %v689
      %v691 = vrot.slane %v690, 4
      %v693 = vshll.u32 %v346, 16
      %v695 = vrot.slane %v693, 5
      %v696 = vsel %vm370, %v691, %v695
      %v697 = vshrl.u32 %v346, 16
      %v699 = vrot.slane %v697, 4
      %v700 = vor.u32 %v699, %v695
      %v701 = vrot.slane %v700, 4
      %v703 = vshll.u32 %v365, 16
      %v705 = vrot.slane %v703, 5
      %v706 = vsel %vm370, %v701, %v705
      %v708 = vshrl.u32 %v347, 16
      %v710 = vrot.slane %v708, 4
      %v711 = vshll.u32 %v347, 16
      %v713 = vrot.slane %v711, 5
      %v714 = vor.u32 %v710, %v713
      %v715 = vrot.slane %v714, 4
      %v717 = vshll.u32 %v348, 16
      %v719 = vrot.slane %v717, 5
      %v720 = vsel %vm370, %v715, %v719
      %v721 = vshrl.u32 %v348, 16
      %v723 = vrot.slane %v721, 4
      %v724 = vor.u32 %v723, %v719
      %v725 = vrot.slane %v724, 4
      %v727 = vshll.u32 %v366, 16
      %v729 = vrot.slane %v727, 5
      %v730 = vsel %vm370, %v725, %v729
      %v732 = vshrl.u32 %v349, 16
      %v734 = vrot.slane %v732, 4
      %v735 = vshll.u32 %v349, 16
      %v737 = vrot.slane %v735, 5
      %v738 = vor.u32 %v734, %v737
      %v739 = vrot.slane %v738, 4
      %v741 = vshll.u32 %v350, 16
      %v743 = vrot.slane %v741, 5
      %v744 = vsel %vm370, %v739, %v743
      %v745 = vshrl.u32 %v350, 16
      %v747 = vrot.slane %v745, 4
      %v748 = vor.u32 %v747, %v743
      %v749 = vrot.slane %v748, 4
      %v751 = vshll.u32 %v367, 16
      %v753 = vrot.slane %v751, 5
      %v754 = vsel %vm370, %v749, %v753
      %s755 = scalar_lea.vmem %s1, 2
      %v756 = vld [vmem:[%s755] sm:$0x3]
      %v757 = vunpack.c.l.b16 %v384
      %v758 = vunpack.c.l.b16 %v394
      %v759 = vunpack.c.l.b16 %v408
      %v760 = vunpack.c.l.b16 %v418
      %v761 = vunpack.c.l.b16 %v432
      %v762 = vunpack.c.l.b16 %v442
      %v763 = vunpack.c.l.b16 %v456
      %v764 = vunpack.c.l.b16 %v466
      %v765 = vunpack.c.l.b16 %v480
      %v766 = vunpack.c.l.b16 %v490
      %v767 = vunpack.c.l.b16 %v504
      %v768 = vunpack.c.l.b16 %v514
      %v769 = vunpack.c.l.b16 %v528
      %v770 = vunpack.c.l.b16 %v538
      %v771 = vunpack.c.l.b16 %v552
      %v772 = vunpack.c.l.b16 %v562
      %v773 = vunpack.c.l.b16 %v576
      %v774 = vunpack.c.l.b16 %v586
      %v775 = vunpack.c.l.b16 %v600
      %v776 = vunpack.c.l.b16 %v610
      %v777 = vunpack.c.l.b16 %v624
      %v778 = vunpack.c.l.b16 %v634
      %v779 = vunpack.c.l.b16 %v648
      %v780 = vunpack.c.l.b16 %v658
      %v781 = vunpack.c.l.b16 %v672
      %v782 = vunpack.c.l.b16 %v682
      %v783 = vunpack.c.l.b16 %v696
      %v784 = vunpack.c.l.b16 %v706
      %v785 = vunpack.c.l.b16 %v720
      %v786 = vunpack.c.l.b16 %v730
      %v787 = vunpack.c.l.b16 %v744
      %v788 = vunpack.c.l.b16 %v754
      %v789 = vpack.c.b16 %v758, %v757
      %v790 = vpack.c.b16 %v760, %v759
      %v791 = vpack.c.b16 %v762, %v761
      %v792 = vpack.c.b16 %v764, %v763
      %v793 = vpack.c.b16 %v766, %v765
      %v794 = vpack.c.b16 %v768, %v767
      %v795 = vpack.c.b16 %v770, %v769
      %v796 = vpack.c.b16 %v772, %v771
      %v797 = vpack.c.b16 %v774, %v773
      %v798 = vpack.c.b16 %v776, %v775
      %v799 = vpack.c.b16 %v778, %v777
      %v800 = vpack.c.b16 %v780, %v779
      %v801 = vpack.c.b16 %v782, %v781
      %v802 = vpack.c.b16 %v784, %v783
      %v803 = vpack.c.b16 %v786, %v785
      %v804 = vpack.c.b16 %v788, %v787
      %vm805 = vcmask 31744
      %v807 = vsel %vm805, %v789, 0
      %v810 = vsel %vm805, %v790, 0
      %v813 = vsel %vm805, %v791, 0
      %v816 = vsel %vm805, %v792, 0
      %v819 = vsel %vm805, %v793, 0
      %v822 = vsel %vm805, %v794, 0
      %v825 = vsel %vm805, %v795, 0
      %v828 = vsel %vm805, %v796, 0
      %v831 = vsel %vm805, %v797, 0
      %v834 = vsel %vm805, %v798, 0
      %v837 = vsel %vm805, %v799, 0
      %v840 = vsel %vm805, %v800, 0
      %v843 = vsel %vm805, %v801, 0
      %v846 = vsel %vm805, %v802, 0
      %v849 = vsel %vm805, %v803, 0
      %v852 = vsel %vm805, %v804, 0
      %vm854 = vcmask 1041408
      %v856 = vsel %vm854, %v756, 0
      %858 = vmatprep.subr.bf16.mxu0 0
      %859 = vmatpush1.bf16.msra.mxu0 %v856
      %860 = vmatprep.subr.bf16.mxu0 0
      %861 = vmatpush1.bf16.msra.mxu0 0
      %862 = vmatprep.subr.bf16.mxu0 0
      %863 = vmatpush1.bf16.msra.mxu0 0
      %864 = vmatprep.subr.bf16.mxu0 0
      %865 = vmatpush1.bf16.msra.mxu0 0
      %866 = vmatprep.subr.bf16.mxu0 0
      %867 = vmatpush1.bf16.msra.mxu0 0
      %868 = vmatprep.subr.bf16.mxu0 0
      %869 = vmatpush1.bf16.msra.mxu0 0
      %870 = vmatprep.subr.bf16.mxu0 0
      %871 = vmatpush1.bf16.msra.mxu0 0
      %872 = vmatprep.subr.bf16.mxu0 0
      %873 = vmatpush1.bf16.msra.mxu0 0
      %874 = vmatprep.subr.bf16.mxu0 0
      %875 = vmatpush1.bf16.msra.mxu0 0
      %876 = vmatprep.subr.bf16.mxu0 0
      %877 = vmatpush1.bf16.msra.mxu0 0
      %878 = vmatprep.subr.bf16.mxu0 0
      %879 = vmatpush1.bf16.msra.mxu0 0
      %880 = vmatprep.subr.bf16.mxu0 0
      %881 = vmatpush1.bf16.msra.mxu0 0
      %882 = vmatprep.subr.bf16.mxu0 0
      %883 = vmatpush1.bf16.msra.mxu0 0
      %884 = vmatprep.subr.bf16.mxu0 0
      %885 = vmatpush1.bf16.msra.mxu0 0
      %886 = vmatprep.subr.bf16.mxu0 0
      %887 = vmatpush1.bf16.msra.mxu0 0
      %888 = vmatprep.subr.bf16.mxu0 0
      %889 = vmatpush1.bf16.msra.mxu0 0
      %890 = vmatprep.mubr.bf16.mxu0 0
      %891 = vmatmul.mubr.bf16.gmra.mrb[0].mxu0 %v807
      %v892 = vpop.f32.mrb[0].mxu0
      %v893 = vadd.f32 0.0, %v892
      %v894 = vpop.f32.mrb[0].mxu0
      %v895 = vpop.f32.mrb[0].mxu0
      %v896 = vadd.f32 0.0, %v895
      %v897 = vpop.f32.mrb[0].mxu0
      %898 = vmatprep.mubr.bf16.mxu0 0
      %899 = vmatmul.mubr.bf16.gmra.mrb[0].mxu0 %v810
      %v900 = vpop.f32.mrb[0].mxu0
      %v901 = vadd.f32 0.0, %v900
      %v902 = vpop.f32.mrb[0].mxu0
      %v903 = vpop.f32.mrb[0].mxu0
      %v904 = vadd.f32 0.0, %v903
      %v905 = vpop.f32.mrb[0].mxu0
      %906 = vmatprep.mubr.bf16.mxu0 0
      %907 = vmatmul.mubr.bf16.gmra.mrb[0].mxu0 %v813
      %v908 = vpop.f32.mrb[0].mxu0
      %v909 = vadd.f32 0.0, %v908
      %v910 = vpop.f32.mrb[0].mxu0
      %v911 = vpop.f32.mrb[0].mxu0
      %v912 = vadd.f32 0.0, %v911
      %v913 = vpop.f32.mrb[0].mxu0
      %914 = vmatprep.mubr.bf16.mxu0 0
      %915 = vmatmul.mubr.bf16.gmra.mrb[0].mxu0 %v816
      %v916 = vpop.f32.mrb[0].mxu0
      %v917 = vadd.f32 0.0, %v916
      %v918 = vpop.f32.mrb[0].mxu0
      %v919 = vpop.f32.mrb[0].mxu0
      %v920 = vadd.f32 0.0, %v919
      %v921 = vpop.f32.mrb[0].mxu0
      %922 = vmatprep.mubr.bf16.mxu0 0
      %923 = vmatmul.mubr.bf16.gmra.mrb[0].mxu0 %v819
      %v924 = vpop.f32.mrb[0].mxu0
      %v925 = vadd.f32 0.0, %v924
      %v926 = vpop.f32.mrb[0].mxu0
      %v927 = vpop.f32.mrb[0].mxu0
      %v928 = vadd.f32 0.0, %v927
      %v929 = vpop.f32.mrb[0].mxu0
      %930 = vmatprep.mubr.bf16.mxu0 0
      %931 = vmatmul.mubr.bf16.gmra.mrb[0].mxu0 %v822
      %v932 = vpop.f32.mrb[0].mxu0
      %v933 = vadd.f32 0.0, %v932
      %v934 = vpop.f32.mrb[0].mxu0
      %v935 = vpop.f32.mrb[0].mxu0
      %v936 = vadd.f32 0.0, %v935
      %v937 = vpop.f32.mrb[0].mxu0
      %938 = vmatprep.mubr.bf16.mxu0 0
      %939 = vmatmul.mubr.bf16.gmra.mrb[0].mxu0 %v825
      %v940 = vpop.f32.mrb[0].mxu0
      %v941 = vadd.f32 0.0, %v940
      %v942 = vpop.f32.mrb[0].mxu0
      %v943 = vpop.f32.mrb[0].mxu0
      %v944 = vadd.f32 0.0, %v943
      %v945 = vpop.f32.mrb[0].mxu0
      %946 = vmatprep.mubr.bf16.mxu0 0
      %947 = vmatmul.mubr.bf16.gmra.mrb[0].mxu0 %v828
      %v948 = vpop.f32.mrb[0].mxu0
      %v949 = vadd.f32 0.0, %v948
      %v950 = vpop.f32.mrb[0].mxu0
      %v951 = vpop.f32.mrb[0].mxu0
      %v952 = vadd.f32 0.0, %v951
      %v953 = vpop.f32.mrb[0].mxu0
      %954 = vmatprep.mubr.bf16.mxu0 0
      %955 = vmatmul.mubr.bf16.gmra.mrb[0].mxu0 %v831
      %v956 = vpop.f32.mrb[0].mxu0
      %v957 = vadd.f32 0.0, %v956
      %v958 = vpop.f32.mrb[0].mxu0
      %v959 = vpop.f32.mrb[0].mxu0
      %v960 = vadd.f32 0.0, %v959
      %v961 = vpop.f32.mrb[0].mxu0
      %962 = vmatprep.mubr.bf16.mxu0 0
      %963 = vmatmul.mubr.bf16.gmra.mrb[0].mxu0 %v834
      %v964 = vpop.f32.mrb[0].mxu0
      %v965 = vadd.f32 0.0, %v964
      %v966 = vpop.f32.mrb[0].mxu0
      %v967 = vpop.f32.mrb[0].mxu0
      %v968 = vadd.f32 0.0, %v967
      %v969 = vpop.f32.mrb[0].mxu0
      %970 = vmatprep.mubr.bf16.mxu0 0
      %971 = vmatmul.mubr.bf16.gmra.mrb[0].mxu0 %v837
      %v972 = vpop.f32.mrb[0].mxu0
      %v973 = vadd.f32 0.0, %v972
      %v974 = vpop.f32.mrb[0].mxu0
      %v975 = vpop.f32.mrb[0].mxu0
      %v976 = vadd.f32 0.0, %v975
      %v977 = vpop.f32.mrb[0].mxu0
      %978 = vmatprep.mubr.bf16.mxu0 0
      %979 = vmatmul.mubr.bf16.gmra.mrb[0].mxu0 %v840
      %v980 = vpop.f32.mrb[0].mxu0
      %v981 = vadd.f32 0.0, %v980
      %v982 = vpop.f32.mrb[0].mxu0
      %v983 = vpop.f32.mrb[0].mxu0
      %v984 = vadd.f32 0.0, %v983
      %v985 = vpop.f32.mrb[0].mxu0
      %986 = vmatprep.mubr.bf16.mxu0 0
      %987 = vmatmul.mubr.bf16.gmra.mrb[0].mxu0 %v843
      %v988 = vpop.f32.mrb[0].mxu0
      %v989 = vadd.f32 0.0, %v988
      %v990 = vpop.f32.mrb[0].mxu0
      %v991 = vpop.f32.mrb[0].mxu0
      %v992 = vadd.f32 0.0, %v991
      %v993 = vpop.f32.mrb[0].mxu0
      %994 = vmatprep.mubr.bf16.mxu0 0
      %995 = vmatmul.mubr.bf16.gmra.mrb[0].mxu0 %v846
      %v996 = vpop.f32.mrb[0].mxu0
      %v997 = vadd.f32 0.0, %v996
      %v998 = vpop.f32.mrb[0].mxu0
      %v999 = vpop.f32.mrb[0].mxu0
      %v1000 = vadd.f32 0.0, %v999
      %v1001 = vpop.f32.mrb[0].mxu0
      %1002 = vmatprep.mubr.bf16.mxu0 0
      %1003 = vmatmul.mubr.bf16.gmra.mrb[0].mxu0 %v849
      %v1004 = vpop.f32.mrb[0].mxu0
      %v1005 = vadd.f32 0.0, %v1004
      %v1006 = vpop.f32.mrb[0].mxu0
      %v1007 = vpop.f32.mrb[0].mxu0
      %v1008 = vadd.f32 0.0, %v1007
      %v1009 = vpop.f32.mrb[0].mxu0
      %1010 = vmatprep.mubr.bf16.mxu0 0
      %1011 = vmatmul.mubr.bf16.gmra.mrb[0].mxu0 %v852
      %v1012 = vpop.f32.mrb[0].mxu0
      %v1013 = vadd.f32 0.0, %v1012
      %v1014 = vpop.f32.mrb[0].mxu0
      %v1015 = vpop.f32.mrb[0].mxu0
      %v1016 = vadd.f32 0.0, %v1015
      %v1017 = vpop.f32.mrb[0].mxu0
      %1018 = vdwg.mxu0
      %v1051 = vunpack.c.l.b16 %v319
      %v1052 = vunpack.c.l.b16 %v320
      %v1053 = vunpack.c.l.b16 %v321
      %v1054 = vunpack.c.l.b16 %v322
      %v1055 = vunpack.c.l.b16 %v323
      %v1056 = vunpack.c.l.b16 %v324
      %v1057 = vunpack.c.l.b16 %v325
      %v1058 = vunpack.c.l.b16 %v326
      %v1059 = vunpack.c.l.b16 %v327
      %v1060 = vunpack.c.l.b16 %v328
      %v1061 = vunpack.c.l.b16 %v329
      %v1062 = vunpack.c.l.b16 %v330
      %v1063 = vunpack.c.l.b16 %v331
      %v1064 = vunpack.c.l.b16 %v332
      %v1065 = vunpack.c.l.b16 %v333
      %v1066 = vunpack.c.l.b16 %v334
      %v1067 = vunpack.c.l.b16 %v335
      %v1068 = vunpack.c.l.b16 %v336
      %v1069 = vunpack.c.l.b16 %v337
      %v1070 = vunpack.c.l.b16 %v338
      %v1071 = vunpack.c.l.b16 %v339
      %v1072 = vunpack.c.l.b16 %v340
      %v1073 = vunpack.c.l.b16 %v341
      %v1074 = vunpack.c.l.b16 %v342
      %v1075 = vunpack.c.l.b16 %v343
      %v1076 = vunpack.c.l.b16 %v344
      %v1077 = vunpack.c.l.b16 %v345
      %v1078 = vunpack.c.l.b16 %v346
      %v1079 = vunpack.c.l.b16 %v347
      %v1080 = vunpack.c.l.b16 %v348
      %v1081 = vunpack.c.l.b16 %v349
      %v1082 = vunpack.c.l.b16 %v350
      %v1083 = vpack.c.b16 %v1052, %v1051
      %v1084 = vpack.c.b16 %v1054, %v1053
      %v1085 = vpack.c.b16 %v1056, %v1055
      %v1086 = vpack.c.b16 %v1058, %v1057
      %v1087 = vpack.c.b16 %v1060, %v1059
      %v1088 = vpack.c.b16 %v1062, %v1061
      %v1089 = vpack.c.b16 %v1064, %v1063
      %v1090 = vpack.c.b16 %v1066, %v1065
      %v1091 = vpack.c.b16 %v1068, %v1067
      %v1092 = vpack.c.b16 %v1070, %v1069
      %v1093 = vpack.c.b16 %v1072, %v1071
      %v1094 = vpack.c.b16 %v1074, %v1073
      %v1095 = vpack.c.b16 %v1076, %v1075
      %v1096 = vpack.c.b16 %v1078, %v1077
      %v1097 = vpack.c.b16 %v1080, %v1079
      %v1098 = vpack.c.b16 %v1082, %v1081
      %v1100 = vsel %vm805, %v1083, 0
      %v1103 = vsel %vm805, %v1084, 0
      %v1106 = vsel %vm805, %v1085, 0
      %v1109 = vsel %vm805, %v1086, 0
      %v1112 = vsel %vm805, %v1087, 0
      %v1115 = vsel %vm805, %v1088, 0
      %v1118 = vsel %vm805, %v1089, 0
      %v1121 = vsel %vm805, %v1090, 0
      %v1124 = vsel %vm805, %v1091, 0
      %v1127 = vsel %vm805, %v1092, 0
      %v1130 = vsel %vm805, %v1093, 0
      %v1133 = vsel %vm805, %v1094, 0
      %v1136 = vsel %vm805, %v1095, 0
      %v1139 = vsel %vm805, %v1096, 0
      %v1142 = vsel %vm805, %v1097, 0
      %v1145 = vsel %vm805, %v1098, 0
      %v1148 = vsel %vm854, %v351, 0
      %1150 = vmatprep.subr.bf16.mxu0 0
      %1151 = vmatpush1.bf16.msra.mxu0 %v1148
      %1152 = vmatprep.subr.bf16.mxu0 0
      %1153 = vmatpush1.bf16.msra.mxu0 0
      %1154 = vmatprep.subr.bf16.mxu0 0
      %1155 = vmatpush1.bf16.msra.mxu0 0
      %1156 = vmatprep.subr.bf16.mxu0 0
      %1157 = vmatpush1.bf16.msra.mxu0 0
      %1158 = vmatprep.subr.bf16.mxu0 0
      %1159 = vmatpush1.bf16.msra.mxu0 0
      %1160 = vmatprep.subr.bf16.mxu0 0
      %1161 = vmatpush1.bf16.msra.mxu0 0
      %1162 = vmatprep.subr.bf16.mxu0 0
      %1163 = vmatpush1.bf16.msra.mxu0 0
      %1164 = vmatprep.subr.bf16.mxu0 0
      %1165 = vmatpush1.bf16.msra.mxu0 0
      %1166 = vmatprep.subr.bf16.mxu0 0
      %1167 = vmatpush1.bf16.msra.mxu0 0
      %1168 = vmatprep.subr.bf16.mxu0 0
      %1169 = vmatpush1.bf16.msra.mxu0 0
      %1170 = vmatprep.subr.bf16.mxu0 0
      %1171 = vmatpush1.bf16.msra.mxu0 0
      %1172 = vmatprep.subr.bf16.mxu0 0
      %1173 = vmatpush1.bf16.msra.mxu0 0
      %1174 = vmatprep.subr.bf16.mxu0 0
      %1175 = vmatpush1.bf16.msra.mxu0 0
      %1176 = vmatprep.subr.bf16.mxu0 0
      %1177 = vmatpush1.bf16.msra.mxu0 0
      %1178 = vmatprep.subr.bf16.mxu0 0
      %1179 = vmatpush1.bf16.msra.mxu0 0
      %1180 = vmatprep.subr.bf16.mxu0 0
      %1181 = vmatpush1.bf16.msra.mxu0 0
      %1182 = vmatprep.mubr.bf16.mxu0 0
      %1183 = vmatmul.mubr.bf16.gmra.mrb[0].mxu0 %v1100
      %v1184 = vpop.f32.mrb[0].mxu0
      %v1185 = vadd.f32 %v893, %v1184
      %v1186 = vpop.f32.mrb[0].mxu0
      %v1187 = vpop.f32.mrb[0].mxu0
      %v1188 = vadd.f32 %v896, %v1187
      %v1189 = vpop.f32.mrb[0].mxu0
      %1190 = vmatprep.mubr.bf16.mxu0 0
      %1191 = vmatmul.mubr.bf16.gmra.mrb[0].mxu0 %v1103
      %v1192 = vpop.f32.mrb[0].mxu0
      %v1193 = vadd.f32 %v901, %v1192
      %v1194 = vpop.f32.mrb[0].mxu0
      %v1195 = vpop.f32.mrb[0].mxu0
      %v1196 = vadd.f32 %v904, %v1195
      %v1197 = vpop.f32.mrb[0].mxu0
      %1198 = vmatprep.mubr.bf16.mxu0 0
      %1199 = vmatmul.mubr.bf16.gmra.mrb[0].mxu0 %v1106
      %v1200 = vpop.f32.mrb[0].mxu0
      %v1201 = vadd.f32 %v909, %v1200
      %v1202 = vpop.f32.mrb[0].mxu0
      %v1203 = vpop.f32.mrb[0].mxu0
      %v1204 = vadd.f32 %v912, %v1203
      %v1205 = vpop.f32.mrb[0].mxu0
      %1206 = vmatprep.mubr.bf16.mxu0 0
      %1207 = vmatmul.mubr.bf16.gmra.mrb[0].mxu0 %v1109
      %v1208 = vpop.f32.mrb[0].mxu0
      %v1209 = vadd.f32 %v917, %v1208
      %v1210 = vpop.f32.mrb[0].mxu0
      %v1211 = vpop.f32.mrb[0].mxu0
      %v1212 = vadd.f32 %v920, %v1211
      %v1213 = vpop.f32.mrb[0].mxu0
      %1214 = vmatprep.mubr.bf16.mxu0 0
      %1215 = vmatmul.mubr.bf16.gmra.mrb[0].mxu0 %v1112
      %v1216 = vpop.f32.mrb[0].mxu0
      %v1217 = vadd.f32 %v925, %v1216
      %v1218 = vpop.f32.mrb[0].mxu0
      %v1219 = vpop.f32.mrb[0].mxu0
      %v1220 = vadd.f32 %v928, %v1219
      %v1221 = vpop.f32.mrb[0].mxu0
      %1222 = vmatprep.mubr.bf16.mxu0 0
      %1223 = vmatmul.mubr.bf16.gmra.mrb[0].mxu0 %v1115
      %v1224 = vpop.f32.mrb[0].mxu0
      %v1225 = vadd.f32 %v933, %v1224
      %v1226 = vpop.f32.mrb[0].mxu0
      %v1227 = vpop.f32.mrb[0].mxu0
      %v1228 = vadd.f32 %v936, %v1227
      %v1229 = vpop.f32.mrb[0].mxu0
      %1230 = vmatprep.mubr.bf16.mxu0 0
      %1231 = vmatmul.mubr.bf16.gmra.mrb[0].mxu0 %v1118
      %v1232 = vpop.f32.mrb[0].mxu0
      %v1233 = vadd.f32 %v941, %v1232
      %v1234 = vpop.f32.mrb[0].mxu0
      %v1235 = vpop.f32.mrb[0].mxu0
      %v1236 = vadd.f32 %v944, %v1235
      %v1237 = vpop.f32.mrb[0].mxu0
      %1238 = vmatprep.mubr.bf16.mxu0 0
      %1239 = vmatmul.mubr.bf16.gmra.mrb[0].mxu0 %v1121
      %v1240 = vpop.f32.mrb[0].mxu0
      %v1241 = vadd.f32 %v949, %v1240
      %v1242 = vpop.f32.mrb[0].mxu0
      %v1243 = vpop.f32.mrb[0].mxu0
      %v1244 = vadd.f32 %v952, %v1243
      %v1245 = vpop.f32.mrb[0].mxu0
      %1246 = vmatprep.mubr.bf16.mxu0 0
      %1247 = vmatmul.mubr.bf16.gmra.mrb[0].mxu0 %v1124
      %v1248 = vpop.f32.mrb[0].mxu0
      %v1249 = vadd.f32 %v957, %v1248
      %v1250 = vpop.f32.mrb[0].mxu0
      %v1251 = vpop.f32.mrb[0].mxu0
      %v1252 = vadd.f32 %v960, %v1251
      %v1253 = vpop.f32.mrb[0].mxu0
      %1254 = vmatprep.mubr.bf16.mxu0 0
      %1255 = vmatmul.mubr.bf16.gmra.mrb[0].mxu0 %v1127
      %v1256 = vpop.f32.mrb[0].mxu0
      %v1257 = vadd.f32 %v965, %v1256
      %v1258 = vpop.f32.mrb[0].mxu0
      %v1259 = vpop.f32.mrb[0].mxu0
      %v1260 = vadd.f32 %v968, %v1259
      %v1261 = vpop.f32.mrb[0].mxu0
      %1262 = vmatprep.mubr.bf16.mxu0 0
      %1263 = vmatmul.mubr.bf16.gmra.mrb[0].mxu0 %v1130
      %v1264 = vpop.f32.mrb[0].mxu0
      %v1265 = vadd.f32 %v973, %v1264
      %v1266 = vpop.f32.mrb[0].mxu0
      %v1267 = vpop.f32.mrb[0].mxu0
      %v1268 = vadd.f32 %v976, %v1267
      %v1269 = vpop.f32.mrb[0].mxu0
      %1270 = vmatprep.mubr.bf16.mxu0 0
      %1271 = vmatmul.mubr.bf16.gmra.mrb[0].mxu0 %v1133
      %v1272 = vpop.f32.mrb[0].mxu0
      %v1273 = vadd.f32 %v981, %v1272
      %v1274 = vpop.f32.mrb[0].mxu0
      %v1275 = vpop.f32.mrb[0].mxu0
      %v1276 = vadd.f32 %v984, %v1275
      %v1277 = vpop.f32.mrb[0].mxu0
      %1278 = vmatprep.mubr.bf16.mxu0 0
      %1279 = vmatmul.mubr.bf16.gmra.mrb[0].mxu0 %v1136
      %v1280 = vpop.f32.mrb[0].mxu0
      %v1281 = vadd.f32 %v989, %v1280
      %v1282 = vpop.f32.mrb[0].mxu0
      %v1283 = vpop.f32.mrb[0].mxu0
      %v1284 = vadd.f32 %v992, %v1283
      %v1285 = vpop.f32.mrb[0].mxu0
      %1286 = vmatprep.mubr.bf16.mxu0 0
      %1287 = vmatmul.mubr.bf16.gmra.mrb[0].mxu0 %v1139
      %v1288 = vpop.f32.mrb[0].mxu0
      %v1289 = vadd.f32 %v997, %v1288
      %v1290 = vpop.f32.mrb[0].mxu0
      %v1291 = vpop.f32.mrb[0].mxu0
      %v1292 = vadd.f32 %v1000, %v1291
      %v1293 = vpop.f32.mrb[0].mxu0
      %1294 = vmatprep.mubr.bf16.mxu0 0
      %1295 = vmatmul.mubr.bf16.gmra.mrb[0].mxu0 %v1142
      %v1296 = vpop.f32.mrb[0].mxu0
      %v1297 = vadd.f32 %v1005, %v1296
      %v1298 = vpop.f32.mrb[0].mxu0
      %v1299 = vpop.f32.mrb[0].mxu0
      %v1300 = vadd.f32 %v1008, %v1299
      %v1301 = vpop.f32.mrb[0].mxu0
      %1302 = vmatprep.mubr.bf16.mxu0 0
      %1303 = vmatmul.mubr.bf16.gmra.mrb[0].mxu0 %v1145
      %v1304 = vpop.f32.mrb[0].mxu0
      %v1305 = vadd.f32 %v1013, %v1304
      %v1306 = vpop.f32.mrb[0].mxu0
      %v1307 = vpop.f32.mrb[0].mxu0
      %v1308 = vadd.f32 %v1016, %v1307
      %v1309 = vpop.f32.mrb[0].mxu0
      %1310 = vdwg.mxu0
      %v1311 = vld [vmem:[%s304] sm:$0xe]
      %v1312 = vld [vmem:[%s304 + $0xc] sm:$0xe]
      %v1313 = vld [vmem:[%s304 + $0x18] sm:$0xe]
      %v1314 = vld [vmem:[%s304 + $0x24] sm:$0xe]
      %v1315 = vld [vmem:[%s304 + $0x30] sm:$0xe]
      %v1316 = vld [vmem:[%s304 + $0x3c] sm:$0xe]
      %v1317 = vld [vmem:[%s304 + $0x48] sm:$0xe]
      %v1318 = vld [vmem:[%s304 + $0x54] sm:$0xe]
      %v1319 = vld [vmem:[%s304 + $0x60] sm:$0xe]
      %v1320 = vld [vmem:[%s304 + $0x6c] sm:$0xe]
      %v1321 = vld [vmem:[%s304 + $0x78] sm:$0xe]
      %v1322 = vld [vmem:[%s304 + $0x84] sm:$0xe]
      %v1323 = vld [vmem:[%s304 + $0x90] sm:$0xe]
      %v1324 = vld [vmem:[%s304 + $0x9c] sm:$0xe]
      %v1325 = vld [vmem:[%s304 + $0xa8] sm:$0xe]
      %v1326 = vld [vmem:[%s304 + $0xb4] sm:$0xe]
      %vm1359 = vcmask 1042432
      %vm1360 = vcmask 1046532
      %vm1361 = vmor %vm1359, %vm1360
      %v1362 = vrot.slane %v1311, 5
      %v1363 = vrot.slane %v1362, 4
      %v1364 = vrot.slane %v320, 5
      %v1365 = vsel %vm1361, %v1363, %v1364
      %v1366 = vrot.slane %v1364, 4
      %v1367 = vrot.slane %v352, 5
      %v1368 = vsel %vm1361, %v1366, %v1367
      %v1369 = vrot.slane %v1312, 5
      %v1370 = vrot.slane %v1369, 4
      %v1371 = vrot.slane %v322, 5
      %v1372 = vsel %vm1361, %v1370, %v1371
      %v1373 = vrot.slane %v1371, 4
      %v1374 = vrot.slane %v353, 5
      %v1375 = vsel %vm1361, %v1373, %v1374
      %v1376 = vrot.slane %v1313, 5
      %v1377 = vrot.slane %v1376, 4
      %v1378 = vrot.slane %v324, 5
      %v1379 = vsel %vm1361, %v1377, %v1378
      %v1380 = vrot.slane %v1378, 4
      %v1381 = vrot.slane %v354, 5
      %v1382 = vsel %vm1361, %v1380, %v1381
      %v1383 = vrot.slane %v1314, 5
      %v1384 = vrot.slane %v1383, 4
      %v1385 = vrot.slane %v326, 5
      %v1386 = vsel %vm1361, %v1384, %v1385
      %v1387 = vrot.slane %v1385, 4
      %v1388 = vrot.slane %v355, 5
      %v1389 = vsel %vm1361, %v1387, %v1388
      %v1390 = vrot.slane %v1315, 5
      %v1391 = vrot.slane %v1390, 4
      %v1392 = vrot.slane %v328, 5
      %v1393 = vsel %vm1361, %v1391, %v1392
      %v1394 = vrot.slane %v1392, 4
      %v1395 = vrot.slane %v356, 5
      %v1396 = vsel %vm1361, %v1394, %v1395
      %v1397 = vrot.slane %v1316, 5
      %v1398 = vrot.slane %v1397, 4
      %v1399 = vrot.slane %v330, 5
      %v1400 = vsel %vm1361, %v1398, %v1399
      %v1401 = vrot.slane %v1399, 4
      %v1402 = vrot.slane %v357, 5
      %v1403 = vsel %vm1361, %v1401, %v1402
      %v1404 = vrot.slane %v1317, 5
      %v1405 = vrot.slane %v1404, 4
      %v1406 = vrot.slane %v332, 5
      %v1407 = vsel %vm1361, %v1405, %v1406
      %v1408 = vrot.slane %v1406, 4
      %v1409 = vrot.slane %v358, 5
      %v1410 = vsel %vm1361, %v1408, %v1409
      %v1411 = vrot.slane %v1318, 5
      %v1412 = vrot.slane %v1411, 4
      %v1413 = vrot.slane %v334, 5
      %v1414 = vsel %vm1361, %v1412, %v1413
      %v1415 = vrot.slane %v1413, 4
      %v1416 = vrot.slane %v359, 5
      %v1417 = vsel %vm1361, %v1415, %v1416
      %v1418 = vrot.slane %v1319, 5
      %v1419 = vrot.slane %v1418, 4
      %v1420 = vrot.slane %v336, 5
      %v1421 = vsel %vm1361, %v1419, %v1420
      %v1422 = vrot.slane %v1420, 4
      %v1423 = vrot.slane %v360, 5
      %v1424 = vsel %vm1361, %v1422, %v1423
      %v1425 = vrot.slane %v1320, 5
      %v1426 = vrot.slane %v1425, 4
      %v1427 = vrot.slane %v338, 5
      %v1428 = vsel %vm1361, %v1426, %v1427
      %v1429 = vrot.slane %v1427, 4
      %v1430 = vrot.slane %v361, 5
      %v1431 = vsel %vm1361, %v1429, %v1430
      %v1432 = vrot.slane %v1321, 5
      %v1433 = vrot.slane %v1432, 4
      %v1434 = vrot.slane %v340, 5
      %v1435 = vsel %vm1361, %v1433, %v1434
      %v1436 = vrot.slane %v1434, 4
      %v1437 = vrot.slane %v362, 5
      %v1438 = vsel %vm1361, %v1436, %v1437
      %v1439 = vrot.slane %v1322, 5
      %v1440 = vrot.slane %v1439, 4
      %v1441 = vrot.slane %v342, 5
      %v1442 = vsel %vm1361, %v1440, %v1441
      %v1443 = vrot.slane %v1441, 4
      %v1444 = vrot.slane %v363, 5
      %v1445 = vsel %vm1361, %v1443, %v1444
      %v1446 = vrot.slane %v1323, 5
      %v1447 = vrot.slane %v1446, 4
      %v1448 = vrot.slane %v344, 5
      %v1449 = vsel %vm1361, %v1447, %v1448
      %v1450 = vrot.slane %v1448, 4
      %v1451 = vrot.slane %v364, 5
      %v1452 = vsel %vm1361, %v1450, %v1451
      %v1453 = vrot.slane %v1324, 5
      %v1454 = vrot.slane %v1453, 4
      %v1455 = vrot.slane %v346, 5
      %v1456 = vsel %vm1361, %v1454, %v1455
      %v1457 = vrot.slane %v1455, 4
      %v1458 = vrot.slane %v365, 5
      %v1459 = vsel %vm1361, %v1457, %v1458
      %v1460 = vrot.slane %v1325, 5
      %v1461 = vrot.slane %v1460, 4
      %v1462 = vrot.slane %v348, 5
      %v1463 = vsel %vm1361, %v1461, %v1462
      %v1464 = vrot.slane %v1462, 4
      %v1465 = vrot.slane %v366, 5
      %v1466 = vsel %vm1361, %v1464, %v1465
      %v1467 = vrot.slane %v1326, 5
      %v1468 = vrot.slane %v1467, 4
      %v1469 = vrot.slane %v350, 5
      %v1470 = vsel %vm1361, %v1468, %v1469
      %v1471 = vrot.slane %v1469, 4
      %v1472 = vrot.slane %v367, 5
      %v1473 = vsel %vm1361, %v1471, %v1472
      %s1474 = scalar_lea.vmem %s1, 4
      %v1475 = vld [vmem:[%s1474] sm:$0x3]
      %v1476 = vunpack.c.l.b16 %v1365
      %v1477 = vunpack.c.l.b16 %v1368
      %v1478 = vunpack.c.l.b16 %v1372
      %v1479 = vunpack.c.l.b16 %v1375
      %v1480 = vunpack.c.l.b16 %v1379
      %v1481 = vunpack.c.l.b16 %v1382
      %v1482 = vunpack.c.l.b16 %v1386
      %v1483 = vunpack.c.l.b16 %v1389
      %v1484 = vunpack.c.l.b16 %v1393
      %v1485 = vunpack.c.l.b16 %v1396
      %v1486 = vunpack.c.l.b16 %v1400
      %v1487 = vunpack.c.l.b16 %v1403
      %v1488 = vunpack.c.l.b16 %v1407
      %v1489 = vunpack.c.l.b16 %v1410
      %v1490 = vunpack.c.l.b16 %v1414
      %v1491 = vunpack.c.l.b16 %v1417
      %v1492 = vunpack.c.l.b16 %v1421
      %v1493 = vunpack.c.l.b16 %v1424
      %v1494 = vunpack.c.l.b16 %v1428
      %v1495 = vunpack.c.l.b16 %v1431
      %v1496 = vunpack.c.l.b16 %v1435
      %v1497 = vunpack.c.l.b16 %v1438
      %v1498 = vunpack.c.l.b16 %v1442
      %v1499 = vunpack.c.l.b16 %v1445
      %v1500 = vunpack.c.l.b16 %v1449
      %v1501 = vunpack.c.l.b16 %v1452
      %v1502 = vunpack.c.l.b16 %v1456
      %v1503 = vunpack.c.l.b16 %v1459
      %v1504 = vunpack.c.l.b16 %v1463
      %v1505 = vunpack.c.l.b16 %v1466
      %v1506 = vunpack.c.l.b16 %v1470
      %v1507 = vunpack.c.l.b16 %v1473
      %v1508 = vpack.c.b16 %v1477, %v1476
      %v1509 = vpack.c.b16 %v1479, %v1478
      %v1510 = vpack.c.b16 %v1481, %v1480
      %v1511 = vpack.c.b16 %v1483, %v1482
      %v1512 = vpack.c.b16 %v1485, %v1484
      %v1513 = vpack.c.b16 %v1487, %v1486
      %v1514 = vpack.c.b16 %v1489, %v1488
      %v1515 = vpack.c.b16 %v1491, %v1490
      %v1516 = vpack.c.b16 %v1493, %v1492
      %v1517 = vpack.c.b16 %v1495, %v1494
      %v1518 = vpack.c.b16 %v1497, %v1496
      %v1519 = vpack.c.b16 %v1499, %v1498
      %v1520 = vpack.c.b16 %v1501, %v1500
      %v1521 = vpack.c.b16 %v1503, %v1502
      %v1522 = vpack.c.b16 %v1505, %v1504
      %v1523 = vpack.c.b16 %v1507, %v1506
      %v1525 = vsel %vm805, %v1508, 0
      %v1528 = vsel %vm805, %v1509, 0
      %v1531 = vsel %vm805, %v1510, 0
      %v1534 = vsel %vm805, %v1511, 0
      %v1537 = vsel %vm805, %v1512, 0
      %v1540 = vsel %vm805, %v1513, 0
      %v1543 = vsel %vm805, %v1514, 0
      %v1546 = vsel %vm805, %v1515, 0
      %v1549 = vsel %vm805, %v1516, 0
      %v1552 = vsel %vm805, %v1517, 0
      %v1555 = vsel %vm805, %v1518, 0
      %v1558 = vsel %vm805, %v1519, 0
      %v1561 = vsel %vm805, %v1520, 0
      %v1564 = vsel %vm805, %v1521, 0
      %v1567 = vsel %vm805, %v1522, 0
      %v1570 = vsel %vm805, %v1523, 0
      %v1573 = vsel %vm854, %v1475, 0
      %1575 = vmatprep.subr.bf16.mxu0 0
      %1576 = vmatpush1.bf16.msra.mxu0 %v1573
      %1577 = vmatprep.subr.bf16.mxu0 0
      %1578 = vmatpush1.bf16.msra.mxu0 0
      %1579 = vmatprep.subr.bf16.mxu0 0
      %1580 = vmatpush1.bf16.msra.mxu0 0
      %1581 = vmatprep.subr.bf16.mxu0 0
      %1582 = vmatpush1.bf16.msra.mxu0 0
      %1583 = vmatprep.subr.bf16.mxu0 0
      %1584 = vmatpush1.bf16.msra.mxu0 0
      %1585 = vmatprep.subr.bf16.mxu0 0
      %1586 = vmatpush1.bf16.msra.mxu0 0
      %1587 = vmatprep.subr.bf16.mxu0 0
      %1588 = vmatpush1.bf16.msra.mxu0 0
      %1589 = vmatprep.subr.bf16.mxu0 0
      %1590 = vmatpush1.bf16.msra.mxu0 0
      %1591 = vmatprep.subr.bf16.mxu0 0
      %1592 = vmatpush1.bf16.msra.mxu0 0
      %1593 = vmatprep.subr.bf16.mxu0 0
      %1594 = vmatpush1.bf16.msra.mxu0 0
      %1595 = vmatprep.subr.bf16.mxu0 0
      %1596 = vmatpush1.bf16.msra.mxu0 0
      %1597 = vmatprep.subr.bf16.mxu0 0
      %1598 = vmatpush1.bf16.msra.mxu0 0
      %1599 = vmatprep.subr.bf16.mxu0 0
      %1600 = vmatpush1.bf16.msra.mxu0 0
      %1601 = vmatprep.subr.bf16.mxu0 0
      %1602 = vmatpush1.bf16.msra.mxu0 0
      %1603 = vmatprep.subr.bf16.mxu0 0
      %1604 = vmatpush1.bf16.msra.mxu0 0
      %1605 = vmatprep.subr.bf16.mxu0 0
      %1606 = vmatpush1.bf16.msra.mxu0 0
      %1607 = vmatprep.mubr.bf16.mxu0 0
      %1608 = vmatmul.mubr.bf16.gmra.mrb[0].mxu0 %v1525
      %v1609 = vpop.f32.mrb[0].mxu0
      %v1610 = vadd.f32 0.0, %v1609
      %v1611 = vpop.f32.mrb[0].mxu0
      %v1612 = vpop.f32.mrb[0].mxu0
      %v1613 = vadd.f32 0.0, %v1612
      %v1614 = vpop.f32.mrb[0].mxu0
      %1615 = vmatprep.mubr.bf16.mxu0 0
      %1616 = vmatmul.mubr.bf16.gmra.mrb[0].mxu0 %v1528
      %v1617 = vpop.f32.mrb[0].mxu0
      %v1618 = vadd.f32 0.0, %v1617
      %v1619 = vpop.f32.mrb[0].mxu0
      %v1620 = vpop.f32.mrb[0].mxu0
      %v1621 = vadd.f32 0.0, %v1620
      %v1622 = vpop.f32.mrb[0].mxu0
      %1623 = vmatprep.mubr.bf16.mxu0 0
      %1624 = vmatmul.mubr.bf16.gmra.mrb[0].mxu0 %v1531
      %v1625 = vpop.f32.mrb[0].mxu0
      %v1626 = vadd.f32 0.0, %v1625
      %v1627 = vpop.f32.mrb[0].mxu0
      %v1628 = vpop.f32.mrb[0].mxu0
      %v1629 = vadd.f32 0.0, %v1628
      %v1630 = vpop.f32.mrb[0].mxu0
      %1631 = vmatprep.mubr.bf16.mxu0 0
      %1632 = vmatmul.mubr.bf16.gmra.mrb[0].mxu0 %v1534
      %v1633 = vpop.f32.mrb[0].mxu0
      %v1634 = vadd.f32 0.0, %v1633
      %v1635 = vpop.f32.mrb[0].mxu0
      %v1636 = vpop.f32.mrb[0].mxu0
      %v1637 = vadd.f32 0.0, %v1636
      %v1638 = vpop.f32.mrb[0].mxu0
      %1639 = vmatprep.mubr.bf16.mxu0 0
      %1640 = vmatmul.mubr.bf16.gmra.mrb[0].mxu0 %v1537
      %v1641 = vpop.f32.mrb[0].mxu0
      %v1642 = vadd.f32 0.0, %v1641
      %v1643 = vpop.f32.mrb[0].mxu0
      %v1644 = vpop.f32.mrb[0].mxu0
      %v1645 = vadd.f32 0.0, %v1644
      %v1646 = vpop.f32.mrb[0].mxu0
      %1647 = vmatprep.mubr.bf16.mxu0 0
      %1648 = vmatmul.mubr.bf16.gmra.mrb[0].mxu0 %v1540
      %v1649 = vpop.f32.mrb[0].mxu0
      %v1650 = vadd.f32 0.0, %v1649
      %v1651 = vpop.f32.mrb[0].mxu0
      %v1652 = vpop.f32.mrb[0].mxu0
      %v1653 = vadd.f32 0.0, %v1652
      %v1654 = vpop.f32.mrb[0].mxu0
      %1655 = vmatprep.mubr.bf16.mxu0 0
      %1656 = vmatmul.mubr.bf16.gmra.mrb[0].mxu0 %v1543
      %v1657 = vpop.f32.mrb[0].mxu0
      %v1658 = vadd.f32 0.0, %v1657
      %v1659 = vpop.f32.mrb[0].mxu0
      %v1660 = vpop.f32.mrb[0].mxu0
      %v1661 = vadd.f32 0.0, %v1660
      %v1662 = vpop.f32.mrb[0].mxu0
      %1663 = vmatprep.mubr.bf16.mxu0 0
      %1664 = vmatmul.mubr.bf16.gmra.mrb[0].mxu0 %v1546
      %v1665 = vpop.f32.mrb[0].mxu0
      %v1666 = vadd.f32 0.0, %v1665
      %v1667 = vpop.f32.mrb[0].mxu0
      %v1668 = vpop.f32.mrb[0].mxu0
      %v1669 = vadd.f32 0.0, %v1668
      %v1670 = vpop.f32.mrb[0].mxu0
      %1671 = vmatprep.mubr.bf16.mxu0 0
      %1672 = vmatmul.mubr.bf16.gmra.mrb[0].mxu0 %v1549
      %v1673 = vpop.f32.mrb[0].mxu0
      %v1674 = vadd.f32 0.0, %v1673
      %v1675 = vpop.f32.mrb[0].mxu0
      %v1676 = vpop.f32.mrb[0].mxu0
      %v1677 = vadd.f32 0.0, %v1676
      %v1678 = vpop.f32.mrb[0].mxu0
      %1679 = vmatprep.mubr.bf16.mxu0 0
      %1680 = vmatmul.mubr.bf16.gmra.mrb[0].mxu0 %v1552
      %v1681 = vpop.f32.mrb[0].mxu0
      %v1682 = vadd.f32 0.0, %v1681
      %v1683 = vpop.f32.mrb[0].mxu0
      %v1684 = vpop.f32.mrb[0].mxu0
      %v1685 = vadd.f32 0.0, %v1684
      %v1686 = vpop.f32.mrb[0].mxu0
      %1687 = vmatprep.mubr.bf16.mxu0 0
      %1688 = vmatmul.mubr.bf16.gmra.mrb[0].mxu0 %v1555
      %v1689 = vpop.f32.mrb[0].mxu0
      %v1690 = vadd.f32 0.0, %v1689
      %v1691 = vpop.f32.mrb[0].mxu0
      %v1692 = vpop.f32.mrb[0].mxu0
      %v1693 = vadd.f32 0.0, %v1692
      %v1694 = vpop.f32.mrb[0].mxu0
      %1695 = vmatprep.mubr.bf16.mxu0 0
      %1696 = vmatmul.mubr.bf16.gmra.mrb[0].mxu0 %v1558
      %v1697 = vpop.f32.mrb[0].mxu0
      %v1698 = vadd.f32 0.0, %v1697
      %v1699 = vpop.f32.mrb[0].mxu0
      %v1700 = vpop.f32.mrb[0].mxu0
      %v1701 = vadd.f32 0.0, %v1700
      %v1702 = vpop.f32.mrb[0].mxu0
      %1703 = vmatprep.mubr.bf16.mxu0 0
      %1704 = vmatmul.mubr.bf16.gmra.mrb[0].mxu0 %v1561
      %v1705 = vpop.f32.mrb[0].mxu0
      %v1706 = vadd.f32 0.0, %v1705
      %v1707 = vpop.f32.mrb[0].mxu0
      %v1708 = vpop.f32.mrb[0].mxu0
      %v1709 = vadd.f32 0.0, %v1708
      %v1710 = vpop.f32.mrb[0].mxu0
      %1711 = vmatprep.mubr.bf16.mxu0 0
      %1712 = vmatmul.mubr.bf16.gmra.mrb[0].mxu0 %v1564
      %v1713 = vpop.f32.mrb[0].mxu0
      %v1714 = vadd.f32 0.0, %v1713
      %v1715 = vpop.f32.mrb[0].mxu0
      %v1716 = vpop.f32.mrb[0].mxu0
      %v1717 = vadd.f32 0.0, %v1716
      %v1718 = vpop.f32.mrb[0].mxu0
      %1719 = vmatprep.mubr.bf16.mxu0 0
      %1720 = vmatmul.mubr.bf16.gmra.mrb[0].mxu0 %v1567
      %v1721 = vpop.f32.mrb[0].mxu0
      %v1722 = vadd.f32 0.0, %v1721
      %v1723 = vpop.f32.mrb[0].mxu0
      %v1724 = vpop.f32.mrb[0].mxu0
      %v1725 = vadd.f32 0.0, %v1724
      %v1726 = vpop.f32.mrb[0].mxu0
      %1727 = vmatprep.mubr.bf16.mxu0 0
      %1728 = vmatmul.mubr.bf16.gmra.mrb[0].mxu0 %v1570
      %v1729 = vpop.f32.mrb[0].mxu0
      %v1730 = vadd.f32 0.0, %v1729
      %v1731 = vpop.f32.mrb[0].mxu0
      %v1732 = vpop.f32.mrb[0].mxu0
      %v1733 = vadd.f32 0.0, %v1732
      %v1734 = vpop.f32.mrb[0].mxu0
      %1735 = vdwg.mxu0
      %v1736 = vadd.f32 %v1185, %v1610
      %v1737 = vadd.f32 %v1188, %v1613
      %v1738 = vadd.f32 %v1193, %v1618
      %v1739 = vadd.f32 %v1196, %v1621
      %v1740 = vadd.f32 %v1201, %v1626
      %v1741 = vadd.f32 %v1204, %v1629
      %v1742 = vadd.f32 %v1209, %v1634
      %v1743 = vadd.f32 %v1212, %v1637
      %v1744 = vadd.f32 %v1217, %v1642
      %v1745 = vadd.f32 %v1220, %v1645
      %v1746 = vadd.f32 %v1225, %v1650
      %v1747 = vadd.f32 %v1228, %v1653
      %v1748 = vadd.f32 %v1233, %v1658
      %v1749 = vadd.f32 %v1236, %v1661
      %v1750 = vadd.f32 %v1241, %v1666
      %v1751 = vadd.f32 %v1244, %v1669
      %v1752 = vadd.f32 %v1249, %v1674
      %v1753 = vadd.f32 %v1252, %v1677
      %v1754 = vadd.f32 %v1257, %v1682
      %v1755 = vadd.f32 %v1260, %v1685
      %v1756 = vadd.f32 %v1265, %v1690
      %v1757 = vadd.f32 %v1268, %v1693
      %v1758 = vadd.f32 %v1273, %v1698
      %v1759 = vadd.f32 %v1276, %v1701
      %v1760 = vadd.f32 %v1281, %v1706
      %v1761 = vadd.f32 %v1284, %v1709
      %v1762 = vadd.f32 %v1289, %v1714
      %v1763 = vadd.f32 %v1292, %v1717
      %v1764 = vadd.f32 %v1297, %v1722
      %v1765 = vadd.f32 %v1300, %v1725
      %v1766 = vadd.f32 %v1305, %v1730
      %v1767 = vadd.f32 %v1308, %v1733
      %s1768 = scalar_lea.vmem %s304, 12
      %v1769 = vld [vmem:[%s1768] sm:$0xf]
      %v1770 = vld [vmem:[%s1768 + $0x4] sm:$0xf]
      %v1771 = vld [vmem:[%s1768 + $0xc] sm:$0xf]
      %v1772 = vld [vmem:[%s1768 + $0x10] sm:$0xf]
      %v1773 = vld [vmem:[%s1768 + $0x18] sm:$0xf]
      %v1774 = vld [vmem:[%s1768 + $0x1c] sm:$0xf]
      %v1775 = vld [vmem:[%s1768 + $0x24] sm:$0xf]
      %v1776 = vld [vmem:[%s1768 + $0x28] sm:$0xf]
      %v1777 = vld [vmem:[%s1768 + $0x30] sm:$0xf]
      %v1778 = vld [vmem:[%s1768 + $0x34] sm:$0xf]
      %v1779 = vld [vmem:[%s1768 + $0x3c] sm:$0xf]
      %v1780 = vld [vmem:[%s1768 + $0x40] sm:$0xf]
      %v1781 = vld [vmem:[%s1768 + $0x48] sm:$0xf]
      %v1782 = vld [vmem:[%s1768 + $0x4c] sm:$0xf]
      %v1783 = vld [vmem:[%s1768 + $0x54] sm:$0xf]
      %v1784 = vld [vmem:[%s1768 + $0x58] sm:$0xf]
      %v1785 = vld [vmem:[%s1768 + $0x60] sm:$0xf]
      %v1786 = vld [vmem:[%s1768 + $0x64] sm:$0xf]
      %v1787 = vld [vmem:[%s1768 + $0x6c] sm:$0xf]
      %v1788 = vld [vmem:[%s1768 + $0x70] sm:$0xf]
      %v1789 = vld [vmem:[%s1768 + $0x78] sm:$0xf]
      %v1790 = vld [vmem:[%s1768 + $0x7c] sm:$0xf]
      %v1791 = vld [vmem:[%s1768 + $0x84] sm:$0xf]
      %v1792 = vld [vmem:[%s1768 + $0x88] sm:$0xf]
      %v1793 = vld [vmem:[%s1768 + $0x90] sm:$0xf]
      %v1794 = vld [vmem:[%s1768 + $0x94] sm:$0xf]
      %v1795 = vld [vmem:[%s1768 + $0x9c] sm:$0xf]
      %v1796 = vld [vmem:[%s1768 + $0xa0] sm:$0xf]
      %v1797 = vld [vmem:[%s1768 + $0xa8] sm:$0xf]
      %v1798 = vld [vmem:[%s1768 + $0xac] sm:$0xf]
      %v1799 = vld [vmem:[%s1768 + $0xb4] sm:$0xf]
      %v1800 = vld [vmem:[%s1768 + $0xb8] sm:$0xf]
      %s1801 = scalar_lea.vmem %s1, 6
      %v1802 = vld [vmem:[%s1801] sm:$0x3]
      %v1835 = vunpack.c.l.b16 %v1769
      %v1836 = vunpack.c.l.b16 %v1770
      %v1837 = vunpack.c.l.b16 %v1771
      %v1838 = vunpack.c.l.b16 %v1772
      %v1839 = vunpack.c.l.b16 %v1773
      %v1840 = vunpack.c.l.b16 %v1774
      %v1841 = vunpack.c.l.b16 %v1775
      %v1842 = vunpack.c.l.b16 %v1776
      %v1843 = vunpack.c.l.b16 %v1777
      %v1844 = vunpack.c.l.b16 %v1778
      %v1845 = vunpack.c.l.b16 %v1779
      %v1846 = vunpack.c.l.b16 %v1780
      %v1847 = vunpack.c.l.b16 %v1781
      %v1848 = vunpack.c.l.b16 %v1782
      %v1849 = vunpack.c.l.b16 %v1783
      %v1850 = vunpack.c.l.b16 %v1784
      %v1851 = vunpack.c.l.b16 %v1785
      %v1852 = vunpack.c.l.b16 %v1786
      %v1853 = vunpack.c.l.b16 %v1787
      %v1854 = vunpack.c.l.b16 %v1788
      %v1855 = vunpack.c.l.b16 %v1789
      %v1856 = vunpack.c.l.b16 %v1790
      %v1857 = vunpack.c.l.b16 %v1791
      %v1858 = vunpack.c.l.b16 %v1792
      %v1859 = vunpack.c.l.b16 %v1793
      %v1860 = vunpack.c.l.b16 %v1794
      %v1861 = vunpack.c.l.b16 %v1795
      %v1862 = vunpack.c.l.b16 %v1796
      %v1863 = vunpack.c.l.b16 %v1797
      %v1864 = vunpack.c.l.b16 %v1798
      %v1865 = vunpack.c.l.b16 %v1799
      %v1866 = vunpack.c.l.b16 %v1800
      %v1867 = vpack.c.b16 %v1836, %v1835
      %v1868 = vpack.c.b16 %v1838, %v1837
      %v1869 = vpack.c.b16 %v1840, %v1839
      %v1870 = vpack.c.b16 %v1842, %v1841
      %v1871 = vpack.c.b16 %v1844, %v1843
      %v1872 = vpack.c.b16 %v1846, %v1845
      %v1873 = vpack.c.b16 %v1848, %v1847
      %v1874 = vpack.c.b16 %v1850, %v1849
      %v1875 = vpack.c.b16 %v1852, %v1851
      %v1876 = vpack.c.b16 %v1854, %v1853
      %v1877 = vpack.c.b16 %v1856, %v1855
      %v1878 = vpack.c.b16 %v1858, %v1857
      %v1879 = vpack.c.b16 %v1860, %v1859
      %v1880 = vpack.c.b16 %v1862, %v1861
      %v1881 = vpack.c.b16 %v1864, %v1863
      %v1882 = vpack.c.b16 %v1866, %v1865
      %v1884 = vsel %vm805, %v1867, 0
      %v1887 = vsel %vm805, %v1868, 0
      %v1890 = vsel %vm805, %v1869, 0
      %v1893 = vsel %vm805, %v1870, 0
      %v1896 = vsel %vm805, %v1871, 0
      %v1899 = vsel %vm805, %v1872, 0
      %v1902 = vsel %vm805, %v1873, 0
      %v1905 = vsel %vm805, %v1874, 0
      %v1908 = vsel %vm805, %v1875, 0
      %v1911 = vsel %vm805, %v1876, 0
      %v1914 = vsel %vm805, %v1877, 0
      %v1917 = vsel %vm805, %v1878, 0
      %v1920 = vsel %vm805, %v1879, 0
      %v1923 = vsel %vm805, %v1880, 0
      %v1926 = vsel %vm805, %v1881, 0
      %v1929 = vsel %vm805, %v1882, 0
      %v1932 = vsel %vm854, %v1802, 0
      %1934 = vmatprep.subr.bf16.mxu0 0
      %1935 = vmatpush1.bf16.msra.mxu0 %v1932
      %1936 = vmatprep.subr.bf16.mxu0 0
      %1937 = vmatpush1.bf16.msra.mxu0 0
      %1938 = vmatprep.subr.bf16.mxu0 0
      %1939 = vmatpush1.bf16.msra.mxu0 0
      %1940 = vmatprep.subr.bf16.mxu0 0
      %1941 = vmatpush1.bf16.msra.mxu0 0
      %1942 = vmatprep.subr.bf16.mxu0 0
      %1943 = vmatpush1.bf16.msra.mxu0 0
      %1944 = vmatprep.subr.bf16.mxu0 0
      %1945 = vmatpush1.bf16.msra.mxu0 0
      %1946 = vmatprep.subr.bf16.mxu0 0
      %1947 = vmatpush1.bf16.msra.mxu0 0
      %1948 = vmatprep.subr.bf16.mxu0 0
      %1949 = vmatpush1.bf16.msra.mxu0 0
      %1950 = vmatprep.subr.bf16.mxu0 0
      %1951 = vmatpush1.bf16.msra.mxu0 0
      %1952 = vmatprep.subr.bf16.mxu0 0
      %1953 = vmatpush1.bf16.msra.mxu0 0
      %1954 = vmatprep.subr.bf16.mxu0 0
      %1955 = vmatpush1.bf16.msra.mxu0 0
      %1956 = vmatprep.subr.bf16.mxu0 0
      %1957 = vmatpush1.bf16.msra.mxu0 0
      %1958 = vmatprep.subr.bf16.mxu0 0
      %1959 = vmatpush1.bf16.msra.mxu0 0
      %1960 = vmatprep.subr.bf16.mxu0 0
      %1961 = vmatpush1.bf16.msra.mxu0 0
      %1962 = vmatprep.subr.bf16.mxu0 0
      %1963 = vmatpush1.bf16.msra.mxu0 0
      %1964 = vmatprep.subr.bf16.mxu0 0
      %1965 = vmatpush1.bf16.msra.mxu0 0
      %1966 = vmatprep.mubr.bf16.mxu0 0
      %1967 = vmatmul.mubr.bf16.gmra.mrb[0].mxu0 %v1884
      %v1968 = vpop.f32.mrb[0].mxu0
      %v1969 = vadd.f32 0.0, %v1968
      %v1970 = vpop.f32.mrb[0].mxu0
      %v1971 = vpop.f32.mrb[0].mxu0
      %v1972 = vadd.f32 0.0, %v1971
      %v1973 = vpop.f32.mrb[0].mxu0
      %1974 = vmatprep.mubr.bf16.mxu0 0
      %1975 = vmatmul.mubr.bf16.gmra.mrb[0].mxu0 %v1887
      %v1976 = vpop.f32.mrb[0].mxu0
      %v1977 = vadd.f32 0.0, %v1976
      %v1978 = vpop.f32.mrb[0].mxu0
      %v1979 = vpop.f32.mrb[0].mxu0
      %v1980 = vadd.f32 0.0, %v1979
      %v1981 = vpop.f32.mrb[0].mxu0
      %1982 = vmatprep.mubr.bf16.mxu0 0
      %1983 = vmatmul.mubr.bf16.gmra.mrb[0].mxu0 %v1890
      %v1984 = vpop.f32.mrb[0].mxu0
      %v1985 = vadd.f32 0.0, %v1984
      %v1986 = vpop.f32.mrb[0].mxu0
      %v1987 = vpop.f32.mrb[0].mxu0
      %v1988 = vadd.f32 0.0, %v1987
      %v1989 = vpop.f32.mrb[0].mxu0
      %1990 = vmatprep.mubr.bf16.mxu0 0
      %1991 = vmatmul.mubr.bf16.gmra.mrb[0].mxu0 %v1893
      %v1992 = vpop.f32.mrb[0].mxu0
      %v1993 = vadd.f32 0.0, %v1992
      %v1994 = vpop.f32.mrb[0].mxu0
      %v1995 = vpop.f32.mrb[0].mxu0
      %v1996 = vadd.f32 0.0, %v1995
      %v1997 = vpop.f32.mrb[0].mxu0
      %1998 = vmatprep.mubr.bf16.mxu0 0
      %1999 = vmatmul.mubr.bf16.gmra.mrb[0].mxu0 %v1896
      %v2000 = vpop.f32.mrb[0].mxu0
      %v2001 = vadd.f32 0.0, %v2000
      %v2002 = vpop.f32.mrb[0].mxu0
      %v2003 = vpop.f32.mrb[0].mxu0
      %v2004 = vadd.f32 0.0, %v2003
      %v2005 = vpop.f32.mrb[0].mxu0
      %2006 = vmatprep.mubr.bf16.mxu0 0
      %2007 = vmatmul.mubr.bf16.gmra.mrb[0].mxu0 %v1899
      %v2008 = vpop.f32.mrb[0].mxu0
      %v2009 = vadd.f32 0.0, %v2008
      %v2010 = vpop.f32.mrb[0].mxu0
      %v2011 = vpop.f32.mrb[0].mxu0
      %v2012 = vadd.f32 0.0, %v2011
      %v2013 = vpop.f32.mrb[0].mxu0
      %2014 = vmatprep.mubr.bf16.mxu0 0
      %2015 = vmatmul.mubr.bf16.gmra.mrb[0].mxu0 %v1902
      %v2016 = vpop.f32.mrb[0].mxu0
      %v2017 = vadd.f32 0.0, %v2016
      %v2018 = vpop.f32.mrb[0].mxu0
      %v2019 = vpop.f32.mrb[0].mxu0
      %v2020 = vadd.f32 0.0, %v2019
      %v2021 = vpop.f32.mrb[0].mxu0
      %2022 = vmatprep.mubr.bf16.mxu0 0
      %2023 = vmatmul.mubr.bf16.gmra.mrb[0].mxu0 %v1905
      %v2024 = vpop.f32.mrb[0].mxu0
      %v2025 = vadd.f32 0.0, %v2024
      %v2026 = vpop.f32.mrb[0].mxu0
      %v2027 = vpop.f32.mrb[0].mxu0
      %v2028 = vadd.f32 0.0, %v2027
      %v2029 = vpop.f32.mrb[0].mxu0
      %2030 = vmatprep.mubr.bf16.mxu0 0
      %2031 = vmatmul.mubr.bf16.gmra.mrb[0].mxu0 %v1908
      %v2032 = vpop.f32.mrb[0].mxu0
      %v2033 = vadd.f32 0.0, %v2032
      %v2034 = vpop.f32.mrb[0].mxu0
      %v2035 = vpop.f32.mrb[0].mxu0
      %v2036 = vadd.f32 0.0, %v2035
      %v2037 = vpop.f32.mrb[0].mxu0
      %2038 = vmatprep.mubr.bf16.mxu0 0
      %2039 = vmatmul.mubr.bf16.gmra.mrb[0].mxu0 %v1911
      %v2040 = vpop.f32.mrb[0].mxu0
      %v2041 = vadd.f32 0.0, %v2040
      %v2042 = vpop.f32.mrb[0].mxu0
      %v2043 = vpop.f32.mrb[0].mxu0
      %v2044 = vadd.f32 0.0, %v2043
      %v2045 = vpop.f32.mrb[0].mxu0
      %2046 = vmatprep.mubr.bf16.mxu0 0
      %2047 = vmatmul.mubr.bf16.gmra.mrb[0].mxu0 %v1914
      %v2048 = vpop.f32.mrb[0].mxu0
      %v2049 = vadd.f32 0.0, %v2048
      %v2050 = vpop.f32.mrb[0].mxu0
      %v2051 = vpop.f32.mrb[0].mxu0
      %v2052 = vadd.f32 0.0, %v2051
      %v2053 = vpop.f32.mrb[0].mxu0
      %2054 = vmatprep.mubr.bf16.mxu0 0
      %2055 = vmatmul.mubr.bf16.gmra.mrb[0].mxu0 %v1917
      %v2056 = vpop.f32.mrb[0].mxu0
      %v2057 = vadd.f32 0.0, %v2056
      %v2058 = vpop.f32.mrb[0].mxu0
      %v2059 = vpop.f32.mrb[0].mxu0
      %v2060 = vadd.f32 0.0, %v2059
      %v2061 = vpop.f32.mrb[0].mxu0
      %2062 = vmatprep.mubr.bf16.mxu0 0
      %2063 = vmatmul.mubr.bf16.gmra.mrb[0].mxu0 %v1920
      %v2064 = vpop.f32.mrb[0].mxu0
      %v2065 = vadd.f32 0.0, %v2064
      %v2066 = vpop.f32.mrb[0].mxu0
      %v2067 = vpop.f32.mrb[0].mxu0
      %v2068 = vadd.f32 0.0, %v2067
      %v2069 = vpop.f32.mrb[0].mxu0
      %2070 = vmatprep.mubr.bf16.mxu0 0
      %2071 = vmatmul.mubr.bf16.gmra.mrb[0].mxu0 %v1923
      %v2072 = vpop.f32.mrb[0].mxu0
      %v2073 = vadd.f32 0.0, %v2072
      %v2074 = vpop.f32.mrb[0].mxu0
      %v2075 = vpop.f32.mrb[0].mxu0
      %v2076 = vadd.f32 0.0, %v2075
      %v2077 = vpop.f32.mrb[0].mxu0
      %2078 = vmatprep.mubr.bf16.mxu0 0
      %2079 = vmatmul.mubr.bf16.gmra.mrb[0].mxu0 %v1926
      %v2080 = vpop.f32.mrb[0].mxu0
      %v2081 = vadd.f32 0.0, %v2080
      %v2082 = vpop.f32.mrb[0].mxu0
      %v2083 = vpop.f32.mrb[0].mxu0
      %v2084 = vadd.f32 0.0, %v2083
      %v2085 = vpop.f32.mrb[0].mxu0
      %2086 = vmatprep.mubr.bf16.mxu0 0
      %2087 = vmatmul.mubr.bf16.gmra.mrb[0].mxu0 %v1929
      %v2088 = vpop.f32.mrb[0].mxu0
      %v2089 = vadd.f32 0.0, %v2088
      %v2090 = vpop.f32.mrb[0].mxu0
      %v2091 = vpop.f32.mrb[0].mxu0
      %v2092 = vadd.f32 0.0, %v2091
      %v2093 = vpop.f32.mrb[0].mxu0
      %2094 = vdwg.mxu0
      %v2095 = vadd.f32 %v1736, %v1969
      %v2096 = vadd.f32 %v1737, %v1972
      %v2097 = vadd.f32 %v1738, %v1977
      %v2098 = vadd.f32 %v1739, %v1980
      %v2099 = vadd.f32 %v1740, %v1985
      %v2100 = vadd.f32 %v1741, %v1988
      %v2101 = vadd.f32 %v1742, %v1993
      %v2102 = vadd.f32 %v1743, %v1996
      %v2103 = vadd.f32 %v1744, %v2001
      %v2104 = vadd.f32 %v1745, %v2004
      %v2105 = vadd.f32 %v1746, %v2009
      %v2106 = vadd.f32 %v1747, %v2012
      %v2107 = vadd.f32 %v1748, %v2017
      %v2108 = vadd.f32 %v1749, %v2020
      %v2109 = vadd.f32 %v1750, %v2025
      %v2110 = vadd.f32 %v1751, %v2028
      %v2111 = vadd.f32 %v1752, %v2033
      %v2112 = vadd.f32 %v1753, %v2036
      %v2113 = vadd.f32 %v1754, %v2041
      %v2114 = vadd.f32 %v1755, %v2044
      %v2115 = vadd.f32 %v1756, %v2049
      %v2116 = vadd.f32 %v1757, %v2052
      %v2117 = vadd.f32 %v1758, %v2057
      %v2118 = vadd.f32 %v1759, %v2060
      %v2119 = vadd.f32 %v1760, %v2065
      %v2120 = vadd.f32 %v1761, %v2068
      %v2121 = vadd.f32 %v1762, %v2073
      %v2122 = vadd.f32 %v1763, %v2076
      %v2123 = vadd.f32 %v1764, %v2081
      %v2124 = vadd.f32 %v1765, %v2084
      %v2125 = vadd.f32 %v1766, %v2089
      %v2126 = vadd.f32 %v1767, %v2092
      %v2127 = vld [vmem:[%s1768] sm:$0xf]
      %v2128 = vld [vmem:[%s1768 + $0x4] sm:$0xf]
      %v2129 = vld [vmem:[%s1768 + $0x8] sm:$0x1]
      %v2130 = vld [vmem:[%s1768 + $0xc] sm:$0xf]
      %v2131 = vld [vmem:[%s1768 + $0x10] sm:$0xf]
      %v2132 = vld [vmem:[%s1768 + $0x14] sm:$0x1]
      %v2133 = vld [vmem:[%s1768 + $0x18] sm:$0xf]
      %v2134 = vld [vmem:[%s1768 + $0x1c] sm:$0xf]
      %v2135 = vld [vmem:[%s1768 + $0x20] sm:$0x1]
      %v2136 = vld [vmem:[%s1768 + $0x24] sm:$0xf]
      %v2137 = vld [vmem:[%s1768 + $0x28] sm:$0xf]
      %v2138 = vld [vmem:[%s1768 + $0x2c] sm:$0x1]
      %v2139 = vld [vmem:[%s1768 + $0x30] sm:$0xf]
      %v2140 = vld [vmem:[%s1768 + $0x34] sm:$0xf]
      %v2141 = vld [vmem:[%s1768 + $0x38] sm:$0x1]
      %v2142 = vld [vmem:[%s1768 + $0x3c] sm:$0xf]
      %v2143 = vld [vmem:[%s1768 + $0x40] sm:$0xf]
      %v2144 = vld [vmem:[%s1768 + $0x44] sm:$0x1]
      %v2145 = vld [vmem:[%s1768 + $0x48] sm:$0xf]
      %v2146 = vld [vmem:[%s1768 + $0x4c] sm:$0xf]
      %v2147 = vld [vmem:[%s1768 + $0x50] sm:$0x1]
      %v2148 = vld [vmem:[%s1768 + $0x54] sm:$0xf]
      %v2149 = vld [vmem:[%s1768 + $0x58] sm:$0xf]
      %v2150 = vld [vmem:[%s1768 + $0x5c] sm:$0x1]
      %v2151 = vld [vmem:[%s1768 + $0x60] sm:$0xf]
      %v2152 = vld [vmem:[%s1768 + $0x64] sm:$0xf]
      %v2153 = vld [vmem:[%s1768 + $0x68] sm:$0x1]
      %v2154 = vld [vmem:[%s1768 + $0x6c] sm:$0xf]
      %v2155 = vld [vmem:[%s1768 + $0x70] sm:$0xf]
      %v2156 = vld [vmem:[%s1768 + $0x74] sm:$0x1]
      %v2157 = vld [vmem:[%s1768 + $0x78] sm:$0xf]
      %v2158 = vld [vmem:[%s1768 + $0x7c] sm:$0xf]
      %v2159 = vld [vmem:[%s1768 + $0x80] sm:$0x1]
      %v2160 = vld [vmem:[%s1768 + $0x84] sm:$0xf]
      %v2161 = vld [vmem:[%s1768 + $0x88] sm:$0xf]
      %v2162 = vld [vmem:[%s1768 + $0x8c] sm:$0x1]
      %v2163 = vld [vmem:[%s1768 + $0x90] sm:$0xf]
      %v2164 = vld [vmem:[%s1768 + $0x94] sm:$0xf]
      %v2165 = vld [vmem:[%s1768 + $0x98] sm:$0x1]
      %v2166 = vld [vmem:[%s1768 + $0x9c] sm:$0xf]
      %v2167 = vld [vmem:[%s1768 + $0xa0] sm:$0xf]
      %v2168 = vld [vmem:[%s1768 + $0xa4] sm:$0x1]
      %v2169 = vld [vmem:[%s1768 + $0xa8] sm:$0xf]
      %v2170 = vld [vmem:[%s1768 + $0xac] sm:$0xf]
      %v2171 = vld [vmem:[%s1768 + $0xb0] sm:$0x1]
      %v2172 = vld [vmem:[%s1768 + $0xb4] sm:$0xf]
      %v2173 = vld [vmem:[%s1768 + $0xb8] sm:$0xf]
      %v2174 = vld [vmem:[%s1768 + $0xbc] sm:$0x1]
      %v2176 = vshrl.u32 %v2127, 16
      %v2178 = vrot.slane %v2176, 4
      %v2179 = vshll.u32 %v2127, 16
      %v2181 = vrot.slane %v2179, 5
      %v2182 = vor.u32 %v2178, %v2181
      %v2183 = vrot.slane %v2182, 4
      %v2185 = vshll.u32 %v2128, 16
      %v2187 = vrot.slane %v2185, 5
      %v2188 = vsel %vm370, %v2183, %v2187
      %v2189 = vshrl.u32 %v2128, 16
      %v2191 = vrot.slane %v2189, 4
      %v2192 = vor.u32 %v2191, %v2187
      %v2193 = vrot.slane %v2192, 4
      %v2195 = vshll.u32 %v2129, 16
      %v2197 = vrot.slane %v2195, 5
      %v2198 = vsel %vm370, %v2193, %v2197
      %v2200 = vshrl.u32 %v2130, 16
      %v2202 = vrot.slane %v2200, 4
      %v2203 = vshll.u32 %v2130, 16
      %v2205 = vrot.slane %v2203, 5
      %v2206 = vor.u32 %v2202, %v2205
      %v2207 = vrot.slane %v2206, 4
      %v2209 = vshll.u32 %v2131, 16
      %v2211 = vrot.slane %v2209, 5
      %v2212 = vsel %vm370, %v2207, %v2211
      %v2213 = vshrl.u32 %v2131, 16
      %v2215 = vrot.slane %v2213, 4
      %v2216 = vor.u32 %v2215, %v2211
      %v2217 = vrot.slane %v2216, 4
      %v2219 = vshll.u32 %v2132, 16
      %v2221 = vrot.slane %v2219, 5
      %v2222 = vsel %vm370, %v2217, %v2221
      %v2224 = vshrl.u32 %v2133, 16
      %v2226 = vrot.slane %v2224, 4
      %v2227 = vshll.u32 %v2133, 16
      %v2229 = vrot.slane %v2227, 5
      %v2230 = vor.u32 %v2226, %v2229
      %v2231 = vrot.slane %v2230, 4
      %v2233 = vshll.u32 %v2134, 16
      %v2235 = vrot.slane %v2233, 5
      %v2236 = vsel %vm370, %v2231, %v2235
      %v2237 = vshrl.u32 %v2134, 16
      %v2239 = vrot.slane %v2237, 4
      %v2240 = vor.u32 %v2239, %v2235
      %v2241 = vrot.slane %v2240, 4
      %v2243 = vshll.u32 %v2135, 16
      %v2245 = vrot.slane %v2243, 5
      %v2246 = vsel %vm370, %v2241, %v2245
      %v2248 = vshrl.u32 %v2136, 16
      %v2250 = vrot.slane %v2248, 4
      %v2251 = vshll.u32 %v2136, 16
      %v2253 = vrot.slane %v2251, 5
      %v2254 = vor.u32 %v2250, %v2253
      %v2255 = vrot.slane %v2254, 4
      %v2257 = vshll.u32 %v2137, 16
      %v2259 = vrot.slane %v2257, 5
      %v2260 = vsel %vm370, %v2255, %v2259
      %v2261 = vshrl.u32 %v2137, 16
      %v2263 = vrot.slane %v2261, 4
      %v2264 = vor.u32 %v2263, %v2259
      %v2265 = vrot.slane %v2264, 4
      %v2267 = vshll.u32 %v2138, 16
      %v2269 = vrot.slane %v2267, 5
      %v2270 = vsel %vm370, %v2265, %v2269
      %v2272 = vshrl.u32 %v2139, 16
      %v2274 = vrot.slane %v2272, 4
      %v2275 = vshll.u32 %v2139, 16
      %v2277 = vrot.slane %v2275, 5
      %v2278 = vor.u32 %v2274, %v2277
      %v2279 = vrot.slane %v2278, 4
      %v2281 = vshll.u32 %v2140, 16
      %v2283 = vrot.slane %v2281, 5
      %v2284 = vsel %vm370, %v2279, %v2283
      %v2285 = vshrl.u32 %v2140, 16
      %v2287 = vrot.slane %v2285, 4
      %v2288 = vor.u32 %v2287, %v2283
      %v2289 = vrot.slane %v2288, 4
      %v2291 = vshll.u32 %v2141, 16
      %v2293 = vrot.slane %v2291, 5
      %v2294 = vsel %vm370, %v2289, %v2293
      %v2296 = vshrl.u32 %v2142, 16
      %v2298 = vrot.slane %v2296, 4
      %v2299 = vshll.u32 %v2142, 16
      %v2301 = vrot.slane %v2299, 5
      %v2302 = vor.u32 %v2298, %v2301
      %v2303 = vrot.slane %v2302, 4
      %v2305 = vshll.u32 %v2143, 16
      %v2307 = vrot.slane %v2305, 5
      %v2308 = vsel %vm370, %v2303, %v2307
      %v2309 = vshrl.u32 %v2143, 16
      %v2311 = vrot.slane %v2309, 4
      %v2312 = vor.u32 %v2311, %v2307
      %v2313 = vrot.slane %v2312, 4
      %v2315 = vshll.u32 %v2144, 16
      %v2317 = vrot.slane %v2315, 5
      %v2318 = vsel %vm370, %v2313, %v2317
      %v2320 = vshrl.u32 %v2145, 16
      %v2322 = vrot.slane %v2320, 4
      %v2323 = vshll.u32 %v2145, 16
      %v2325 = vrot.slane %v2323, 5
      %v2326 = vor.u32 %v2322, %v2325
      %v2327 = vrot.slane %v2326, 4
      %v2329 = vshll.u32 %v2146, 16
      %v2331 = vrot.slane %v2329, 5
      %v2332 = vsel %vm370, %v2327, %v2331
      %v2333 = vshrl.u32 %v2146, 16
      %v2335 = vrot.slane %v2333, 4
      %v2336 = vor.u32 %v2335, %v2331
      %v2337 = vrot.slane %v2336, 4
      %v2339 = vshll.u32 %v2147, 16
      %v2341 = vrot.slane %v2339, 5
      %v2342 = vsel %vm370, %v2337, %v2341
      %v2344 = vshrl.u32 %v2148, 16
      %v2346 = vrot.slane %v2344, 4
      %v2347 = vshll.u32 %v2148, 16
      %v2349 = vrot.slane %v2347, 5
      %v2350 = vor.u32 %v2346, %v2349
      %v2351 = vrot.slane %v2350, 4
      %v2353 = vshll.u32 %v2149, 16
      %v2355 = vrot.slane %v2353, 5
      %v2356 = vsel %vm370, %v2351, %v2355
      %v2357 = vshrl.u32 %v2149, 16
      %v2359 = vrot.slane %v2357, 4
      %v2360 = vor.u32 %v2359, %v2355
      %v2361 = vrot.slane %v2360, 4
      %v2363 = vshll.u32 %v2150, 16
      %v2365 = vrot.slane %v2363, 5
      %v2366 = vsel %vm370, %v2361, %v2365
      %v2368 = vshrl.u32 %v2151, 16
      %v2370 = vrot.slane %v2368, 4
      %v2371 = vshll.u32 %v2151, 16
      %v2373 = vrot.slane %v2371, 5
      %v2374 = vor.u32 %v2370, %v2373
      %v2375 = vrot.slane %v2374, 4
      %v2377 = vshll.u32 %v2152, 16
      %v2379 = vrot.slane %v2377, 5
      %v2380 = vsel %vm370, %v2375, %v2379
      %v2381 = vshrl.u32 %v2152, 16
      %v2383 = vrot.slane %v2381, 4
      %v2384 = vor.u32 %v2383, %v2379
      %v2385 = vrot.slane %v2384, 4
      %v2387 = vshll.u32 %v2153, 16
      %v2389 = vrot.slane %v2387, 5
      %v2390 = vsel %vm370, %v2385, %v2389
      %v2392 = vshrl.u32 %v2154, 16
      %v2394 = vrot.slane %v2392, 4
      %v2395 = vshll.u32 %v2154, 16
      %v2397 = vrot.slane %v2395, 5
      %v2398 = vor.u32 %v2394, %v2397
      %v2399 = vrot.slane %v2398, 4
      %v2401 = vshll.u32 %v2155, 16
      %v2403 = vrot.slane %v2401, 5
      %v2404 = vsel %vm370, %v2399, %v2403
      %v2405 = vshrl.u32 %v2155, 16
      %v2407 = vrot.slane %v2405, 4
      %v2408 = vor.u32 %v2407, %v2403
      %v2409 = vrot.slane %v2408, 4
      %v2411 = vshll.u32 %v2156, 16
      %v2413 = vrot.slane %v2411, 5
      %v2414 = vsel %vm370, %v2409, %v2413
      %v2416 = vshrl.u32 %v2157, 16
      %v2418 = vrot.slane %v2416, 4
      %v2419 = vshll.u32 %v2157, 16
      %v2421 = vrot.slane %v2419, 5
      %v2422 = vor.u32 %v2418, %v2421
      %v2423 = vrot.slane %v2422, 4
      %v2425 = vshll.u32 %v2158, 16
      %v2427 = vrot.slane %v2425, 5
      %v2428 = vsel %vm370, %v2423, %v2427
      %v2429 = vshrl.u32 %v2158, 16
      %v2431 = vrot.slane %v2429, 4
      %v2432 = vor.u32 %v2431, %v2427
      %v2433 = vrot.slane %v2432, 4
      %v2435 = vshll.u32 %v2159, 16
      %v2437 = vrot.slane %v2435, 5
      %v2438 = vsel %vm370, %v2433, %v2437
      %v2440 = vshrl.u32 %v2160, 16
      %v2442 = vrot.slane %v2440, 4
      %v2443 = vshll.u32 %v2160, 16
      %v2445 = vrot.slane %v2443, 5
      %v2446 = vor.u32 %v2442, %v2445
      %v2447 = vrot.slane %v2446, 4
      %v2449 = vshll.u32 %v2161, 16
      %v2451 = vrot.slane %v2449, 5
      %v2452 = vsel %vm370, %v2447, %v2451
      %v2453 = vshrl.u32 %v2161, 16
      %v2455 = vrot.slane %v2453, 4
      %v2456 = vor.u32 %v2455, %v2451
      %v2457 = vrot.slane %v2456, 4
      %v2459 = vshll.u32 %v2162, 16
      %v2461 = vrot.slane %v2459, 5
      %v2462 = vsel %vm370, %v2457, %v2461
      %v2464 = vshrl.u32 %v2163, 16
      %v2466 = vrot.slane %v2464, 4
      %v2467 = vshll.u32 %v2163, 16
      %v2469 = vrot.slane %v2467, 5
      %v2470 = vor.u32 %v2466, %v2469
      %v2471 = vrot.slane %v2470, 4
      %v2473 = vshll.u32 %v2164, 16
      %v2475 = vrot.slane %v2473, 5
      %v2476 = vsel %vm370, %v2471, %v2475
      %v2477 = vshrl.u32 %v2164, 16
      %v2479 = vrot.slane %v2477, 4
      %v2480 = vor.u32 %v2479, %v2475
      %v2481 = vrot.slane %v2480, 4
      %v2483 = vshll.u32 %v2165, 16
      %v2485 = vrot.slane %v2483, 5
      %v2486 = vsel %vm370, %v2481, %v2485
      %v2488 = vshrl.u32 %v2166, 16
      %v2490 = vrot.slane %v2488, 4
      %v2491 = vshll.u32 %v2166, 16
      %v2493 = vrot.slane %v2491, 5
      %v2494 = vor.u32 %v2490, %v2493
      %v2495 = vrot.slane %v2494, 4
      %v2497 = vshll.u32 %v2167, 16
      %v2499 = vrot.slane %v2497, 5
      %v2500 = vsel %vm370, %v2495, %v2499
      %v2501 = vshrl.u32 %v2167, 16
      %v2503 = vrot.slane %v2501, 4
      %v2504 = vor.u32 %v2503, %v2499
      %v2505 = vrot.slane %v2504, 4
      %v2507 = vshll.u32 %v2168, 16
      %v2509 = vrot.slane %v2507, 5
      %v2510 = vsel %vm370, %v2505, %v2509
      %v2512 = vshrl.u32 %v2169, 16
      %v2514 = vrot.slane %v2512, 4
      %v2515 = vshll.u32 %v2169, 16
      %v2517 = vrot.slane %v2515, 5
      %v2518 = vor.u32 %v2514, %v2517
      %v2519 = vrot.slane %v2518, 4
      %v2521 = vshll.u32 %v2170, 16
      %v2523 = vrot.slane %v2521, 5
      %v2524 = vsel %vm370, %v2519, %v2523
      %v2525 = vshrl.u32 %v2170, 16
      %v2527 = vrot.slane %v2525, 4
      %v2528 = vor.u32 %v2527, %v2523
      %v2529 = vrot.slane %v2528, 4
      %v2531 = vshll.u32 %v2171, 16
      %v2533 = vrot.slane %v2531, 5
      %v2534 = vsel %vm370, %v2529, %v2533
      %v2536 = vshrl.u32 %v2172, 16
      %v2538 = vrot.slane %v2536, 4
      %v2539 = vshll.u32 %v2172, 16
      %v2541 = vrot.slane %v2539, 5
      %v2542 = vor.u32 %v2538, %v2541
      %v2543 = vrot.slane %v2542, 4
      %v2545 = vshll.u32 %v2173, 16
      %v2547 = vrot.slane %v2545, 5
      %v2548 = vsel %vm370, %v2543, %v2547
      %v2549 = vshrl.u32 %v2173, 16
      %v2551 = vrot.slane %v2549, 4
      %v2552 = vor.u32 %v2551, %v2547
      %v2553 = vrot.slane %v2552, 4
      %v2555 = vshll.u32 %v2174, 16
      %v2557 = vrot.slane %v2555, 5
      %v2558 = vsel %vm370, %v2553, %v2557
      %s2559 = scalar_lea.vmem %s1, 8
      %v2560 = vld [vmem:[%s2559] sm:$0x3]
      %v2561 = vunpack.c.l.b16 %v2188
      %v2562 = vunpack.c.l.b16 %v2198
      %v2563 = vunpack.c.l.b16 %v2212
      %v2564 = vunpack.c.l.b16 %v2222
      %v2565 = vunpack.c.l.b16 %v2236
      %v2566 = vunpack.c.l.b16 %v2246
      %v2567 = vunpack.c.l.b16 %v2260
      %v2568 = vunpack.c.l.b16 %v2270
      %v2569 = vunpack.c.l.b16 %v2284
      %v2570 = vunpack.c.l.b16 %v2294
      %v2571 = vunpack.c.l.b16 %v2308
      %v2572 = vunpack.c.l.b16 %v2318
      %v2573 = vunpack.c.l.b16 %v2332
      %v2574 = vunpack.c.l.b16 %v2342
      %v2575 = vunpack.c.l.b16 %v2356
      %v2576 = vunpack.c.l.b16 %v2366
      %v2577 = vunpack.c.l.b16 %v2380
      %v2578 = vunpack.c.l.b16 %v2390
      %v2579 = vunpack.c.l.b16 %v2404
      %v2580 = vunpack.c.l.b16 %v2414
      %v2581 = vunpack.c.l.b16 %v2428
      %v2582 = vunpack.c.l.b16 %v2438
      %v2583 = vunpack.c.l.b16 %v2452
      %v2584 = vunpack.c.l.b16 %v2462
      %v2585 = vunpack.c.l.b16 %v2476
      %v2586 = vunpack.c.l.b16 %v2486
      %v2587 = vunpack.c.l.b16 %v2500
      %v2588 = vunpack.c.l.b16 %v2510
      %v2589 = vunpack.c.l.b16 %v2524
      %v2590 = vunpack.c.l.b16 %v2534
      %v2591 = vunpack.c.l.b16 %v2548
      %v2592 = vunpack.c.l.b16 %v2558
      %v2593 = vpack.c.b16 %v2562, %v2561
      %v2594 = vpack.c.b16 %v2564, %v2563
      %v2595 = vpack.c.b16 %v2566, %v2565
      %v2596 = vpack.c.b16 %v2568, %v2567
      %v2597 = vpack.c.b16 %v2570, %v2569
      %v2598 = vpack.c.b16 %v2572, %v2571
      %v2599 = vpack.c.b16 %v2574, %v2573
      %v2600 = vpack.c.b16 %v2576, %v2575
      %v2601 = vpack.c.b16 %v2578, %v2577
      %v2602 = vpack.c.b16 %v2580, %v2579
      %v2603 = vpack.c.b16 %v2582, %v2581
      %v2604 = vpack.c.b16 %v2584, %v2583
      %v2605 = vpack.c.b16 %v2586, %v2585
      %v2606 = vpack.c.b16 %v2588, %v2587
      %v2607 = vpack.c.b16 %v2590, %v2589
      %v2608 = vpack.c.b16 %v2592, %v2591
      %v2610 = vsel %vm805, %v2593, 0
      %v2613 = vsel %vm805, %v2594, 0
      %v2616 = vsel %vm805, %v2595, 0
      %v2619 = vsel %vm805, %v2596, 0
      %v2622 = vsel %vm805, %v2597, 0
      %v2625 = vsel %vm805, %v2598, 0
      %v2628 = vsel %vm805, %v2599, 0
      %v2631 = vsel %vm805, %v2600, 0
      %v2634 = vsel %vm805, %v2601, 0
      %v2637 = vsel %vm805, %v2602, 0
      %v2640 = vsel %vm805, %v2603, 0
      %v2643 = vsel %vm805, %v2604, 0
      %v2646 = vsel %vm805, %v2605, 0
      %v2649 = vsel %vm805, %v2606, 0
      %v2652 = vsel %vm805, %v2607, 0
      %v2655 = vsel %vm805, %v2608, 0
      %v2658 = vsel %vm854, %v2560, 0
      %2660 = vmatprep.subr.bf16.mxu0 0
      %2661 = vmatpush1.bf16.msra.mxu0 %v2658
      %2662 = vmatprep.subr.bf16.mxu0 0
      %2663 = vmatpush1.bf16.msra.mxu0 0
      %2664 = vmatprep.subr.bf16.mxu0 0
      %2665 = vmatpush1.bf16.msra.mxu0 0
      %2666 = vmatprep.subr.bf16.mxu0 0
      %2667 = vmatpush1.bf16.msra.mxu0 0
      %2668 = vmatprep.subr.bf16.mxu0 0
      %2669 = vmatpush1.bf16.msra.mxu0 0
      %2670 = vmatprep.subr.bf16.mxu0 0
      %2671 = vmatpush1.bf16.msra.mxu0 0
      %2672 = vmatprep.subr.bf16.mxu0 0
      %2673 = vmatpush1.bf16.msra.mxu0 0
      %2674 = vmatprep.subr.bf16.mxu0 0
      %2675 = vmatpush1.bf16.msra.mxu0 0
      %2676 = vmatprep.subr.bf16.mxu0 0
      %2677 = vmatpush1.bf16.msra.mxu0 0
      %2678 = vmatprep.subr.bf16.mxu0 0
      %2679 = vmatpush1.bf16.msra.mxu0 0
      %2680 = vmatprep.subr.bf16.mxu0 0
      %2681 = vmatpush1.bf16.msra.mxu0 0
      %2682 = vmatprep.subr.bf16.mxu0 0
      %2683 = vmatpush1.bf16.msra.mxu0 0
      %2684 = vmatprep.subr.bf16.mxu0 0
      %2685 = vmatpush1.bf16.msra.mxu0 0
      %2686 = vmatprep.subr.bf16.mxu0 0
      %2687 = vmatpush1.bf16.msra.mxu0 0
      %2688 = vmatprep.subr.bf16.mxu0 0
      %2689 = vmatpush1.bf16.msra.mxu0 0
      %2690 = vmatprep.subr.bf16.mxu0 0
      %2691 = vmatpush1.bf16.msra.mxu0 0
      %2692 = vmatprep.mubr.bf16.mxu0 0
      %2693 = vmatmul.mubr.bf16.gmra.mrb[0].mxu0 %v2610
      %v2694 = vpop.f32.mrb[0].mxu0
      %v2695 = vadd.f32 0.0, %v2694
      %v2696 = vpop.f32.mrb[0].mxu0
      %v2697 = vpop.f32.mrb[0].mxu0
      %v2698 = vadd.f32 0.0, %v2697
      %v2699 = vpop.f32.mrb[0].mxu0
      %2700 = vmatprep.mubr.bf16.mxu0 0
      %2701 = vmatmul.mubr.bf16.gmra.mrb[0].mxu0 %v2613
      %v2702 = vpop.f32.mrb[0].mxu0
      %v2703 = vadd.f32 0.0, %v2702
      %v2704 = vpop.f32.mrb[0].mxu0
      %v2705 = vpop.f32.mrb[0].mxu0
      %v2706 = vadd.f32 0.0, %v2705
      %v2707 = vpop.f32.mrb[0].mxu0
      %2708 = vmatprep.mubr.bf16.mxu0 0
      %2709 = vmatmul.mubr.bf16.gmra.mrb[0].mxu0 %v2616
      %v2710 = vpop.f32.mrb[0].mxu0
      %v2711 = vadd.f32 0.0, %v2710
      %v2712 = vpop.f32.mrb[0].mxu0
      %v2713 = vpop.f32.mrb[0].mxu0
      %v2714 = vadd.f32 0.0, %v2713
      %v2715 = vpop.f32.mrb[0].mxu0
      %2716 = vmatprep.mubr.bf16.mxu0 0
      %2717 = vmatmul.mubr.bf16.gmra.mrb[0].mxu0 %v2619
      %v2718 = vpop.f32.mrb[0].mxu0
      %v2719 = vadd.f32 0.0, %v2718
      %v2720 = vpop.f32.mrb[0].mxu0
      %v2721 = vpop.f32.mrb[0].mxu0
      %v2722 = vadd.f32 0.0, %v2721
      %v2723 = vpop.f32.mrb[0].mxu0
      %2724 = vmatprep.mubr.bf16.mxu0 0
      %2725 = vmatmul.mubr.bf16.gmra.mrb[0].mxu0 %v2622
      %v2726 = vpop.f32.mrb[0].mxu0
      %v2727 = vadd.f32 0.0, %v2726
      %v2728 = vpop.f32.mrb[0].mxu0
      %v2729 = vpop.f32.mrb[0].mxu0
      %v2730 = vadd.f32 0.0, %v2729
      %v2731 = vpop.f32.mrb[0].mxu0
      %2732 = vmatprep.mubr.bf16.mxu0 0
      %2733 = vmatmul.mubr.bf16.gmra.mrb[0].mxu0 %v2625
      %v2734 = vpop.f32.mrb[0].mxu0
      %v2735 = vadd.f32 0.0, %v2734
      %v2736 = vpop.f32.mrb[0].mxu0
      %v2737 = vpop.f32.mrb[0].mxu0
      %v2738 = vadd.f32 0.0, %v2737
      %v2739 = vpop.f32.mrb[0].mxu0
      %2740 = vmatprep.mubr.bf16.mxu0 0
      %2741 = vmatmul.mubr.bf16.gmra.mrb[0].mxu0 %v2628
      %v2742 = vpop.f32.mrb[0].mxu0
      %v2743 = vadd.f32 0.0, %v2742
      %v2744 = vpop.f32.mrb[0].mxu0
      %v2745 = vpop.f32.mrb[0].mxu0
      %v2746 = vadd.f32 0.0, %v2745
      %v2747 = vpop.f32.mrb[0].mxu0
      %2748 = vmatprep.mubr.bf16.mxu0 0
      %2749 = vmatmul.mubr.bf16.gmra.mrb[0].mxu0 %v2631
      %v2750 = vpop.f32.mrb[0].mxu0
      %v2751 = vadd.f32 0.0, %v2750
      %v2752 = vpop.f32.mrb[0].mxu0
      %v2753 = vpop.f32.mrb[0].mxu0
      %v2754 = vadd.f32 0.0, %v2753
      %v2755 = vpop.f32.mrb[0].mxu0
      %2756 = vmatprep.mubr.bf16.mxu0 0
      %2757 = vmatmul.mubr.bf16.gmra.mrb[0].mxu0 %v2634
      %v2758 = vpop.f32.mrb[0].mxu0
      %v2759 = vadd.f32 0.0, %v2758
      %v2760 = vpop.f32.mrb[0].mxu0
      %v2761 = vpop.f32.mrb[0].mxu0
      %v2762 = vadd.f32 0.0, %v2761
      %v2763 = vpop.f32.mrb[0].mxu0
      %2764 = vmatprep.mubr.bf16.mxu0 0
      %2765 = vmatmul.mubr.bf16.gmra.mrb[0].mxu0 %v2637
      %v2766 = vpop.f32.mrb[0].mxu0
      %v2767 = vadd.f32 0.0, %v2766
      %v2768 = vpop.f32.mrb[0].mxu0
      %v2769 = vpop.f32.mrb[0].mxu0
      %v2770 = vadd.f32 0.0, %v2769
      %v2771 = vpop.f32.mrb[0].mxu0
      %2772 = vmatprep.mubr.bf16.mxu0 0
      %2773 = vmatmul.mubr.bf16.gmra.mrb[0].mxu0 %v2640
      %v2774 = vpop.f32.mrb[0].mxu0
      %v2775 = vadd.f32 0.0, %v2774
      %v2776 = vpop.f32.mrb[0].mxu0
      %v2777 = vpop.f32.mrb[0].mxu0
      %v2778 = vadd.f32 0.0, %v2777
      %v2779 = vpop.f32.mrb[0].mxu0
      %2780 = vmatprep.mubr.bf16.mxu0 0
      %2781 = vmatmul.mubr.bf16.gmra.mrb[0].mxu0 %v2643
      %v2782 = vpop.f32.mrb[0].mxu0
      %v2783 = vadd.f32 0.0, %v2782
      %v2784 = vpop.f32.mrb[0].mxu0
      %v2785 = vpop.f32.mrb[0].mxu0
      %v2786 = vadd.f32 0.0, %v2785
      %v2787 = vpop.f32.mrb[0].mxu0
      %2788 = vmatprep.mubr.bf16.mxu0 0
      %2789 = vmatmul.mubr.bf16.gmra.mrb[0].mxu0 %v2646
      %v2790 = vpop.f32.mrb[0].mxu0
      %v2791 = vadd.f32 0.0, %v2790
      %v2792 = vpop.f32.mrb[0].mxu0
      %v2793 = vpop.f32.mrb[0].mxu0
      %v2794 = vadd.f32 0.0, %v2793
      %v2795 = vpop.f32.mrb[0].mxu0
      %2796 = vmatprep.mubr.bf16.mxu0 0
      %2797 = vmatmul.mubr.bf16.gmra.mrb[0].mxu0 %v2649
      %v2798 = vpop.f32.mrb[0].mxu0
      %v2799 = vadd.f32 0.0, %v2798
      %v2800 = vpop.f32.mrb[0].mxu0
      %v2801 = vpop.f32.mrb[0].mxu0
      %v2802 = vadd.f32 0.0, %v2801
      %v2803 = vpop.f32.mrb[0].mxu0
      %2804 = vmatprep.mubr.bf16.mxu0 0
      %2805 = vmatmul.mubr.bf16.gmra.mrb[0].mxu0 %v2652
      %v2806 = vpop.f32.mrb[0].mxu0
      %v2807 = vadd.f32 0.0, %v2806
      %v2808 = vpop.f32.mrb[0].mxu0
      %v2809 = vpop.f32.mrb[0].mxu0
      %v2810 = vadd.f32 0.0, %v2809
      %v2811 = vpop.f32.mrb[0].mxu0
      %2812 = vmatprep.mubr.bf16.mxu0 0
      %2813 = vmatmul.mubr.bf16.gmra.mrb[0].mxu0 %v2655
      %v2814 = vpop.f32.mrb[0].mxu0
      %v2815 = vadd.f32 0.0, %v2814
      %v2816 = vpop.f32.mrb[0].mxu0
      %v2817 = vpop.f32.mrb[0].mxu0
      %v2818 = vadd.f32 0.0, %v2817
      %v2819 = vpop.f32.mrb[0].mxu0
      %2820 = vdwg.mxu0
      %v2821 = vadd.f32 %v2095, %v2695
      %v2822 = vadd.f32 %v2096, %v2698
      %v2823 = vadd.f32 %v2097, %v2703
      %v2824 = vadd.f32 %v2098, %v2706
      %v2825 = vadd.f32 %v2099, %v2711
      %v2826 = vadd.f32 %v2100, %v2714
      %v2827 = vadd.f32 %v2101, %v2719
      %v2828 = vadd.f32 %v2102, %v2722
      %v2829 = vadd.f32 %v2103, %v2727
      %v2830 = vadd.f32 %v2104, %v2730
      %v2831 = vadd.f32 %v2105, %v2735
      %v2832 = vadd.f32 %v2106, %v2738
      %v2833 = vadd.f32 %v2107, %v2743
      %v2834 = vadd.f32 %v2108, %v2746
      %v2835 = vadd.f32 %v2109, %v2751
      %v2836 = vadd.f32 %v2110, %v2754
      %v2837 = vadd.f32 %v2111, %v2759
      %v2838 = vadd.f32 %v2112, %v2762
      %v2839 = vadd.f32 %v2113, %v2767
      %v2840 = vadd.f32 %v2114, %v2770
      %v2841 = vadd.f32 %v2115, %v2775
      %v2842 = vadd.f32 %v2116, %v2778
      %v2843 = vadd.f32 %v2117, %v2783
      %v2844 = vadd.f32 %v2118, %v2786
      %v2845 = vadd.f32 %v2119, %v2791
      %v2846 = vadd.f32 %v2120, %v2794
      %v2847 = vadd.f32 %v2121, %v2799
      %v2848 = vadd.f32 %v2122, %v2802
      %v2849 = vadd.f32 %v2123, %v2807
      %v2850 = vadd.f32 %v2124, %v2810
      %v2851 = vadd.f32 %v2125, %v2815
      %v2852 = vadd.f32 %v2126, %v2818
      %v2853 = vld [vmem:[%s1768] sm:$0xe]
      %v2854 = vld [vmem:[%s1768 + $0xc] sm:$0xe]
      %v2855 = vld [vmem:[%s1768 + $0x18] sm:$0xe]
      %v2856 = vld [vmem:[%s1768 + $0x24] sm:$0xe]
      %v2857 = vld [vmem:[%s1768 + $0x30] sm:$0xe]
      %v2858 = vld [vmem:[%s1768 + $0x3c] sm:$0xe]
      %v2859 = vld [vmem:[%s1768 + $0x48] sm:$0xe]
      %v2860 = vld [vmem:[%s1768 + $0x54] sm:$0xe]
      %v2861 = vld [vmem:[%s1768 + $0x60] sm:$0xe]
      %v2862 = vld [vmem:[%s1768 + $0x6c] sm:$0xe]
      %v2863 = vld [vmem:[%s1768 + $0x78] sm:$0xe]
      %v2864 = vld [vmem:[%s1768 + $0x84] sm:$0xe]
      %v2865 = vld [vmem:[%s1768 + $0x90] sm:$0xe]
      %v2866 = vld [vmem:[%s1768 + $0x9c] sm:$0xe]
      %v2867 = vld [vmem:[%s1768 + $0xa8] sm:$0xe]
      %v2868 = vld [vmem:[%s1768 + $0xb4] sm:$0xe]
      %v2917 = vrot.slane %v2853, 5
      %v2918 = vrot.slane %v2917, 4
      %v2919 = vrot.slane %v2128, 5
      %v2920 = vsel %vm1361, %v2918, %v2919
      %v2921 = vrot.slane %v2919, 4
      %v2922 = vrot.slane %v2129, 5
      %v2923 = vsel %vm1361, %v2921, %v2922
      %v2924 = vrot.slane %v2854, 5
      %v2925 = vrot.slane %v2924, 4
      %v2926 = vrot.slane %v2131, 5
      %v2927 = vsel %vm1361, %v2925, %v2926
      %v2928 = vrot.slane %v2926, 4
      %v2929 = vrot.slane %v2132, 5
      %v2930 = vsel %vm1361, %v2928, %v2929
      %v2931 = vrot.slane %v2855, 5
      %v2932 = vrot.slane %v2931, 4
      %v2933 = vrot.slane %v2134, 5
      %v2934 = vsel %vm1361, %v2932, %v2933
      %v2935 = vrot.slane %v2933, 4
      %v2936 = vrot.slane %v2135, 5
      %v2937 = vsel %vm1361, %v2935, %v2936
      %v2938 = vrot.slane %v2856, 5
      %v2939 = vrot.slane %v2938, 4
      %v2940 = vrot.slane %v2137, 5
      %v2941 = vsel %vm1361, %v2939, %v2940
      %v2942 = vrot.slane %v2940, 4
      %v2943 = vrot.slane %v2138, 5
      %v2944 = vsel %vm1361, %v2942, %v2943
      %v2945 = vrot.slane %v2857, 5
      %v2946 = vrot.slane %v2945, 4
      %v2947 = vrot.slane %v2140, 5
      %v2948 = vsel %vm1361, %v2946, %v2947
      %v2949 = vrot.slane %v2947, 4
      %v2950 = vrot.slane %v2141, 5
      %v2951 = vsel %vm1361, %v2949, %v2950
      %v2952 = vrot.slane %v2858, 5
      %v2953 = vrot.slane %v2952, 4
      %v2954 = vrot.slane %v2143, 5
      %v2955 = vsel %vm1361, %v2953, %v2954
      %v2956 = vrot.slane %v2954, 4
      %v2957 = vrot.slane %v2144, 5
      %v2958 = vsel %vm1361, %v2956, %v2957
      %v2959 = vrot.slane %v2859, 5
      %v2960 = vrot.slane %v2959, 4
      %v2961 = vrot.slane %v2146, 5
      %v2962 = vsel %vm1361, %v2960, %v2961
      %v2963 = vrot.slane %v2961, 4
      %v2964 = vrot.slane %v2147, 5
      %v2965 = vsel %vm1361, %v2963, %v2964
      %v2966 = vrot.slane %v2860, 5
      %v2967 = vrot.slane %v2966, 4
      %v2968 = vrot.slane %v2149, 5
      %v2969 = vsel %vm1361, %v2967, %v2968
      %v2970 = vrot.slane %v2968, 4
      %v2971 = vrot.slane %v2150, 5
      %v2972 = vsel %vm1361, %v2970, %v2971
      %v2973 = vrot.slane %v2861, 5
      %v2974 = vrot.slane %v2973, 4
      %v2975 = vrot.slane %v2152, 5
      %v2976 = vsel %vm1361, %v2974, %v2975
      %v2977 = vrot.slane %v2975, 4
      %v2978 = vrot.slane %v2153, 5
      %v2979 = vsel %vm1361, %v2977, %v2978
      %v2980 = vrot.slane %v2862, 5
      %v2981 = vrot.slane %v2980, 4
      %v2982 = vrot.slane %v2155, 5
      %v2983 = vsel %vm1361, %v2981, %v2982
      %v2984 = vrot.slane %v2982, 4
      %v2985 = vrot.slane %v2156, 5
      %v2986 = vsel %vm1361, %v2984, %v2985
      %v2987 = vrot.slane %v2863, 5
      %v2988 = vrot.slane %v2987, 4
      %v2989 = vrot.slane %v2158, 5
      %v2990 = vsel %vm1361, %v2988, %v2989
      %v2991 = vrot.slane %v2989, 4
      %v2992 = vrot.slane %v2159, 5
      %v2993 = vsel %vm1361, %v2991, %v2992
      %v2994 = vrot.slane %v2864, 5
      %v2995 = vrot.slane %v2994, 4
      %v2996 = vrot.slane %v2161, 5
      %v2997 = vsel %vm1361, %v2995, %v2996
      %v2998 = vrot.slane %v2996, 4
      %v2999 = vrot.slane %v2162, 5
      %v3000 = vsel %vm1361, %v2998, %v2999
      %v3001 = vrot.slane %v2865, 5
      %v3002 = vrot.slane %v3001, 4
      %v3003 = vrot.slane %v2164, 5
      %v3004 = vsel %vm1361, %v3002, %v3003
      %v3005 = vrot.slane %v3003, 4
      %v3006 = vrot.slane %v2165, 5
      %v3007 = vsel %vm1361, %v3005, %v3006
      %v3008 = vrot.slane %v2866, 5
      %v3009 = vrot.slane %v3008, 4
      %v3010 = vrot.slane %v2167, 5
      %v3011 = vsel %vm1361, %v3009, %v3010
      %v3012 = vrot.slane %v3010, 4
      %v3013 = vrot.slane %v2168, 5
      %v3014 = vsel %vm1361, %v3012, %v3013
      %v3015 = vrot.slane %v2867, 5
      %v3016 = vrot.slane %v3015, 4
      %v3017 = vrot.slane %v2170, 5
      %v3018 = vsel %vm1361, %v3016, %v3017
      %v3019 = vrot.slane %v3017, 4
      %v3020 = vrot.slane %v2171, 5
      %v3021 = vsel %vm1361, %v3019, %v3020
      %v3022 = vrot.slane %v2868, 5
      %v3023 = vrot.slane %v3022, 4
      %v3024 = vrot.slane %v2173, 5
      %v3025 = vsel %vm1361, %v3023, %v3024
      %v3026 = vrot.slane %v3024, 4
      %v3027 = vrot.slane %v2174, 5
      %v3028 = vsel %vm1361, %v3026, %v3027
      %s3029 = scalar_lea.vmem %s1, 10
      %v3030 = vld [vmem:[%s3029] sm:$0x3]
      %v3031 = vunpack.c.l.b16 %v2920
      %v3032 = vunpack.c.l.b16 %v2923
      %v3033 = vunpack.c.l.b16 %v2927
      %v3034 = vunpack.c.l.b16 %v2930
      %v3035 = vunpack.c.l.b16 %v2934
      %v3036 = vunpack.c.l.b16 %v2937
      %v3037 = vunpack.c.l.b16 %v2941
      %v3038 = vunpack.c.l.b16 %v2944
      %v3039 = vunpack.c.l.b16 %v2948
      %v3040 = vunpack.c.l.b16 %v2951
      %v3041 = vunpack.c.l.b16 %v2955
      %v3042 = vunpack.c.l.b16 %v2958
      %v3043 = vunpack.c.l.b16 %v2962
      %v3044 = vunpack.c.l.b16 %v2965
      %v3045 = vunpack.c.l.b16 %v2969
      %v3046 = vunpack.c.l.b16 %v2972
      %v3047 = vunpack.c.l.b16 %v2976
      %v3048 = vunpack.c.l.b16 %v2979
      %v3049 = vunpack.c.l.b16 %v2983
      %v3050 = vunpack.c.l.b16 %v2986
      %v3051 = vunpack.c.l.b16 %v2990
      %v3052 = vunpack.c.l.b16 %v2993
      %v3053 = vunpack.c.l.b16 %v2997
      %v3054 = vunpack.c.l.b16 %v3000
      %v3055 = vunpack.c.l.b16 %v3004
      %v3056 = vunpack.c.l.b16 %v3007
      %v3057 = vunpack.c.l.b16 %v3011
      %v3058 = vunpack.c.l.b16 %v3014
      %v3059 = vunpack.c.l.b16 %v3018
      %v3060 = vunpack.c.l.b16 %v3021
      %v3061 = vunpack.c.l.b16 %v3025
      %v3062 = vunpack.c.l.b16 %v3028
      %v3063 = vpack.c.b16 %v3032, %v3031
      %v3064 = vpack.c.b16 %v3034, %v3033
      %v3065 = vpack.c.b16 %v3036, %v3035
      %v3066 = vpack.c.b16 %v3038, %v3037
      %v3067 = vpack.c.b16 %v3040, %v3039
      %v3068 = vpack.c.b16 %v3042, %v3041
      %v3069 = vpack.c.b16 %v3044, %v3043
      %v3070 = vpack.c.b16 %v3046, %v3045
      %v3071 = vpack.c.b16 %v3048, %v3047
      %v3072 = vpack.c.b16 %v3050, %v3049
      %v3073 = vpack.c.b16 %v3052, %v3051
      %v3074 = vpack.c.b16 %v3054, %v3053
      %v3075 = vpack.c.b16 %v3056, %v3055
      %v3076 = vpack.c.b16 %v3058, %v3057
      %v3077 = vpack.c.b16 %v3060, %v3059
      %v3078 = vpack.c.b16 %v3062, %v3061
      %v3080 = vsel %vm805, %v3063, 0
      %v3083 = vsel %vm805, %v3064, 0
      %v3086 = vsel %vm805, %v3065, 0
      %v3089 = vsel %vm805, %v3066, 0
      %v3092 = vsel %vm805, %v3067, 0
      %v3095 = vsel %vm805, %v3068, 0
      %v3098 = vsel %vm805, %v3069, 0
      %v3101 = vsel %vm805, %v3070, 0
      %v3104 = vsel %vm805, %v3071, 0
      %v3107 = vsel %vm805, %v3072, 0
      %v3110 = vsel %vm805, %v3073, 0
      %v3113 = vsel %vm805, %v3074, 0
      %v3116 = vsel %vm805, %v3075, 0
      %v3119 = vsel %vm805, %v3076, 0
      %v3122 = vsel %vm805, %v3077, 0
      %v3125 = vsel %vm805, %v3078, 0
      %v3128 = vsel %vm854, %v3030, 0
      %3130 = vmatprep.subr.bf16.mxu0 0
      %3131 = vmatpush1.bf16.msra.mxu0 %v3128
      %3132 = vmatprep.subr.bf16.mxu0 0
      %3133 = vmatpush1.bf16.msra.mxu0 0
      %3134 = vmatprep.subr.bf16.mxu0 0
      %3135 = vmatpush1.bf16.msra.mxu0 0
      %3136 = vmatprep.subr.bf16.mxu0 0
      %3137 = vmatpush1.bf16.msra.mxu0 0
      %3138 = vmatprep.subr.bf16.mxu0 0
      %3139 = vmatpush1.bf16.msra.mxu0 0
      %3140 = vmatprep.subr.bf16.mxu0 0
      %3141 = vmatpush1.bf16.msra.mxu0 0
      %3142 = vmatprep.subr.bf16.mxu0 0
      %3143 = vmatpush1.bf16.msra.mxu0 0
      %3144 = vmatprep.subr.bf16.mxu0 0
      %3145 = vmatpush1.bf16.msra.mxu0 0
      %3146 = vmatprep.subr.bf16.mxu0 0
      %3147 = vmatpush1.bf16.msra.mxu0 0
      %3148 = vmatprep.subr.bf16.mxu0 0
      %3149 = vmatpush1.bf16.msra.mxu0 0
      %3150 = vmatprep.subr.bf16.mxu0 0
      %3151 = vmatpush1.bf16.msra.mxu0 0
      %3152 = vmatprep.subr.bf16.mxu0 0
      %3153 = vmatpush1.bf16.msra.mxu0 0
      %3154 = vmatprep.subr.bf16.mxu0 0
      %3155 = vmatpush1.bf16.msra.mxu0 0
      %3156 = vmatprep.subr.bf16.mxu0 0
      %3157 = vmatpush1.bf16.msra.mxu0 0
      %3158 = vmatprep.subr.bf16.mxu0 0
      %3159 = vmatpush1.bf16.msra.mxu0 0
      %3160 = vmatprep.subr.bf16.mxu0 0
      %3161 = vmatpush1.bf16.msra.mxu0 0
      %3162 = vmatprep.mubr.bf16.mxu0 0
      %3163 = vmatmul.mubr.bf16.gmra.mrb[0].mxu0 %v3080
      %v3164 = vpop.f32.mrb[0].mxu0
      %v3165 = vadd.f32 0.0, %v3164
      %v3166 = vpop.f32.mrb[0].mxu0
      %v3167 = vpop.f32.mrb[0].mxu0
      %v3168 = vadd.f32 0.0, %v3167
      %v3169 = vpop.f32.mrb[0].mxu0
      %3170 = vmatprep.mubr.bf16.mxu0 0
      %3171 = vmatmul.mubr.bf16.gmra.mrb[0].mxu0 %v3083
      %v3172 = vpop.f32.mrb[0].mxu0
      %v3173 = vadd.f32 0.0, %v3172
      %v3174 = vpop.f32.mrb[0].mxu0
      %v3175 = vpop.f32.mrb[0].mxu0
      %v3176 = vadd.f32 0.0, %v3175
      %v3177 = vpop.f32.mrb[0].mxu0
      %3178 = vmatprep.mubr.bf16.mxu0 0
      %3179 = vmatmul.mubr.bf16.gmra.mrb[0].mxu0 %v3086
      %v3180 = vpop.f32.mrb[0].mxu0
      %v3181 = vadd.f32 0.0, %v3180
      %v3182 = vpop.f32.mrb[0].mxu0
      %v3183 = vpop.f32.mrb[0].mxu0
      %v3184 = vadd.f32 0.0, %v3183
      %v3185 = vpop.f32.mrb[0].mxu0
      %3186 = vmatprep.mubr.bf16.mxu0 0
      %3187 = vmatmul.mubr.bf16.gmra.mrb[0].mxu0 %v3089
      %v3188 = vpop.f32.mrb[0].mxu0
      %v3189 = vadd.f32 0.0, %v3188
      %v3190 = vpop.f32.mrb[0].mxu0
      %v3191 = vpop.f32.mrb[0].mxu0
      %v3192 = vadd.f32 0.0, %v3191
      %v3193 = vpop.f32.mrb[0].mxu0
      %3194 = vmatprep.mubr.bf16.mxu0 0
      %3195 = vmatmul.mubr.bf16.gmra.mrb[0].mxu0 %v3092
      %v3196 = vpop.f32.mrb[0].mxu0
      %v3197 = vadd.f32 0.0, %v3196
      %v3198 = vpop.f32.mrb[0].mxu0
      %v3199 = vpop.f32.mrb[0].mxu0
      %v3200 = vadd.f32 0.0, %v3199
      %v3201 = vpop.f32.mrb[0].mxu0
      %3202 = vmatprep.mubr.bf16.mxu0 0
      %3203 = vmatmul.mubr.bf16.gmra.mrb[0].mxu0 %v3095
      %v3204 = vpop.f32.mrb[0].mxu0
      %v3205 = vadd.f32 0.0, %v3204
      %v3206 = vpop.f32.mrb[0].mxu0
      %v3207 = vpop.f32.mrb[0].mxu0
      %v3208 = vadd.f32 0.0, %v3207
      %v3209 = vpop.f32.mrb[0].mxu0
      %3210 = vmatprep.mubr.bf16.mxu0 0
      %3211 = vmatmul.mubr.bf16.gmra.mrb[0].mxu0 %v3098
      %v3212 = vpop.f32.mrb[0].mxu0
      %v3213 = vadd.f32 0.0, %v3212
      %v3214 = vpop.f32.mrb[0].mxu0
      %v3215 = vpop.f32.mrb[0].mxu0
      %v3216 = vadd.f32 0.0, %v3215
      %v3217 = vpop.f32.mrb[0].mxu0
      %3218 = vmatprep.mubr.bf16.mxu0 0
      %3219 = vmatmul.mubr.bf16.gmra.mrb[0].mxu0 %v3101
      %v3220 = vpop.f32.mrb[0].mxu0
      %v3221 = vadd.f32 0.0, %v3220
      %v3222 = vpop.f32.mrb[0].mxu0
      %v3223 = vpop.f32.mrb[0].mxu0
      %v3224 = vadd.f32 0.0, %v3223
      %v3225 = vpop.f32.mrb[0].mxu0
      %3226 = vmatprep.mubr.bf16.mxu0 0
      %3227 = vmatmul.mubr.bf16.gmra.mrb[0].mxu0 %v3104
      %v3228 = vpop.f32.mrb[0].mxu0
      %v3229 = vadd.f32 0.0, %v3228
      %v3230 = vpop.f32.mrb[0].mxu0
      %v3231 = vpop.f32.mrb[0].mxu0
      %v3232 = vadd.f32 0.0, %v3231
      %v3233 = vpop.f32.mrb[0].mxu0
      %3234 = vmatprep.mubr.bf16.mxu0 0
      %3235 = vmatmul.mubr.bf16.gmra.mrb[0].mxu0 %v3107
      %v3236 = vpop.f32.mrb[0].mxu0
      %v3237 = vadd.f32 0.0, %v3236
      %v3238 = vpop.f32.mrb[0].mxu0
      %v3239 = vpop.f32.mrb[0].mxu0
      %v3240 = vadd.f32 0.0, %v3239
      %v3241 = vpop.f32.mrb[0].mxu0
      %3242 = vmatprep.mubr.bf16.mxu0 0
      %3243 = vmatmul.mubr.bf16.gmra.mrb[0].mxu0 %v3110
      %v3244 = vpop.f32.mrb[0].mxu0
      %v3245 = vadd.f32 0.0, %v3244
      %v3246 = vpop.f32.mrb[0].mxu0
      %v3247 = vpop.f32.mrb[0].mxu0
      %v3248 = vadd.f32 0.0, %v3247
      %v3249 = vpop.f32.mrb[0].mxu0
      %3250 = vmatprep.mubr.bf16.mxu0 0
      %3251 = vmatmul.mubr.bf16.gmra.mrb[0].mxu0 %v3113
      %v3252 = vpop.f32.mrb[0].mxu0
      %v3253 = vadd.f32 0.0, %v3252
      %v3254 = vpop.f32.mrb[0].mxu0
      %v3255 = vpop.f32.mrb[0].mxu0
      %v3256 = vadd.f32 0.0, %v3255
      %v3257 = vpop.f32.mrb[0].mxu0
      %3258 = vmatprep.mubr.bf16.mxu0 0
      %3259 = vmatmul.mubr.bf16.gmra.mrb[0].mxu0 %v3116
      %v3260 = vpop.f32.mrb[0].mxu0
      %v3261 = vadd.f32 0.0, %v3260
      %v3262 = vpop.f32.mrb[0].mxu0
      %v3263 = vpop.f32.mrb[0].mxu0
      %v3264 = vadd.f32 0.0, %v3263
      %v3265 = vpop.f32.mrb[0].mxu0
      %3266 = vmatprep.mubr.bf16.mxu0 0
      %3267 = vmatmul.mubr.bf16.gmra.mrb[0].mxu0 %v3119
      %v3268 = vpop.f32.mrb[0].mxu0
      %v3269 = vadd.f32 0.0, %v3268
      %v3270 = vpop.f32.mrb[0].mxu0
      %v3271 = vpop.f32.mrb[0].mxu0
      %v3272 = vadd.f32 0.0, %v3271
      %v3273 = vpop.f32.mrb[0].mxu0
      %3274 = vmatprep.mubr.bf16.mxu0 0
      %3275 = vmatmul.mubr.bf16.gmra.mrb[0].mxu0 %v3122
      %v3276 = vpop.f32.mrb[0].mxu0
      %v3277 = vadd.f32 0.0, %v3276
      %v3278 = vpop.f32.mrb[0].mxu0
      %v3279 = vpop.f32.mrb[0].mxu0
      %v3280 = vadd.f32 0.0, %v3279
      %v3281 = vpop.f32.mrb[0].mxu0
      %3282 = vmatprep.mubr.bf16.mxu0 0
      %3283 = vmatmul.mubr.bf16.gmra.mrb[0].mxu0 %v3125
      %v3284 = vpop.f32.mrb[0].mxu0
      %v3285 = vadd.f32 0.0, %v3284
      %v3286 = vpop.f32.mrb[0].mxu0
      %v3287 = vpop.f32.mrb[0].mxu0
      %v3288 = vadd.f32 0.0, %v3287
      %v3289 = vpop.f32.mrb[0].mxu0
      %3290 = vdwg.mxu0
      %v3291 = vadd.f32 %v2821, %v3165
      %v3292 = vadd.f32 %v2822, %v3168
      %v3293 = vadd.f32 %v2823, %v3173
      %v3294 = vadd.f32 %v2824, %v3176
      %v3295 = vadd.f32 %v2825, %v3181
      %v3296 = vadd.f32 %v2826, %v3184
      %v3297 = vadd.f32 %v2827, %v3189
      %v3298 = vadd.f32 %v2828, %v3192
      %v3299 = vadd.f32 %v2829, %v3197
      %v3300 = vadd.f32 %v2830, %v3200
      %v3301 = vadd.f32 %v2831, %v3205
      %v3302 = vadd.f32 %v2832, %v3208
      %v3303 = vadd.f32 %v2833, %v3213
      %v3304 = vadd.f32 %v2834, %v3216
      %v3305 = vadd.f32 %v2835, %v3221
      %v3306 = vadd.f32 %v2836, %v3224
      %v3307 = vadd.f32 %v2837, %v3229
      %v3308 = vadd.f32 %v2838, %v3232
      %v3309 = vadd.f32 %v2839, %v3237
      %v3310 = vadd.f32 %v2840, %v3240
      %v3311 = vadd.f32 %v2841, %v3245
      %v3312 = vadd.f32 %v2842, %v3248
      %v3313 = vadd.f32 %v2843, %v3253
      %v3314 = vadd.f32 %v2844, %v3256
      %v3315 = vadd.f32 %v2845, %v3261
      %v3316 = vadd.f32 %v2846, %v3264
      %v3317 = vadd.f32 %v2847, %v3269
      %v3318 = vadd.f32 %v2848, %v3272
      %v3319 = vadd.f32 %v2849, %v3277
      %v3320 = vadd.f32 %v2850, %v3280
      %v3321 = vadd.f32 %v2851, %v3285
      %v3322 = vadd.f32 %v2852, %v3288
      %s3323 = scalar_lea.vmem %s304, 24
      %v3324 = vld [vmem:[%s3323] sm:$0xf]
      %v3325 = vld [vmem:[%s3323 + $0x4] sm:$0xf]
      %v3326 = vld [vmem:[%s3323 + $0xc] sm:$0xf]
      %v3327 = vld [vmem:[%s3323 + $0x10] sm:$0xf]
      %v3328 = vld [vmem:[%s3323 + $0x18] sm:$0xf]
      %v3329 = vld [vmem:[%s3323 + $0x1c] sm:$0xf]
      %v3330 = vld [vmem:[%s3323 + $0x24] sm:$0xf]
      %v3331 = vld [vmem:[%s3323 + $0x28] sm:$0xf]
      %v3332 = vld [vmem:[%s3323 + $0x30] sm:$0xf]
      %v3333 = vld [vmem:[%s3323 + $0x34] sm:$0xf]
      %v3334 = vld [vmem:[%s3323 + $0x3c] sm:$0xf]
      %v3335 = vld [vmem:[%s3323 + $0x40] sm:$0xf]
      %v3336 = vld [vmem:[%s3323 + $0x48] sm:$0xf]
      %v3337 = vld [vmem:[%s3323 + $0x4c] sm:$0xf]
      %v3338 = vld [vmem:[%s3323 + $0x54] sm:$0xf]
      %v3339 = vld [vmem:[%s3323 + $0x58] sm:$0xf]
      %v3340 = vld [vmem:[%s3323 + $0x60] sm:$0xf]
      %v3341 = vld [vmem:[%s3323 + $0x64] sm:$0xf]
      %v3342 = vld [vmem:[%s3323 + $0x6c] sm:$0xf]
      %v3343 = vld [vmem:[%s3323 + $0x70] sm:$0xf]
      %v3344 = vld [vmem:[%s3323 + $0x78] sm:$0xf]
      %v3345 = vld [vmem:[%s3323 + $0x7c] sm:$0xf]
      %v3346 = vld [vmem:[%s3323 + $0x84] sm:$0xf]
      %v3347 = vld [vmem:[%s3323 + $0x88] sm:$0xf]
      %v3348 = vld [vmem:[%s3323 + $0x90] sm:$0xf]
      %v3349 = vld [vmem:[%s3323 + $0x94] sm:$0xf]
      %v3350 = vld [vmem:[%s3323 + $0x9c] sm:$0xf]
      %v3351 = vld [vmem:[%s3323 + $0xa0] sm:$0xf]
      %v3352 = vld [vmem:[%s3323 + $0xa8] sm:$0xf]
      %v3353 = vld [vmem:[%s3323 + $0xac] sm:$0xf]
      %v3354 = vld [vmem:[%s3323 + $0xb4] sm:$0xf]
      %v3355 = vld [vmem:[%s3323 + $0xb8] sm:$0xf]
      %s3356 = scalar_lea.vmem %s1, 12
      %v3357 = vld [vmem:[%s3356] sm:$0x3]
      %v3390 = vunpack.c.l.b16 %v3324
      %v3391 = vunpack.c.l.b16 %v3325
      %v3392 = vunpack.c.l.b16 %v3326
      %v3393 = vunpack.c.l.b16 %v3327
      %v3394 = vunpack.c.l.b16 %v3328
      %v3395 = vunpack.c.l.b16 %v3329
      %v3396 = vunpack.c.l.b16 %v3330
      %v3397 = vunpack.c.l.b16 %v3331
      %v3398 = vunpack.c.l.b16 %v3332
      %v3399 = vunpack.c.l.b16 %v3333
      %v3400 = vunpack.c.l.b16 %v3334
      %v3401 = vunpack.c.l.b16 %v3335
      %v3402 = vunpack.c.l.b16 %v3336
      %v3403 = vunpack.c.l.b16 %v3337
      %v3404 = vunpack.c.l.b16 %v3338
      %v3405 = vunpack.c.l.b16 %v3339
      %v3406 = vunpack.c.l.b16 %v3340
      %v3407 = vunpack.c.l.b16 %v3341
      %v3408 = vunpack.c.l.b16 %v3342
      %v3409 = vunpack.c.l.b16 %v3343
      %v3410 = vunpack.c.l.b16 %v3344
      %v3411 = vunpack.c.l.b16 %v3345
      %v3412 = vunpack.c.l.b16 %v3346
      %v3413 = vunpack.c.l.b16 %v3347
      %v3414 = vunpack.c.l.b16 %v3348
      %v3415 = vunpack.c.l.b16 %v3349
      %v3416 = vunpack.c.l.b16 %v3350
      %v3417 = vunpack.c.l.b16 %v3351
      %v3418 = vunpack.c.l.b16 %v3352
      %v3419 = vunpack.c.l.b16 %v3353
      %v3420 = vunpack.c.l.b16 %v3354
      %v3421 = vunpack.c.l.b16 %v3355
      %v3422 = vpack.c.b16 %v3391, %v3390
      %v3423 = vpack.c.b16 %v3393, %v3392
      %v3424 = vpack.c.b16 %v3395, %v3394
      %v3425 = vpack.c.b16 %v3397, %v3396
      %v3426 = vpack.c.b16 %v3399, %v3398
      %v3427 = vpack.c.b16 %v3401, %v3400
      %v3428 = vpack.c.b16 %v3403, %v3402
      %v3429 = vpack.c.b16 %v3405, %v3404
      %v3430 = vpack.c.b16 %v3407, %v3406
      %v3431 = vpack.c.b16 %v3409, %v3408
      %v3432 = vpack.c.b16 %v3411, %v3410
      %v3433 = vpack.c.b16 %v3413, %v3412
      %v3434 = vpack.c.b16 %v3415, %v3414
      %v3435 = vpack.c.b16 %v3417, %v3416
      %v3436 = vpack.c.b16 %v3419, %v3418
      %v3437 = vpack.c.b16 %v3421, %v3420
      %v3439 = vsel %vm805, %v3422, 0
      %v3442 = vsel %vm805, %v3423, 0
      %v3445 = vsel %vm805, %v3424, 0
      %v3448 = vsel %vm805, %v3425, 0
      %v3451 = vsel %vm805, %v3426, 0
      %v3454 = vsel %vm805, %v3427, 0
      %v3457 = vsel %vm805, %v3428, 0
      %v3460 = vsel %vm805, %v3429, 0
      %v3463 = vsel %vm805, %v3430, 0
      %v3466 = vsel %vm805, %v3431, 0
      %v3469 = vsel %vm805, %v3432, 0
      %v3472 = vsel %vm805, %v3433, 0
      %v3475 = vsel %vm805, %v3434, 0
      %v3478 = vsel %vm805, %v3435, 0
      %v3481 = vsel %vm805, %v3436, 0
      %v3484 = vsel %vm805, %v3437, 0
      %v3487 = vsel %vm854, %v3357, 0
      %3489 = vmatprep.subr.bf16.mxu0 0
      %3490 = vmatpush1.bf16.msra.mxu0 %v3487
      %3491 = vmatprep.subr.bf16.mxu0 0
      %3492 = vmatpush1.bf16.msra.mxu0 0
      %3493 = vmatprep.subr.bf16.mxu0 0
      %3494 = vmatpush1.bf16.msra.mxu0 0
      %3495 = vmatprep.subr.bf16.mxu0 0
      %3496 = vmatpush1.bf16.msra.mxu0 0
      %3497 = vmatprep.subr.bf16.mxu0 0
      %3498 = vmatpush1.bf16.msra.mxu0 0
      %3499 = vmatprep.subr.bf16.mxu0 0
      %3500 = vmatpush1.bf16.msra.mxu0 0
      %3501 = vmatprep.subr.bf16.mxu0 0
      %3502 = vmatpush1.bf16.msra.mxu0 0
      %3503 = vmatprep.subr.bf16.mxu0 0
      %3504 = vmatpush1.bf16.msra.mxu0 0
      %3505 = vmatprep.subr.bf16.mxu0 0
      %3506 = vmatpush1.bf16.msra.mxu0 0
      %3507 = vmatprep.subr.bf16.mxu0 0
      %3508 = vmatpush1.bf16.msra.mxu0 0
      %3509 = vmatprep.subr.bf16.mxu0 0
      %3510 = vmatpush1.bf16.msra.mxu0 0
      %3511 = vmatprep.subr.bf16.mxu0 0
      %3512 = vmatpush1.bf16.msra.mxu0 0
      %3513 = vmatprep.subr.bf16.mxu0 0
      %3514 = vmatpush1.bf16.msra.mxu0 0
      %3515 = vmatprep.subr.bf16.mxu0 0
      %3516 = vmatpush1.bf16.msra.mxu0 0
      %3517 = vmatprep.subr.bf16.mxu0 0
      %3518 = vmatpush1.bf16.msra.mxu0 0
      %3519 = vmatprep.subr.bf16.mxu0 0
      %3520 = vmatpush1.bf16.msra.mxu0 0
      %3521 = vmatprep.mubr.bf16.mxu0 0
      %3522 = vmatmul.mubr.bf16.gmra.mrb[0].mxu0 %v3439
      %v3523 = vpop.f32.mrb[0].mxu0
      %v3524 = vadd.f32 0.0, %v3523
      %v3525 = vpop.f32.mrb[0].mxu0
      %v3526 = vpop.f32.mrb[0].mxu0
      %v3527 = vadd.f32 0.0, %v3526
      %v3528 = vpop.f32.mrb[0].mxu0
      %3529 = vmatprep.mubr.bf16.mxu0 0
      %3530 = vmatmul.mubr.bf16.gmra.mrb[0].mxu0 %v3442
      %v3531 = vpop.f32.mrb[0].mxu0
      %v3532 = vadd.f32 0.0, %v3531
      %v3533 = vpop.f32.mrb[0].mxu0
      %v3534 = vpop.f32.mrb[0].mxu0
      %v3535 = vadd.f32 0.0, %v3534
      %v3536 = vpop.f32.mrb[0].mxu0
      %3537 = vmatprep.mubr.bf16.mxu0 0
      %3538 = vmatmul.mubr.bf16.gmra.mrb[0].mxu0 %v3445
      %v3539 = vpop.f32.mrb[0].mxu0
      %v3540 = vadd.f32 0.0, %v3539
      %v3541 = vpop.f32.mrb[0].mxu0
      %v3542 = vpop.f32.mrb[0].mxu0
      %v3543 = vadd.f32 0.0, %v3542
      %v3544 = vpop.f32.mrb[0].mxu0
      %3545 = vmatprep.mubr.bf16.mxu0 0
      %3546 = vmatmul.mubr.bf16.gmra.mrb[0].mxu0 %v3448
      %v3547 = vpop.f32.mrb[0].mxu0
      %v3548 = vadd.f32 0.0, %v3547
      %v3549 = vpop.f32.mrb[0].mxu0
      %v3550 = vpop.f32.mrb[0].mxu0
      %v3551 = vadd.f32 0.0, %v3550
      %v3552 = vpop.f32.mrb[0].mxu0
      %3553 = vmatprep.mubr.bf16.mxu0 0
      %3554 = vmatmul.mubr.bf16.gmra.mrb[0].mxu0 %v3451
      %v3555 = vpop.f32.mrb[0].mxu0
      %v3556 = vadd.f32 0.0, %v3555
      %v3557 = vpop.f32.mrb[0].mxu0
      %v3558 = vpop.f32.mrb[0].mxu0
      %v3559 = vadd.f32 0.0, %v3558
      %v3560 = vpop.f32.mrb[0].mxu0
      %3561 = vmatprep.mubr.bf16.mxu0 0
      %3562 = vmatmul.mubr.bf16.gmra.mrb[0].mxu0 %v3454
      %v3563 = vpop.f32.mrb[0].mxu0
      %v3564 = vadd.f32 0.0, %v3563
      %v3565 = vpop.f32.mrb[0].mxu0
      %v3566 = vpop.f32.mrb[0].mxu0
      %v3567 = vadd.f32 0.0, %v3566
      %v3568 = vpop.f32.mrb[0].mxu0
      %3569 = vmatprep.mubr.bf16.mxu0 0
      %3570 = vmatmul.mubr.bf16.gmra.mrb[0].mxu0 %v3457
      %v3571 = vpop.f32.mrb[0].mxu0
      %v3572 = vadd.f32 0.0, %v3571
      %v3573 = vpop.f32.mrb[0].mxu0
      %v3574 = vpop.f32.mrb[0].mxu0
      %v3575 = vadd.f32 0.0, %v3574
      %v3576 = vpop.f32.mrb[0].mxu0
      %3577 = vmatprep.mubr.bf16.mxu0 0
      %3578 = vmatmul.mubr.bf16.gmra.mrb[0].mxu0 %v3460
      %v3579 = vpop.f32.mrb[0].mxu0
      %v3580 = vadd.f32 0.0, %v3579
      %v3581 = vpop.f32.mrb[0].mxu0
      %v3582 = vpop.f32.mrb[0].mxu0
      %v3583 = vadd.f32 0.0, %v3582
      %v3584 = vpop.f32.mrb[0].mxu0
      %3585 = vmatprep.mubr.bf16.mxu0 0
      %3586 = vmatmul.mubr.bf16.gmra.mrb[0].mxu0 %v3463
      %v3587 = vpop.f32.mrb[0].mxu0
      %v3588 = vadd.f32 0.0, %v3587
      %v3589 = vpop.f32.mrb[0].mxu0
      %v3590 = vpop.f32.mrb[0].mxu0
      %v3591 = vadd.f32 0.0, %v3590
      %v3592 = vpop.f32.mrb[0].mxu0
      %3593 = vmatprep.mubr.bf16.mxu0 0
      %3594 = vmatmul.mubr.bf16.gmra.mrb[0].mxu0 %v3466
      %v3595 = vpop.f32.mrb[0].mxu0
      %v3596 = vadd.f32 0.0, %v3595
      %v3597 = vpop.f32.mrb[0].mxu0
      %v3598 = vpop.f32.mrb[0].mxu0
      %v3599 = vadd.f32 0.0, %v3598
      %v3600 = vpop.f32.mrb[0].mxu0
      %3601 = vmatprep.mubr.bf16.mxu0 0
      %3602 = vmatmul.mubr.bf16.gmra.mrb[0].mxu0 %v3469
      %v3603 = vpop.f32.mrb[0].mxu0
      %v3604 = vadd.f32 0.0, %v3603
      %v3605 = vpop.f32.mrb[0].mxu0
      %v3606 = vpop.f32.mrb[0].mxu0
      %v3607 = vadd.f32 0.0, %v3606
      %v3608 = vpop.f32.mrb[0].mxu0
      %3609 = vmatprep.mubr.bf16.mxu0 0
      %3610 = vmatmul.mubr.bf16.gmra.mrb[0].mxu0 %v3472
      %v3611 = vpop.f32.mrb[0].mxu0
      %v3612 = vadd.f32 0.0, %v3611
      %v3613 = vpop.f32.mrb[0].mxu0
      %v3614 = vpop.f32.mrb[0].mxu0
      %v3615 = vadd.f32 0.0, %v3614
      %v3616 = vpop.f32.mrb[0].mxu0
      %3617 = vmatprep.mubr.bf16.mxu0 0
      %3618 = vmatmul.mubr.bf16.gmra.mrb[0].mxu0 %v3475
      %v3619 = vpop.f32.mrb[0].mxu0
      %v3620 = vadd.f32 0.0, %v3619
      %v3621 = vpop.f32.mrb[0].mxu0
      %v3622 = vpop.f32.mrb[0].mxu0
      %v3623 = vadd.f32 0.0, %v3622
      %v3624 = vpop.f32.mrb[0].mxu0
      %3625 = vmatprep.mubr.bf16.mxu0 0
      %3626 = vmatmul.mubr.bf16.gmra.mrb[0].mxu0 %v3478
      %v3627 = vpop.f32.mrb[0].mxu0
      %v3628 = vadd.f32 0.0, %v3627
      %v3629 = vpop.f32.mrb[0].mxu0
      %v3630 = vpop.f32.mrb[0].mxu0
      %v3631 = vadd.f32 0.0, %v3630
      %v3632 = vpop.f32.mrb[0].mxu0
      %3633 = vmatprep.mubr.bf16.mxu0 0
      %3634 = vmatmul.mubr.bf16.gmra.mrb[0].mxu0 %v3481
      %v3635 = vpop.f32.mrb[0].mxu0
      %v3636 = vadd.f32 0.0, %v3635
      %v3637 = vpop.f32.mrb[0].mxu0
      %v3638 = vpop.f32.mrb[0].mxu0
      %v3639 = vadd.f32 0.0, %v3638
      %v3640 = vpop.f32.mrb[0].mxu0
      %3641 = vmatprep.mubr.bf16.mxu0 0
      %3642 = vmatmul.mubr.bf16.gmra.mrb[0].mxu0 %v3484
      %v3643 = vpop.f32.mrb[0].mxu0
      %v3644 = vadd.f32 0.0, %v3643
      %v3645 = vpop.f32.mrb[0].mxu0
      %v3646 = vpop.f32.mrb[0].mxu0
      %v3647 = vadd.f32 0.0, %v3646
      %v3648 = vpop.f32.mrb[0].mxu0
      %3649 = vdwg.mxu0
      %v3650 = vadd.f32 %v3291, %v3524
      %v3651 = vadd.f32 %v3292, %v3527
      %v3652 = vadd.f32 %v3293, %v3532
      %v3653 = vadd.f32 %v3294, %v3535
      %v3654 = vadd.f32 %v3295, %v3540
      %v3655 = vadd.f32 %v3296, %v3543
      %v3656 = vadd.f32 %v3297, %v3548
      %v3657 = vadd.f32 %v3298, %v3551
      %v3658 = vadd.f32 %v3299, %v3556
      %v3659 = vadd.f32 %v3300, %v3559
      %v3660 = vadd.f32 %v3301, %v3564
      %v3661 = vadd.f32 %v3302, %v3567
      %v3662 = vadd.f32 %v3303, %v3572
      %v3663 = vadd.f32 %v3304, %v3575
      %v3664 = vadd.f32 %v3305, %v3580
      %v3665 = vadd.f32 %v3306, %v3583
      %v3666 = vadd.f32 %v3307, %v3588
      %v3667 = vadd.f32 %v3308, %v3591
      %v3668 = vadd.f32 %v3309, %v3596
      %v3669 = vadd.f32 %v3310, %v3599
      %v3670 = vadd.f32 %v3311, %v3604
      %v3671 = vadd.f32 %v3312, %v3607
      %v3672 = vadd.f32 %v3313, %v3612
      %v3673 = vadd.f32 %v3314, %v3615
      %v3674 = vadd.f32 %v3315, %v3620
      %v3675 = vadd.f32 %v3316, %v3623
      %v3676 = vadd.f32 %v3317, %v3628
      %v3677 = vadd.f32 %v3318, %v3631
      %v3678 = vadd.f32 %v3319, %v3636
      %v3679 = vadd.f32 %v3320, %v3639
      %v3680 = vadd.f32 %v3321, %v3644
      %v3681 = vadd.f32 %v3322, %v3647
      %v3682 = vld [vmem:[%s3323] sm:$0xf]
      %v3683 = vld [vmem:[%s3323 + $0x4] sm:$0xf]
      %v3684 = vld [vmem:[%s3323 + $0x8] sm:$0x1]
      %v3685 = vld [vmem:[%s3323 + $0xc] sm:$0xf]
      %v3686 = vld [vmem:[%s3323 + $0x10] sm:$0xf]
      %v3687 = vld [vmem:[%s3323 + $0x14] sm:$0x1]
      %v3688 = vld [vmem:[%s3323 + $0x18] sm:$0xf]
      %v3689 = vld [vmem:[%s3323 + $0x1c] sm:$0xf]
      %v3690 = vld [vmem:[%s3323 + $0x20] sm:$0x1]
      %v3691 = vld [vmem:[%s3323 + $0x24] sm:$0xf]
      %v3692 = vld [vmem:[%s3323 + $0x28] sm:$0xf]
      %v3693 = vld [vmem:[%s3323 + $0x2c] sm:$0x1]
      %v3694 = vld [vmem:[%s3323 + $0x30] sm:$0xf]
      %v3695 = vld [vmem:[%s3323 + $0x34] sm:$0xf]
      %v3696 = vld [vmem:[%s3323 + $0x38] sm:$0x1]
      %v3697 = vld [vmem:[%s3323 + $0x3c] sm:$0xf]
      %v3698 = vld [vmem:[%s3323 + $0x40] sm:$0xf]
      %v3699 = vld [vmem:[%s3323 + $0x44] sm:$0x1]
      %v3700 = vld [vmem:[%s3323 + $0x48] sm:$0xf]
      %v3701 = vld [vmem:[%s3323 + $0x4c] sm:$0xf]
      %v3702 = vld [vmem:[%s3323 + $0x50] sm:$0x1]
      %v3703 = vld [vmem:[%s3323 + $0x54] sm:$0xf]
      %v3704 = vld [vmem:[%s3323 + $0x58] sm:$0xf]
      %v3705 = vld [vmem:[%s3323 + $0x5c] sm:$0x1]
      %v3706 = vld [vmem:[%s3323 + $0x60] sm:$0xf]
      %v3707 = vld [vmem:[%s3323 + $0x64] sm:$0xf]
      %v3708 = vld [vmem:[%s3323 + $0x68] sm:$0x1]
      %v3709 = vld [vmem:[%s3323 + $0x6c] sm:$0xf]
      %v3710 = vld [vmem:[%s3323 + $0x70] sm:$0xf]
      %v3711 = vld [vmem:[%s3323 + $0x74] sm:$0x1]
      %v3712 = vld [vmem:[%s3323 + $0x78] sm:$0xf]
      %v3713 = vld [vmem:[%s3323 + $0x7c] sm:$0xf]
      %v3714 = vld [vmem:[%s3323 + $0x80] sm:$0x1]
      %v3715 = vld [vmem:[%s3323 + $0x84] sm:$0xf]
      %v3716 = vld [vmem:[%s3323 + $0x88] sm:$0xf]
      %v3717 = vld [vmem:[%s3323 + $0x8c] sm:$0x1]
      %v3718 = vld [vmem:[%s3323 + $0x90] sm:$0xf]
      %v3719 = vld [vmem:[%s3323 + $0x94] sm:$0xf]
      %v3720 = vld [vmem:[%s3323 + $0x98] sm:$0x1]
      %v3721 = vld [vmem:[%s3323 + $0x9c] sm:$0xf]
      %v3722 = vld [vmem:[%s3323 + $0xa0] sm:$0xf]
      %v3723 = vld [vmem:[%s3323 + $0xa4] sm:$0x1]
      %v3724 = vld [vmem:[%s3323 + $0xa8] sm:$0xf]
      %v3725 = vld [vmem:[%s3323 + $0xac] sm:$0xf]
      %v3726 = vld [vmem:[%s3323 + $0xb0] sm:$0x1]
      %v3727 = vld [vmem:[%s3323 + $0xb4] sm:$0xf]
      %v3728 = vld [vmem:[%s3323 + $0xb8] sm:$0xf]
      %v3729 = vld [vmem:[%s3323 + $0xbc] sm:$0x1]
      %v3731 = vshrl.u32 %v3682, 16
      %v3733 = vrot.slane %v3731, 4
      %v3734 = vshll.u32 %v3682, 16
      %v3736 = vrot.slane %v3734, 5
      %v3737 = vor.u32 %v3733, %v3736
      %v3738 = vrot.slane %v3737, 4
      %v3740 = vshll.u32 %v3683, 16
      %v3742 = vrot.slane %v3740, 5
      %v3743 = vsel %vm370, %v3738, %v3742
      %v3744 = vshrl.u32 %v3683, 16
      %v3746 = vrot.slane %v3744, 4
      %v3747 = vor.u32 %v3746, %v3742
      %v3748 = vrot.slane %v3747, 4
      %v3750 = vshll.u32 %v3684, 16
      %v3752 = vrot.slane %v3750, 5
      %v3753 = vsel %vm370, %v3748, %v3752
      %v3755 = vshrl.u32 %v3685, 16
      %v3757 = vrot.slane %v3755, 4
      %v3758 = vshll.u32 %v3685, 16
      %v3760 = vrot.slane %v3758, 5
      %v3761 = vor.u32 %v3757, %v3760
      %v3762 = vrot.slane %v3761, 4
      %v3764 = vshll.u32 %v3686, 16
      %v3766 = vrot.slane %v3764, 5
      %v3767 = vsel %vm370, %v3762, %v3766
      %v3768 = vshrl.u32 %v3686, 16
      %v3770 = vrot.slane %v3768, 4
      %v3771 = vor.u32 %v3770, %v3766
      %v3772 = vrot.slane %v3771, 4
      %v3774 = vshll.u32 %v3687, 16
      %v3776 = vrot.slane %v3774, 5
      %v3777 = vsel %vm370, %v3772, %v3776
      %v3779 = vshrl.u32 %v3688, 16
      %v3781 = vrot.slane %v3779, 4
      %v3782 = vshll.u32 %v3688, 16
      %v3784 = vrot.slane %v3782, 5
      %v3785 = vor.u32 %v3781, %v3784
      %v3786 = vrot.slane %v3785, 4
      %v3788 = vshll.u32 %v3689, 16
      %v3790 = vrot.slane %v3788, 5
      %v3791 = vsel %vm370, %v3786, %v3790
      %v3792 = vshrl.u32 %v3689, 16
      %v3794 = vrot.slane %v3792, 4
      %v3795 = vor.u32 %v3794, %v3790
      %v3796 = vrot.slane %v3795, 4
      %v3798 = vshll.u32 %v3690, 16
      %v3800 = vrot.slane %v3798, 5
      %v3801 = vsel %vm370, %v3796, %v3800
      %v3803 = vshrl.u32 %v3691, 16
      %v3805 = vrot.slane %v3803, 4
      %v3806 = vshll.u32 %v3691, 16
      %v3808 = vrot.slane %v3806, 5
      %v3809 = vor.u32 %v3805, %v3808
      %v3810 = vrot.slane %v3809, 4
      %v3812 = vshll.u32 %v3692, 16
      %v3814 = vrot.slane %v3812, 5
      %v3815 = vsel %vm370, %v3810, %v3814
      %v3816 = vshrl.u32 %v3692, 16
      %v3818 = vrot.slane %v3816, 4
      %v3819 = vor.u32 %v3818, %v3814
      %v3820 = vrot.slane %v3819, 4
      %v3822 = vshll.u32 %v3693, 16
      %v3824 = vrot.slane %v3822, 5
      %v3825 = vsel %vm370, %v3820, %v3824
      %v3827 = vshrl.u32 %v3694, 16
      %v3829 = vrot.slane %v3827, 4
      %v3830 = vshll.u32 %v3694, 16
      %v3832 = vrot.slane %v3830, 5
      %v3833 = vor.u32 %v3829, %v3832
      %v3834 = vrot.slane %v3833, 4
      %v3836 = vshll.u32 %v3695, 16
      %v3838 = vrot.slane %v3836, 5
      %v3839 = vsel %vm370, %v3834, %v3838
      %v3840 = vshrl.u32 %v3695, 16
      %v3842 = vrot.slane %v3840, 4
      %v3843 = vor.u32 %v3842, %v3838
      %v3844 = vrot.slane %v3843, 4
      %v3846 = vshll.u32 %v3696, 16
      %v3848 = vrot.slane %v3846, 5
      %v3849 = vsel %vm370, %v3844, %v3848
      %v3851 = vshrl.u32 %v3697, 16
      %v3853 = vrot.slane %v3851, 4
      %v3854 = vshll.u32 %v3697, 16
      %v3856 = vrot.slane %v3854, 5
      %v3857 = vor.u32 %v3853, %v3856
      %v3858 = vrot.slane %v3857, 4
      %v3860 = vshll.u32 %v3698, 16
      %v3862 = vrot.slane %v3860, 5
      %v3863 = vsel %vm370, %v3858, %v3862
      %v3864 = vshrl.u32 %v3698, 16
      %v3866 = vrot.slane %v3864, 4
      %v3867 = vor.u32 %v3866, %v3862
      %v3868 = vrot.slane %v3867, 4
      %v3870 = vshll.u32 %v3699, 16
      %v3872 = vrot.slane %v3870, 5
      %v3873 = vsel %vm370, %v3868, %v3872
      %v3875 = vshrl.u32 %v3700, 16
      %v3877 = vrot.slane %v3875, 4
      %v3878 = vshll.u32 %v3700, 16
      %v3880 = vrot.slane %v3878, 5
      %v3881 = vor.u32 %v3877, %v3880
      %v3882 = vrot.slane %v3881, 4
      %v3884 = vshll.u32 %v3701, 16
      %v3886 = vrot.slane %v3884, 5
      %v3887 = vsel %vm370, %v3882, %v3886
      %v3888 = vshrl.u32 %v3701, 16
      %v3890 = vrot.slane %v3888, 4
      %v3891 = vor.u32 %v3890, %v3886
      %v3892 = vrot.slane %v3891, 4
      %v3894 = vshll.u32 %v3702, 16
      %v3896 = vrot.slane %v3894, 5
      %v3897 = vsel %vm370, %v3892, %v3896
      %v3899 = vshrl.u32 %v3703, 16
      %v3901 = vrot.slane %v3899, 4
      %v3902 = vshll.u32 %v3703, 16
      %v3904 = vrot.slane %v3902, 5
      %v3905 = vor.u32 %v3901, %v3904
      %v3906 = vrot.slane %v3905, 4
      %v3908 = vshll.u32 %v3704, 16
      %v3910 = vrot.slane %v3908, 5
      %v3911 = vsel %vm370, %v3906, %v3910
      %v3912 = vshrl.u32 %v3704, 16
      %v3914 = vrot.slane %v3912, 4
      %v3915 = vor.u32 %v3914, %v3910
      %v3916 = vrot.slane %v3915, 4
      %v3918 = vshll.u32 %v3705, 16
      %v3920 = vrot.slane %v3918, 5
      %v3921 = vsel %vm370, %v3916, %v3920
      %v3923 = vshrl.u32 %v3706, 16
      %v3925 = vrot.slane %v3923, 4
      %v3926 = vshll.u32 %v3706, 16
      %v3928 = vrot.slane %v3926, 5
      %v3929 = vor.u32 %v3925, %v3928
      %v3930 = vrot.slane %v3929, 4
      %v3932 = vshll.u32 %v3707, 16
      %v3934 = vrot.slane %v3932, 5
      %v3935 = vsel %vm370, %v3930, %v3934
      %v3936 = vshrl.u32 %v3707, 16
      %v3938 = vrot.slane %v3936, 4
      %v3939 = vor.u32 %v3938, %v3934
      %v3940 = vrot.slane %v3939, 4
      %v3942 = vshll.u32 %v3708, 16
      %v3944 = vrot.slane %v3942, 5
      %v3945 = vsel %vm370, %v3940, %v3944
      %v3947 = vshrl.u32 %v3709, 16
      %v3949 = vrot.slane %v3947, 4
      %v3950 = vshll.u32 %v3709, 16
      %v3952 = vrot.slane %v3950, 5
      %v3953 = vor.u32 %v3949, %v3952
      %v3954 = vrot.slane %v3953, 4
      %v3956 = vshll.u32 %v3710, 16
      %v3958 = vrot.slane %v3956, 5
      %v3959 = vsel %vm370, %v3954, %v3958
      %v3960 = vshrl.u32 %v3710, 16
      %v3962 = vrot.slane %v3960, 4
      %v3963 = vor.u32 %v3962, %v3958
      %v3964 = vrot.slane %v3963, 4
      %v3966 = vshll.u32 %v3711, 16
      %v3968 = vrot.slane %v3966, 5
      %v3969 = vsel %vm370, %v3964, %v3968
      %v3971 = vshrl.u32 %v3712, 16
      %v3973 = vrot.slane %v3971, 4
      %v3974 = vshll.u32 %v3712, 16
      %v3976 = vrot.slane %v3974, 5
      %v3977 = vor.u32 %v3973, %v3976
      %v3978 = vrot.slane %v3977, 4
      %v3980 = vshll.u32 %v3713, 16
      %v3982 = vrot.slane %v3980, 5
      %v3983 = vsel %vm370, %v3978, %v3982
      %v3984 = vshrl.u32 %v3713, 16
      %v3986 = vrot.slane %v3984, 4
      %v3987 = vor.u32 %v3986, %v3982
      %v3988 = vrot.slane %v3987, 4
      %v3990 = vshll.u32 %v3714, 16
      %v3992 = vrot.slane %v3990, 5
      %v3993 = vsel %vm370, %v3988, %v3992
      %v3995 = vshrl.u32 %v3715, 16
      %v3997 = vrot.slane %v3995, 4
      %v3998 = vshll.u32 %v3715, 16
      %v4000 = vrot.slane %v3998, 5
      %v4001 = vor.u32 %v3997, %v4000
      %v4002 = vrot.slane %v4001, 4
      %v4004 = vshll.u32 %v3716, 16
      %v4006 = vrot.slane %v4004, 5
      %v4007 = vsel %vm370, %v4002, %v4006
      %v4008 = vshrl.u32 %v3716, 16
      %v4010 = vrot.slane %v4008, 4
      %v4011 = vor.u32 %v4010, %v4006
      %v4012 = vrot.slane %v4011, 4
      %v4014 = vshll.u32 %v3717, 16
      %v4016 = vrot.slane %v4014, 5
      %v4017 = vsel %vm370, %v4012, %v4016
      %v4019 = vshrl.u32 %v3718, 16
      %v4021 = vrot.slane %v4019, 4
      %v4022 = vshll.u32 %v3718, 16
      %v4024 = vrot.slane %v4022, 5
      %v4025 = vor.u32 %v4021, %v4024
      %v4026 = vrot.slane %v4025, 4
      %v4028 = vshll.u32 %v3719, 16
      %v4030 = vrot.slane %v4028, 5
      %v4031 = vsel %vm370, %v4026, %v4030
      %v4032 = vshrl.u32 %v3719, 16
      %v4034 = vrot.slane %v4032, 4
      %v4035 = vor.u32 %v4034, %v4030
      %v4036 = vrot.slane %v4035, 4
      %v4038 = vshll.u32 %v3720, 16
      %v4040 = vrot.slane %v4038, 5
      %v4041 = vsel %vm370, %v4036, %v4040
      %v4043 = vshrl.u32 %v3721, 16
      %v4045 = vrot.slane %v4043, 4
      %v4046 = vshll.u32 %v3721, 16
      %v4048 = vrot.slane %v4046, 5
      %v4049 = vor.u32 %v4045, %v4048
      %v4050 = vrot.slane %v4049, 4
      %v4052 = vshll.u32 %v3722, 16
      %v4054 = vrot.slane %v4052, 5
      %v4055 = vsel %vm370, %v4050, %v4054
      %v4056 = vshrl.u32 %v3722, 16
      %v4058 = vrot.slane %v4056, 4
      %v4059 = vor.u32 %v4058, %v4054
      %v4060 = vrot.slane %v4059, 4
      %v4062 = vshll.u32 %v3723, 16
      %v4064 = vrot.slane %v4062, 5
      %v4065 = vsel %vm370, %v4060, %v4064
      %v4067 = vshrl.u32 %v3724, 16
      %v4069 = vrot.slane %v4067, 4
      %v4070 = vshll.u32 %v3724, 16
      %v4072 = vrot.slane %v4070, 5
      %v4073 = vor.u32 %v4069, %v4072
      %v4074 = vrot.slane %v4073, 4
      %v4076 = vshll.u32 %v3725, 16
      %v4078 = vrot.slane %v4076, 5
      %v4079 = vsel %vm370, %v4074, %v4078
      %v4080 = vshrl.u32 %v3725, 16
      %v4082 = vrot.slane %v4080, 4
      %v4083 = vor.u32 %v4082, %v4078
      %v4084 = vrot.slane %v4083, 4
      %v4086 = vshll.u32 %v3726, 16
      %v4088 = vrot.slane %v4086, 5
      %v4089 = vsel %vm370, %v4084, %v4088
      %v4091 = vshrl.u32 %v3727, 16
      %v4093 = vrot.slane %v4091, 4
      %v4094 = vshll.u32 %v3727, 16
      %v4096 = vrot.slane %v4094, 5
      %v4097 = vor.u32 %v4093, %v4096
      %v4098 = vrot.slane %v4097, 4
      %v4100 = vshll.u32 %v3728, 16
      %v4102 = vrot.slane %v4100, 5
      %v4103 = vsel %vm370, %v4098, %v4102
      %v4104 = vshrl.u32 %v3728, 16
      %v4106 = vrot.slane %v4104, 4
      %v4107 = vor.u32 %v4106, %v4102
      %v4108 = vrot.slane %v4107, 4
      %v4110 = vshll.u32 %v3729, 16
      %v4112 = vrot.slane %v4110, 5
      %v4113 = vsel %vm370, %v4108, %v4112
      %s4114 = scalar_lea.vmem %s1, 14
      %v4115 = vld [vmem:[%s4114] sm:$0x3]
      %v4116 = vunpack.c.l.b16 %v3743
      %v4117 = vunpack.c.l.b16 %v3753
      %v4118 = vunpack.c.l.b16 %v3767
      %v4119 = vunpack.c.l.b16 %v3777
      %v4120 = vunpack.c.l.b16 %v3791
      %v4121 = vunpack.c.l.b16 %v3801
      %v4122 = vunpack.c.l.b16 %v3815
      %v4123 = vunpack.c.l.b16 %v3825
      %v4124 = vunpack.c.l.b16 %v3839
      %v4125 = vunpack.c.l.b16 %v3849
      %v4126 = vunpack.c.l.b16 %v3863
      %v4127 = vunpack.c.l.b16 %v3873
      %v4128 = vunpack.c.l.b16 %v3887
      %v4129 = vunpack.c.l.b16 %v3897
      %v4130 = vunpack.c.l.b16 %v3911
      %v4131 = vunpack.c.l.b16 %v3921
      %v4132 = vunpack.c.l.b16 %v3935
      %v4133 = vunpack.c.l.b16 %v3945
      %v4134 = vunpack.c.l.b16 %v3959
      %v4135 = vunpack.c.l.b16 %v3969
      %v4136 = vunpack.c.l.b16 %v3983
      %v4137 = vunpack.c.l.b16 %v3993
      %v4138 = vunpack.c.l.b16 %v4007
      %v4139 = vunpack.c.l.b16 %v4017
      %v4140 = vunpack.c.l.b16 %v4031
      %v4141 = vunpack.c.l.b16 %v4041
      %v4142 = vunpack.c.l.b16 %v4055
      %v4143 = vunpack.c.l.b16 %v4065
      %v4144 = vunpack.c.l.b16 %v4079
      %v4145 = vunpack.c.l.b16 %v4089
      %v4146 = vunpack.c.l.b16 %v4103
      %v4147 = vunpack.c.l.b16 %v4113
      %v4148 = vpack.c.b16 %v4117, %v4116
      %v4149 = vpack.c.b16 %v4119, %v4118
      %v4150 = vpack.c.b16 %v4121, %v4120
      %v4151 = vpack.c.b16 %v4123, %v4122
      %v4152 = vpack.c.b16 %v4125, %v4124
      %v4153 = vpack.c.b16 %v4127, %v4126
      %v4154 = vpack.c.b16 %v4129, %v4128
      %v4155 = vpack.c.b16 %v4131, %v4130
      %v4156 = vpack.c.b16 %v4133, %v4132
      %v4157 = vpack.c.b16 %v4135, %v4134
      %v4158 = vpack.c.b16 %v4137, %v4136
      %v4159 = vpack.c.b16 %v4139, %v4138
      %v4160 = vpack.c.b16 %v4141, %v4140
      %v4161 = vpack.c.b16 %v4143, %v4142
      %v4162 = vpack.c.b16 %v4145, %v4144
      %v4163 = vpack.c.b16 %v4147, %v4146
      %v4165 = vsel %vm805, %v4148, 0
      %v4168 = vsel %vm805, %v4149, 0
      %v4171 = vsel %vm805, %v4150, 0
      %v4174 = vsel %vm805, %v4151, 0
      %v4177 = vsel %vm805, %v4152, 0
      %v4180 = vsel %vm805, %v4153, 0
      %v4183 = vsel %vm805, %v4154, 0
      %v4186 = vsel %vm805, %v4155, 0
      %v4189 = vsel %vm805, %v4156, 0
      %v4192 = vsel %vm805, %v4157, 0
      %v4195 = vsel %vm805, %v4158, 0
      %v4198 = vsel %vm805, %v4159, 0
      %v4201 = vsel %vm805, %v4160, 0
      %v4204 = vsel %vm805, %v4161, 0
      %v4207 = vsel %vm805, %v4162, 0
      %v4210 = vsel %vm805, %v4163, 0
      %v4213 = vsel %vm854, %v4115, 0
      %4215 = vmatprep.subr.bf16.mxu0 0
      %4216 = vmatpush1.bf16.msra.mxu0 %v4213
      %4217 = vmatprep.subr.bf16.mxu0 0
      %4218 = vmatpush1.bf16.msra.mxu0 0
      %4219 = vmatprep.subr.bf16.mxu0 0
      %4220 = vmatpush1.bf16.msra.mxu0 0
      %4221 = vmatprep.subr.bf16.mxu0 0
      %4222 = vmatpush1.bf16.msra.mxu0 0
      %4223 = vmatprep.subr.bf16.mxu0 0
      %4224 = vmatpush1.bf16.msra.mxu0 0
      %4225 = vmatprep.subr.bf16.mxu0 0
      %4226 = vmatpush1.bf16.msra.mxu0 0
      %4227 = vmatprep.subr.bf16.mxu0 0
      %4228 = vmatpush1.bf16.msra.mxu0 0
      %4229 = vmatprep.subr.bf16.mxu0 0
      %4230 = vmatpush1.bf16.msra.mxu0 0
      %4231 = vmatprep.subr.bf16.mxu0 0
      %4232 = vmatpush1.bf16.msra.mxu0 0
      %4233 = vmatprep.subr.bf16.mxu0 0
      %4234 = vmatpush1.bf16.msra.mxu0 0
      %4235 = vmatprep.subr.bf16.mxu0 0
      %4236 = vmatpush1.bf16.msra.mxu0 0
      %4237 = vmatprep.subr.bf16.mxu0 0
      %4238 = vmatpush1.bf16.msra.mxu0 0
      %4239 = vmatprep.subr.bf16.mxu0 0
      %4240 = vmatpush1.bf16.msra.mxu0 0
      %4241 = vmatprep.subr.bf16.mxu0 0
      %4242 = vmatpush1.bf16.msra.mxu0 0
      %4243 = vmatprep.subr.bf16.mxu0 0
      %4244 = vmatpush1.bf16.msra.mxu0 0
      %4245 = vmatprep.subr.bf16.mxu0 0
      %4246 = vmatpush1.bf16.msra.mxu0 0
      %4247 = vmatprep.mubr.bf16.mxu0 0
      %4248 = vmatmul.mubr.bf16.gmra.mrb[0].mxu0 %v4165
      %v4249 = vpop.f32.mrb[0].mxu0
      %v4250 = vadd.f32 0.0, %v4249
      %v4251 = vpop.f32.mrb[0].mxu0
      %v4252 = vpop.f32.mrb[0].mxu0
      %v4253 = vadd.f32 0.0, %v4252
      %v4254 = vpop.f32.mrb[0].mxu0
      %4255 = vmatprep.mubr.bf16.mxu0 0
      %4256 = vmatmul.mubr.bf16.gmra.mrb[0].mxu0 %v4168
      %v4257 = vpop.f32.mrb[0].mxu0
      %v4258 = vadd.f32 0.0, %v4257
      %v4259 = vpop.f32.mrb[0].mxu0
      %v4260 = vpop.f32.mrb[0].mxu0
      %v4261 = vadd.f32 0.0, %v4260
      %v4262 = vpop.f32.mrb[0].mxu0
      %4263 = vmatprep.mubr.bf16.mxu0 0
      %4264 = vmatmul.mubr.bf16.gmra.mrb[0].mxu0 %v4171
      %v4265 = vpop.f32.mrb[0].mxu0
      %v4266 = vadd.f32 0.0, %v4265
      %v4267 = vpop.f32.mrb[0].mxu0
      %v4268 = vpop.f32.mrb[0].mxu0
      %v4269 = vadd.f32 0.0, %v4268
      %v4270 = vpop.f32.mrb[0].mxu0
      %4271 = vmatprep.mubr.bf16.mxu0 0
      %4272 = vmatmul.mubr.bf16.gmra.mrb[0].mxu0 %v4174
      %v4273 = vpop.f32.mrb[0].mxu0
      %v4274 = vadd.f32 0.0, %v4273
      %v4275 = vpop.f32.mrb[0].mxu0
      %v4276 = vpop.f32.mrb[0].mxu0
      %v4277 = vadd.f32 0.0, %v4276
      %v4278 = vpop.f32.mrb[0].mxu0
      %4279 = vmatprep.mubr.bf16.mxu0 0
      %4280 = vmatmul.mubr.bf16.gmra.mrb[0].mxu0 %v4177
      %v4281 = vpop.f32.mrb[0].mxu0
      %v4282 = vadd.f32 0.0, %v4281
      %v4283 = vpop.f32.mrb[0].mxu0
      %v4284 = vpop.f32.mrb[0].mxu0
      %v4285 = vadd.f32 0.0, %v4284
      %v4286 = vpop.f32.mrb[0].mxu0
      %4287 = vmatprep.mubr.bf16.mxu0 0
      %4288 = vmatmul.mubr.bf16.gmra.mrb[0].mxu0 %v4180
      %v4289 = vpop.f32.mrb[0].mxu0
      %v4290 = vadd.f32 0.0, %v4289
      %v4291 = vpop.f32.mrb[0].mxu0
      %v4292 = vpop.f32.mrb[0].mxu0
      %v4293 = vadd.f32 0.0, %v4292
      %v4294 = vpop.f32.mrb[0].mxu0
      %4295 = vmatprep.mubr.bf16.mxu0 0
      %4296 = vmatmul.mubr.bf16.gmra.mrb[0].mxu0 %v4183
      %v4297 = vpop.f32.mrb[0].mxu0
      %v4298 = vadd.f32 0.0, %v4297
      %v4299 = vpop.f32.mrb[0].mxu0
      %v4300 = vpop.f32.mrb[0].mxu0
      %v4301 = vadd.f32 0.0, %v4300
      %v4302 = vpop.f32.mrb[0].mxu0
      %4303 = vmatprep.mubr.bf16.mxu0 0
      %4304 = vmatmul.mubr.bf16.gmra.mrb[0].mxu0 %v4186
      %v4305 = vpop.f32.mrb[0].mxu0
      %v4306 = vadd.f32 0.0, %v4305
      %v4307 = vpop.f32.mrb[0].mxu0
      %v4308 = vpop.f32.mrb[0].mxu0
      %v4309 = vadd.f32 0.0, %v4308
      %v4310 = vpop.f32.mrb[0].mxu0
      %4311 = vmatprep.mubr.bf16.mxu0 0
      %4312 = vmatmul.mubr.bf16.gmra.mrb[0].mxu0 %v4189
      %v4313 = vpop.f32.mrb[0].mxu0
      %v4314 = vadd.f32 0.0, %v4313
      %v4315 = vpop.f32.mrb[0].mxu0
      %v4316 = vpop.f32.mrb[0].mxu0
      %v4317 = vadd.f32 0.0, %v4316
      %v4318 = vpop.f32.mrb[0].mxu0
      %4319 = vmatprep.mubr.bf16.mxu0 0
      %4320 = vmatmul.mubr.bf16.gmra.mrb[0].mxu0 %v4192
      %v4321 = vpop.f32.mrb[0].mxu0
      %v4322 = vadd.f32 0.0, %v4321
      %v4323 = vpop.f32.mrb[0].mxu0
      %v4324 = vpop.f32.mrb[0].mxu0
      %v4325 = vadd.f32 0.0, %v4324
      %v4326 = vpop.f32.mrb[0].mxu0
      %4327 = vmatprep.mubr.bf16.mxu0 0
      %4328 = vmatmul.mubr.bf16.gmra.mrb[0].mxu0 %v4195
      %v4329 = vpop.f32.mrb[0].mxu0
      %v4330 = vadd.f32 0.0, %v4329
      %v4331 = vpop.f32.mrb[0].mxu0
      %v4332 = vpop.f32.mrb[0].mxu0
      %v4333 = vadd.f32 0.0, %v4332
      %v4334 = vpop.f32.mrb[0].mxu0
      %4335 = vmatprep.mubr.bf16.mxu0 0
      %4336 = vmatmul.mubr.bf16.gmra.mrb[0].mxu0 %v4198
      %v4337 = vpop.f32.mrb[0].mxu0
      %v4338 = vadd.f32 0.0, %v4337
      %v4339 = vpop.f32.mrb[0].mxu0
      %v4340 = vpop.f32.mrb[0].mxu0
      %v4341 = vadd.f32 0.0, %v4340
      %v4342 = vpop.f32.mrb[0].mxu0
      %4343 = vmatprep.mubr.bf16.mxu0 0
      %4344 = vmatmul.mubr.bf16.gmra.mrb[0].mxu0 %v4201
      %v4345 = vpop.f32.mrb[0].mxu0
      %v4346 = vadd.f32 0.0, %v4345
      %v4347 = vpop.f32.mrb[0].mxu0
      %v4348 = vpop.f32.mrb[0].mxu0
      %v4349 = vadd.f32 0.0, %v4348
      %v4350 = vpop.f32.mrb[0].mxu0
      %4351 = vmatprep.mubr.bf16.mxu0 0
      %4352 = vmatmul.mubr.bf16.gmra.mrb[0].mxu0 %v4204
      %v4353 = vpop.f32.mrb[0].mxu0
      %v4354 = vadd.f32 0.0, %v4353
      %v4355 = vpop.f32.mrb[0].mxu0
      %v4356 = vpop.f32.mrb[0].mxu0
      %v4357 = vadd.f32 0.0, %v4356
      %v4358 = vpop.f32.mrb[0].mxu0
      %4359 = vmatprep.mubr.bf16.mxu0 0
      %4360 = vmatmul.mubr.bf16.gmra.mrb[0].mxu0 %v4207
      %v4361 = vpop.f32.mrb[0].mxu0
      %v4362 = vadd.f32 0.0, %v4361
      %v4363 = vpop.f32.mrb[0].mxu0
      %v4364 = vpop.f32.mrb[0].mxu0
      %v4365 = vadd.f32 0.0, %v4364
      %v4366 = vpop.f32.mrb[0].mxu0
      %4367 = vmatprep.mubr.bf16.mxu0 0
      %4368 = vmatmul.mubr.bf16.gmra.mrb[0].mxu0 %v4210
      %v4369 = vpop.f32.mrb[0].mxu0
      %v4370 = vadd.f32 0.0, %v4369
      %v4371 = vpop.f32.mrb[0].mxu0
      %v4372 = vpop.f32.mrb[0].mxu0
      %v4373 = vadd.f32 0.0, %v4372
      %v4374 = vpop.f32.mrb[0].mxu0
      %4375 = vdwg.mxu0
      %v4376 = vadd.f32 %v3650, %v4250
      %v4377 = vadd.f32 %v3651, %v4253
      %v4378 = vadd.f32 %v3652, %v4258
      %v4379 = vadd.f32 %v3653, %v4261
      %v4380 = vadd.f32 %v3654, %v4266
      %v4381 = vadd.f32 %v3655, %v4269
      %v4382 = vadd.f32 %v3656, %v4274
      %v4383 = vadd.f32 %v3657, %v4277
      %v4384 = vadd.f32 %v3658, %v4282
      %v4385 = vadd.f32 %v3659, %v4285
      %v4386 = vadd.f32 %v3660, %v4290
      %v4387 = vadd.f32 %v3661, %v4293
      %v4388 = vadd.f32 %v3662, %v4298
      %v4389 = vadd.f32 %v3663, %v4301
      %v4390 = vadd.f32 %v3664, %v4306
      %v4391 = vadd.f32 %v3665, %v4309
      %v4392 = vadd.f32 %v3666, %v4314
      %v4393 = vadd.f32 %v3667, %v4317
      %v4394 = vadd.f32 %v3668, %v4322
      %v4395 = vadd.f32 %v3669, %v4325
      %v4396 = vadd.f32 %v3670, %v4330
      %v4397 = vadd.f32 %v3671, %v4333
      %v4398 = vadd.f32 %v3672, %v4338
      %v4399 = vadd.f32 %v3673, %v4341
      %v4400 = vadd.f32 %v3674, %v4346
      %v4401 = vadd.f32 %v3675, %v4349
      %v4402 = vadd.f32 %v3676, %v4354
      %v4403 = vadd.f32 %v3677, %v4357
      %v4404 = vadd.f32 %v3678, %v4362
      %v4405 = vadd.f32 %v3679, %v4365
      %v4406 = vadd.f32 %v3680, %v4370
      %v4407 = vadd.f32 %v3681, %v4373
      %v4408 = vld [vmem:[%s3323] sm:$0xe]
      %v4409 = vld [vmem:[%s3323 + $0xc] sm:$0xe]
      %v4410 = vld [vmem:[%s3323 + $0x18] sm:$0xe]
      %v4411 = vld [vmem:[%s3323 + $0x24] sm:$0xe]
      %v4412 = vld [vmem:[%s3323 + $0x30] sm:$0xe]
      %v4413 = vld [vmem:[%s3323 + $0x3c] sm:$0xe]
      %v4414 = vld [vmem:[%s3323 + $0x48] sm:$0xe]
      %v4415 = vld [vmem:[%s3323 + $0x54] sm:$0xe]
      %v4416 = vld [vmem:[%s3323 + $0x60] sm:$0xe]
      %v4417 = vld [vmem:[%s3323 + $0x6c] sm:$0xe]
      %v4418 = vld [vmem:[%s3323 + $0x78] sm:$0xe]
      %v4419 = vld [vmem:[%s3323 + $0x84] sm:$0xe]
      %v4420 = vld [vmem:[%s3323 + $0x90] sm:$0xe]
      %v4421 = vld [vmem:[%s3323 + $0x9c] sm:$0xe]
      %v4422 = vld [vmem:[%s3323 + $0xa8] sm:$0xe]
      %v4423 = vld [vmem:[%s3323 + $0xb4] sm:$0xe]
      %v4472 = vrot.slane %v4408, 5
      %v4473 = vrot.slane %v4472, 4
      %v4474 = vrot.slane %v3683, 5
      %v4475 = vsel %vm1361, %v4473, %v4474
      %v4476 = vrot.slane %v4474, 4
      %v4477 = vrot.slane %v3684, 5
      %v4478 = vsel %vm1361, %v4476, %v4477
      %v4479 = vrot.slane %v4409, 5
      %v4480 = vrot.slane %v4479, 4
      %v4481 = vrot.slane %v3686, 5
      %v4482 = vsel %vm1361, %v4480, %v4481
      %v4483 = vrot.slane %v4481, 4
      %v4484 = vrot.slane %v3687, 5
      %v4485 = vsel %vm1361, %v4483, %v4484
      %v4486 = vrot.slane %v4410, 5
      %v4487 = vrot.slane %v4486, 4
      %v4488 = vrot.slane %v3689, 5
      %v4489 = vsel %vm1361, %v4487, %v4488
      %v4490 = vrot.slane %v4488, 4
      %v4491 = vrot.slane %v3690, 5
      %v4492 = vsel %vm1361, %v4490, %v4491
      %v4493 = vrot.slane %v4411, 5
      %v4494 = vrot.slane %v4493, 4
      %v4495 = vrot.slane %v3692, 5
      %v4496 = vsel %vm1361, %v4494, %v4495
      %v4497 = vrot.slane %v4495, 4
      %v4498 = vrot.slane %v3693, 5
      %v4499 = vsel %vm1361, %v4497, %v4498
      %v4500 = vrot.slane %v4412, 5
      %v4501 = vrot.slane %v4500, 4
      %v4502 = vrot.slane %v3695, 5
      %v4503 = vsel %vm1361, %v4501, %v4502
      %v4504 = vrot.slane %v4502, 4
      %v4505 = vrot.slane %v3696, 5
      %v4506 = vsel %vm1361, %v4504, %v4505
      %v4507 = vrot.slane %v4413, 5
      %v4508 = vrot.slane %v4507, 4
      %v4509 = vrot.slane %v3698, 5
      %v4510 = vsel %vm1361, %v4508, %v4509
      %v4511 = vrot.slane %v4509, 4
      %v4512 = vrot.slane %v3699, 5
      %v4513 = vsel %vm1361, %v4511, %v4512
      %v4514 = vrot.slane %v4414, 5
      %v4515 = vrot.slane %v4514, 4
      %v4516 = vrot.slane %v3701, 5
      %v4517 = vsel %vm1361, %v4515, %v4516
      %v4518 = vrot.slane %v4516, 4
      %v4519 = vrot.slane %v3702, 5
      %v4520 = vsel %vm1361, %v4518, %v4519
      %v4521 = vrot.slane %v4415, 5
      %v4522 = vrot.slane %v4521, 4
      %v4523 = vrot.slane %v3704, 5
      %v4524 = vsel %vm1361, %v4522, %v4523
      %v4525 = vrot.slane %v4523, 4
      %v4526 = vrot.slane %v3705, 5
      %v4527 = vsel %vm1361, %v4525, %v4526
      %v4528 = vrot.slane %v4416, 5
      %v4529 = vrot.slane %v4528, 4
      %v4530 = vrot.slane %v3707, 5
      %v4531 = vsel %vm1361, %v4529, %v4530
      %v4532 = vrot.slane %v4530, 4
      %v4533 = vrot.slane %v3708, 5
      %v4534 = vsel %vm1361, %v4532, %v4533
      %v4535 = vrot.slane %v4417, 5
      %v4536 = vrot.slane %v4535, 4
      %v4537 = vrot.slane %v3710, 5
      %v4538 = vsel %vm1361, %v4536, %v4537
      %v4539 = vrot.slane %v4537, 4
      %v4540 = vrot.slane %v3711, 5
      %v4541 = vsel %vm1361, %v4539, %v4540
      %v4542 = vrot.slane %v4418, 5
      %v4543 = vrot.slane %v4542, 4
      %v4544 = vrot.slane %v3713, 5
      %v4545 = vsel %vm1361, %v4543, %v4544
      %v4546 = vrot.slane %v4544, 4
      %v4547 = vrot.slane %v3714, 5
      %v4548 = vsel %vm1361, %v4546, %v4547
      %v4549 = vrot.slane %v4419, 5
      %v4550 = vrot.slane %v4549, 4
      %v4551 = vrot.slane %v3716, 5
      %v4552 = vsel %vm1361, %v4550, %v4551
      %v4553 = vrot.slane %v4551, 4
      %v4554 = vrot.slane %v3717, 5
      %v4555 = vsel %vm1361, %v4553, %v4554
      %v4556 = vrot.slane %v4420, 5
      %v4557 = vrot.slane %v4556, 4
      %v4558 = vrot.slane %v3719, 5
      %v4559 = vsel %vm1361, %v4557, %v4558
      %v4560 = vrot.slane %v4558, 4
      %v4561 = vrot.slane %v3720, 5
      %v4562 = vsel %vm1361, %v4560, %v4561
      %v4563 = vrot.slane %v4421, 5
      %v4564 = vrot.slane %v4563, 4
      %v4565 = vrot.slane %v3722, 5
      %v4566 = vsel %vm1361, %v4564, %v4565
      %v4567 = vrot.slane %v4565, 4
      %v4568 = vrot.slane %v3723, 5
      %v4569 = vsel %vm1361, %v4567, %v4568
      %v4570 = vrot.slane %v4422, 5
      %v4571 = vrot.slane %v4570, 4
      %v4572 = vrot.slane %v3725, 5
      %v4573 = vsel %vm1361, %v4571, %v4572
      %v4574 = vrot.slane %v4572, 4
      %v4575 = vrot.slane %v3726, 5
      %v4576 = vsel %vm1361, %v4574, %v4575
      %v4577 = vrot.slane %v4423, 5
      %v4578 = vrot.slane %v4577, 4
      %v4579 = vrot.slane %v3728, 5
      %v4580 = vsel %vm1361, %v4578, %v4579
      %v4581 = vrot.slane %v4579, 4
      %v4582 = vrot.slane %v3729, 5
      %v4583 = vsel %vm1361, %v4581, %v4582
      %s4584 = scalar_lea.vmem %s1, 16
      %v4585 = vld [vmem:[%s4584] sm:$0x3]
      %v4586 = vunpack.c.l.b16 %v4475
      %v4587 = vunpack.c.l.b16 %v4478
      %v4588 = vunpack.c.l.b16 %v4482
      %v4589 = vunpack.c.l.b16 %v4485
      %v4590 = vunpack.c.l.b16 %v4489
      %v4591 = vunpack.c.l.b16 %v4492
      %v4592 = vunpack.c.l.b16 %v4496
      %v4593 = vunpack.c.l.b16 %v4499
      %v4594 = vunpack.c.l.b16 %v4503
      %v4595 = vunpack.c.l.b16 %v4506
      %v4596 = vunpack.c.l.b16 %v4510
      %v4597 = vunpack.c.l.b16 %v4513
      %v4598 = vunpack.c.l.b16 %v4517
      %v4599 = vunpack.c.l.b16 %v4520
      %v4600 = vunpack.c.l.b16 %v4524
      %v4601 = vunpack.c.l.b16 %v4527
      %v4602 = vunpack.c.l.b16 %v4531
      %v4603 = vunpack.c.l.b16 %v4534
      %v4604 = vunpack.c.l.b16 %v4538
      %v4605 = vunpack.c.l.b16 %v4541
      %v4606 = vunpack.c.l.b16 %v4545
      %v4607 = vunpack.c.l.b16 %v4548
      %v4608 = vunpack.c.l.b16 %v4552
      %v4609 = vunpack.c.l.b16 %v4555
      %v4610 = vunpack.c.l.b16 %v4559
      %v4611 = vunpack.c.l.b16 %v4562
      %v4612 = vunpack.c.l.b16 %v4566
      %v4613 = vunpack.c.l.b16 %v4569
      %v4614 = vunpack.c.l.b16 %v4573
      %v4615 = vunpack.c.l.b16 %v4576
      %v4616 = vunpack.c.l.b16 %v4580
      %v4617 = vunpack.c.l.b16 %v4583
      %v4618 = vpack.c.b16 %v4587, %v4586
      %v4619 = vpack.c.b16 %v4589, %v4588
      %v4620 = vpack.c.b16 %v4591, %v4590
      %v4621 = vpack.c.b16 %v4593, %v4592
      %v4622 = vpack.c.b16 %v4595, %v4594
      %v4623 = vpack.c.b16 %v4597, %v4596
      %v4624 = vpack.c.b16 %v4599, %v4598
      %v4625 = vpack.c.b16 %v4601, %v4600
      %v4626 = vpack.c.b16 %v4603, %v4602
      %v4627 = vpack.c.b16 %v4605, %v4604
      %v4628 = vpack.c.b16 %v4607, %v4606
      %v4629 = vpack.c.b16 %v4609, %v4608
      %v4630 = vpack.c.b16 %v4611, %v4610
      %v4631 = vpack.c.b16 %v4613, %v4612
      %v4632 = vpack.c.b16 %v4615, %v4614
      %v4633 = vpack.c.b16 %v4617, %v4616
      %v4635 = vsel %vm805, %v4618, 0
      %v4638 = vsel %vm805, %v4619, 0
      %v4641 = vsel %vm805, %v4620, 0
      %v4644 = vsel %vm805, %v4621, 0
      %v4647 = vsel %vm805, %v4622, 0
      %v4650 = vsel %vm805, %v4623, 0
      %v4653 = vsel %vm805, %v4624, 0
      %v4656 = vsel %vm805, %v4625, 0
      %v4659 = vsel %vm805, %v4626, 0
      %v4662 = vsel %vm805, %v4627, 0
      %v4665 = vsel %vm805, %v4628, 0
      %v4668 = vsel %vm805, %v4629, 0
      %v4671 = vsel %vm805, %v4630, 0
      %v4674 = vsel %vm805, %v4631, 0
      %v4677 = vsel %vm805, %v4632, 0
      %v4680 = vsel %vm805, %v4633, 0
      %v4683 = vsel %vm854, %v4585, 0
      %4685 = vmatprep.subr.bf16.mxu0 0
      %4686 = vmatpush1.bf16.msra.mxu0 %v4683
      %4687 = vmatprep.subr.bf16.mxu0 0
      %4688 = vmatpush1.bf16.msra.mxu0 0
      %4689 = vmatprep.subr.bf16.mxu0 0
      %4690 = vmatpush1.bf16.msra.mxu0 0
      %4691 = vmatprep.subr.bf16.mxu0 0
      %4692 = vmatpush1.bf16.msra.mxu0 0
      %4693 = vmatprep.subr.bf16.mxu0 0
      %4694 = vmatpush1.bf16.msra.mxu0 0
      %4695 = vmatprep.subr.bf16.mxu0 0
      %4696 = vmatpush1.bf16.msra.mxu0 0
      %4697 = vmatprep.subr.bf16.mxu0 0
      %4698 = vmatpush1.bf16.msra.mxu0 0
      %4699 = vmatprep.subr.bf16.mxu0 0
      %4700 = vmatpush1.bf16.msra.mxu0 0
      %4701 = vmatprep.subr.bf16.mxu0 0
      %4702 = vmatpush1.bf16.msra.mxu0 0
      %4703 = vmatprep.subr.bf16.mxu0 0
      %4704 = vmatpush1.bf16.msra.mxu0 0
      %4705 = vmatprep.subr.bf16.mxu0 0
      %4706 = vmatpush1.bf16.msra.mxu0 0
      %4707 = vmatprep.subr.bf16.mxu0 0
      %4708 = vmatpush1.bf16.msra.mxu0 0
      %4709 = vmatprep.subr.bf16.mxu0 0
      %4710 = vmatpush1.bf16.msra.mxu0 0
      %4711 = vmatprep.subr.bf16.mxu0 0
      %4712 = vmatpush1.bf16.msra.mxu0 0
      %4713 = vmatprep.subr.bf16.mxu0 0
      %4714 = vmatpush1.bf16.msra.mxu0 0
      %4715 = vmatprep.subr.bf16.mxu0 0
      %4716 = vmatpush1.bf16.msra.mxu0 0
      %4717 = vmatprep.mubr.bf16.mxu0 0
      %4718 = vmatmul.mubr.bf16.gmra.mrb[0].mxu0 %v4635
      %v4719 = vpop.f32.mrb[0].mxu0
      %v4720 = vadd.f32 0.0, %v4719
      %v4721 = vpop.f32.mrb[0].mxu0
      %v4722 = vpop.f32.mrb[0].mxu0
      %v4723 = vadd.f32 0.0, %v4722
      %v4724 = vpop.f32.mrb[0].mxu0
      %4725 = vmatprep.mubr.bf16.mxu0 0
      %4726 = vmatmul.mubr.bf16.gmra.mrb[0].mxu0 %v4638
      %v4727 = vpop.f32.mrb[0].mxu0
      %v4728 = vadd.f32 0.0, %v4727
      %v4729 = vpop.f32.mrb[0].mxu0
      %v4730 = vpop.f32.mrb[0].mxu0
      %v4731 = vadd.f32 0.0, %v4730
      %v4732 = vpop.f32.mrb[0].mxu0
      %4733 = vmatprep.mubr.bf16.mxu0 0
      %4734 = vmatmul.mubr.bf16.gmra.mrb[0].mxu0 %v4641
      %v4735 = vpop.f32.mrb[0].mxu0
      %v4736 = vadd.f32 0.0, %v4735
      %v4737 = vpop.f32.mrb[0].mxu0
      %v4738 = vpop.f32.mrb[0].mxu0
      %v4739 = vadd.f32 0.0, %v4738
      %v4740 = vpop.f32.mrb[0].mxu0
      %4741 = vmatprep.mubr.bf16.mxu0 0
      %4742 = vmatmul.mubr.bf16.gmra.mrb[0].mxu0 %v4644
      %v4743 = vpop.f32.mrb[0].mxu0
      %v4744 = vadd.f32 0.0, %v4743
      %v4745 = vpop.f32.mrb[0].mxu0
      %v4746 = vpop.f32.mrb[0].mxu0
      %v4747 = vadd.f32 0.0, %v4746
      %v4748 = vpop.f32.mrb[0].mxu0
      %4749 = vmatprep.mubr.bf16.mxu0 0
      %4750 = vmatmul.mubr.bf16.gmra.mrb[0].mxu0 %v4647
      %v4751 = vpop.f32.mrb[0].mxu0
      %v4752 = vadd.f32 0.0, %v4751
      %v4753 = vpop.f32.mrb[0].mxu0
      %v4754 = vpop.f32.mrb[0].mxu0
      %v4755 = vadd.f32 0.0, %v4754
      %v4756 = vpop.f32.mrb[0].mxu0
      %4757 = vmatprep.mubr.bf16.mxu0 0
      %4758 = vmatmul.mubr.bf16.gmra.mrb[0].mxu0 %v4650
      %v4759 = vpop.f32.mrb[0].mxu0
      %v4760 = vadd.f32 0.0, %v4759
      %v4761 = vpop.f32.mrb[0].mxu0
      %v4762 = vpop.f32.mrb[0].mxu0
      %v4763 = vadd.f32 0.0, %v4762
      %v4764 = vpop.f32.mrb[0].mxu0
      %4765 = vmatprep.mubr.bf16.mxu0 0
      %4766 = vmatmul.mubr.bf16.gmra.mrb[0].mxu0 %v4653
      %v4767 = vpop.f32.mrb[0].mxu0
      %v4768 = vadd.f32 0.0, %v4767
      %v4769 = vpop.f32.mrb[0].mxu0
      %v4770 = vpop.f32.mrb[0].mxu0
      %v4771 = vadd.f32 0.0, %v4770
      %v4772 = vpop.f32.mrb[0].mxu0
      %4773 = vmatprep.mubr.bf16.mxu0 0
      %4774 = vmatmul.mubr.bf16.gmra.mrb[0].mxu0 %v4656
      %v4775 = vpop.f32.mrb[0].mxu0
      %v4776 = vadd.f32 0.0, %v4775
      %v4777 = vpop.f32.mrb[0].mxu0
      %v4778 = vpop.f32.mrb[0].mxu0
      %v4779 = vadd.f32 0.0, %v4778
      %v4780 = vpop.f32.mrb[0].mxu0
      %4781 = vmatprep.mubr.bf16.mxu0 0
      %4782 = vmatmul.mubr.bf16.gmra.mrb[0].mxu0 %v4659
      %v4783 = vpop.f32.mrb[0].mxu0
      %v4784 = vadd.f32 0.0, %v4783
      %v4785 = vpop.f32.mrb[0].mxu0
      %v4786 = vpop.f32.mrb[0].mxu0
      %v4787 = vadd.f32 0.0, %v4786
      %v4788 = vpop.f32.mrb[0].mxu0
      %4789 = vmatprep.mubr.bf16.mxu0 0
      %4790 = vmatmul.mubr.bf16.gmra.mrb[0].mxu0 %v4662
      %v4791 = vpop.f32.mrb[0].mxu0
      %v4792 = vadd.f32 0.0, %v4791
      %v4793 = vpop.f32.mrb[0].mxu0
      %v4794 = vpop.f32.mrb[0].mxu0
      %v4795 = vadd.f32 0.0, %v4794
      %v4796 = vpop.f32.mrb[0].mxu0
      %4797 = vmatprep.mubr.bf16.mxu0 0
      %4798 = vmatmul.mubr.bf16.gmra.mrb[0].mxu0 %v4665
      %v4799 = vpop.f32.mrb[0].mxu0
      %v4800 = vadd.f32 0.0, %v4799
      %v4801 = vpop.f32.mrb[0].mxu0
      %v4802 = vpop.f32.mrb[0].mxu0
      %v4803 = vadd.f32 0.0, %v4802
      %v4804 = vpop.f32.mrb[0].mxu0
      %4805 = vmatprep.mubr.bf16.mxu0 0
      %4806 = vmatmul.mubr.bf16.gmra.mrb[0].mxu0 %v4668
      %v4807 = vpop.f32.mrb[0].mxu0
      %v4808 = vadd.f32 0.0, %v4807
      %v4809 = vpop.f32.mrb[0].mxu0
      %v4810 = vpop.f32.mrb[0].mxu0
      %v4811 = vadd.f32 0.0, %v4810
      %v4812 = vpop.f32.mrb[0].mxu0
      %4813 = vmatprep.mubr.bf16.mxu0 0
      %4814 = vmatmul.mubr.bf16.gmra.mrb[0].mxu0 %v4671
      %v4815 = vpop.f32.mrb[0].mxu0
      %v4816 = vadd.f32 0.0, %v4815
      %v4817 = vpop.f32.mrb[0].mxu0
      %v4818 = vpop.f32.mrb[0].mxu0
      %v4819 = vadd.f32 0.0, %v4818
      %v4820 = vpop.f32.mrb[0].mxu0
      %4821 = vmatprep.mubr.bf16.mxu0 0
      %4822 = vmatmul.mubr.bf16.gmra.mrb[0].mxu0 %v4674
      %v4823 = vpop.f32.mrb[0].mxu0
      %v4824 = vadd.f32 0.0, %v4823
      %v4825 = vpop.f32.mrb[0].mxu0
      %v4826 = vpop.f32.mrb[0].mxu0
      %v4827 = vadd.f32 0.0, %v4826
      %v4828 = vpop.f32.mrb[0].mxu0
      %4829 = vmatprep.mubr.bf16.mxu0 0
      %4830 = vmatmul.mubr.bf16.gmra.mrb[0].mxu0 %v4677
      %v4831 = vpop.f32.mrb[0].mxu0
      %v4832 = vadd.f32 0.0, %v4831
      %v4833 = vpop.f32.mrb[0].mxu0
      %v4834 = vpop.f32.mrb[0].mxu0
      %v4835 = vadd.f32 0.0, %v4834
      %v4836 = vpop.f32.mrb[0].mxu0
      %4837 = vmatprep.mubr.bf16.mxu0 0
      %4838 = vmatmul.mubr.bf16.gmra.mrb[0].mxu0 %v4680
      %v4839 = vpop.f32.mrb[0].mxu0
      %v4840 = vadd.f32 0.0, %v4839
      %v4841 = vpop.f32.mrb[0].mxu0
      %v4842 = vpop.f32.mrb[0].mxu0
      %v4843 = vadd.f32 0.0, %v4842
      %v4844 = vpop.f32.mrb[0].mxu0
      %4845 = vdwg.mxu0
      %v4846 = vadd.f32 %v4376, %v4720
      %v4847 = vadd.f32 %v4377, %v4723
      %v4848 = vadd.f32 %v4378, %v4728
      %v4849 = vadd.f32 %v4379, %v4731
      %v4850 = vadd.f32 %v4380, %v4736
      %v4851 = vadd.f32 %v4381, %v4739
      %v4852 = vadd.f32 %v4382, %v4744
      %v4853 = vadd.f32 %v4383, %v4747
      %v4854 = vadd.f32 %v4384, %v4752
      %v4855 = vadd.f32 %v4385, %v4755
      %v4856 = vadd.f32 %v4386, %v4760
      %v4857 = vadd.f32 %v4387, %v4763
      %v4858 = vadd.f32 %v4388, %v4768
      %v4859 = vadd.f32 %v4389, %v4771
      %v4860 = vadd.f32 %v4390, %v4776
      %v4861 = vadd.f32 %v4391, %v4779
      %v4862 = vadd.f32 %v4392, %v4784
      %v4863 = vadd.f32 %v4393, %v4787
      %v4864 = vadd.f32 %v4394, %v4792
      %v4865 = vadd.f32 %v4395, %v4795
      %v4866 = vadd.f32 %v4396, %v4800
      %v4867 = vadd.f32 %v4397, %v4803
      %v4868 = vadd.f32 %v4398, %v4808
      %v4869 = vadd.f32 %v4399, %v4811
      %v4870 = vadd.f32 %v4400, %v4816
      %v4871 = vadd.f32 %v4401, %v4819
      %v4872 = vadd.f32 %v4402, %v4824
      %v4873 = vadd.f32 %v4403, %v4827
      %v4874 = vadd.f32 %v4404, %v4832
      %v4875 = vadd.f32 %v4405, %v4835
      %v4876 = vadd.f32 %v4406, %v4840
      %v4877 = vadd.f32 %v4407, %v4843
      %v4878 = vld [vmem:[%s2] sm:$0x1]
      %v4880 = vlaneseq
      %v4881 = vshrl.u32 %v4880, 7
      %v4882 = vsub.s32 0, %v4881
      %v4883 = vrot.slane %v4878, %v4882
      %v4885 = vmul.f32 %v4846, %v4883
      %v4886 = vmul.f32 %v4847, %v4883
      %v4887 = vmul.f32 %v4848, %v4883
      %v4888 = vmul.f32 %v4849, %v4883
      %v4889 = vmul.f32 %v4850, %v4883
      %v4890 = vmul.f32 %v4851, %v4883
      %v4891 = vmul.f32 %v4852, %v4883
      %v4892 = vmul.f32 %v4853, %v4883
      %v4893 = vmul.f32 %v4854, %v4883
      %v4894 = vmul.f32 %v4855, %v4883
      %v4895 = vmul.f32 %v4856, %v4883
      %v4896 = vmul.f32 %v4857, %v4883
      %v4897 = vmul.f32 %v4858, %v4883
      %v4898 = vmul.f32 %v4859, %v4883
      %v4899 = vmul.f32 %v4860, %v4883
      %v4900 = vmul.f32 %v4861, %v4883
      %v4901 = vmul.f32 %v4862, %v4883
      %v4902 = vmul.f32 %v4863, %v4883
      %v4903 = vmul.f32 %v4864, %v4883
      %v4904 = vmul.f32 %v4865, %v4883
      %v4905 = vmul.f32 %v4866, %v4883
      %v4906 = vmul.f32 %v4867, %v4883
      %v4907 = vmul.f32 %v4868, %v4883
      %v4908 = vmul.f32 %v4869, %v4883
      %v4909 = vmul.f32 %v4870, %v4883
      %v4910 = vmul.f32 %v4871, %v4883
      %v4911 = vmul.f32 %v4872, %v4883
      %v4912 = vmul.f32 %v4873, %v4883
      %v4913 = vmul.f32 %v4874, %v4883
      %v4914 = vmul.f32 %v4875, %v4883
      %v4915 = vmul.f32 %v4876, %v4883
      %v4916 = vmul.f32 %v4877, %v4883
      %v4917 = vld [vmem:[%s3] sm:$0x1]
      %v4919 = vlaneseq
      %v4920 = vshrl.u32 %v4919, 7
      %v4921 = vsub.s32 0, %v4920
      %v4922 = vrot.slane %v4917, %v4921
      %v4924 = vadd.f32 %v4885, %v4922
      %v4925 = vadd.f32 %v4886, %v4922
      %v4926 = vadd.f32 %v4887, %v4922
      %v4927 = vadd.f32 %v4888, %v4922
      %v4928 = vadd.f32 %v4889, %v4922
      %v4929 = vadd.f32 %v4890, %v4922
      %v4930 = vadd.f32 %v4891, %v4922
      %v4931 = vadd.f32 %v4892, %v4922
      %v4932 = vadd.f32 %v4893, %v4922
      %v4933 = vadd.f32 %v4894, %v4922
      %v4934 = vadd.f32 %v4895, %v4922
      %v4935 = vadd.f32 %v4896, %v4922
      %v4936 = vadd.f32 %v4897, %v4922
      %v4937 = vadd.f32 %v4898, %v4922
      %v4938 = vadd.f32 %v4899, %v4922
      %v4939 = vadd.f32 %v4900, %v4922
      %v4940 = vadd.f32 %v4901, %v4922
      %v4941 = vadd.f32 %v4902, %v4922
      %v4942 = vadd.f32 %v4903, %v4922
      %v4943 = vadd.f32 %v4904, %v4922
      %v4944 = vadd.f32 %v4905, %v4922
      %v4945 = vadd.f32 %v4906, %v4922
      %v4946 = vadd.f32 %v4907, %v4922
      %v4947 = vadd.f32 %v4908, %v4922
      %v4948 = vadd.f32 %v4909, %v4922
      %v4949 = vadd.f32 %v4910, %v4922
      %v4950 = vadd.f32 %v4911, %v4922
      %v4951 = vadd.f32 %v4912, %v4922
      %v4952 = vadd.f32 %v4913, %v4922
      %v4953 = vadd.f32 %v4914, %v4922
      %v4954 = vadd.f32 %v4915, %v4922
      %v4955 = vadd.f32 %v4916, %v4922
      %v4956 = vmax.f32 %v4924, 0.0
      %v4957 = vmax.f32 %v4925, 0.0
      %v4958 = vmax.f32 %v4926, 0.0
      %v4959 = vmax.f32 %v4927, 0.0
      %v4960 = vmax.f32 %v4928, 0.0
      %v4961 = vmax.f32 %v4929, 0.0
      %v4962 = vmax.f32 %v4930, 0.0
      %v4963 = vmax.f32 %v4931, 0.0
      %v4964 = vmax.f32 %v4932, 0.0
      %v4965 = vmax.f32 %v4933, 0.0
      %v4966 = vmax.f32 %v4934, 0.0
      %v4967 = vmax.f32 %v4935, 0.0
      %v4968 = vmax.f32 %v4936, 0.0
      %v4969 = vmax.f32 %v4937, 0.0
      %v4970 = vmax.f32 %v4938, 0.0
      %v4971 = vmax.f32 %v4939, 0.0
      %v4972 = vmax.f32 %v4940, 0.0
      %v4973 = vmax.f32 %v4941, 0.0
      %v4974 = vmax.f32 %v4942, 0.0
      %v4975 = vmax.f32 %v4943, 0.0
      %v4976 = vmax.f32 %v4944, 0.0
      %v4977 = vmax.f32 %v4945, 0.0
      %v4978 = vmax.f32 %v4946, 0.0
      %v4979 = vmax.f32 %v4947, 0.0
      %v4980 = vmax.f32 %v4948, 0.0
      %v4981 = vmax.f32 %v4949, 0.0
      %v4982 = vmax.f32 %v4950, 0.0
      %v4983 = vmax.f32 %v4951, 0.0
      %v4984 = vmax.f32 %v4952, 0.0
      %v4985 = vmax.f32 %v4953, 0.0
      %v4986 = vmax.f32 %v4954, 0.0
      %v4987 = vmax.f32 %v4955, 0.0
      %v4988 = vpack.c.bf16 %v4957, %v4956
      %v4989 = vpack.c.bf16 %v4959, %v4958
      %v4990 = vpack.c.bf16 %v4961, %v4960
      %v4991 = vpack.c.bf16 %v4963, %v4962
      %v4992 = vpack.c.bf16 %v4965, %v4964
      %v4993 = vpack.c.bf16 %v4967, %v4966
      %v4994 = vpack.c.bf16 %v4969, %v4968
      %v4995 = vpack.c.bf16 %v4971, %v4970
      %v4996 = vpack.c.bf16 %v4973, %v4972
      %v4997 = vpack.c.bf16 %v4975, %v4974
      %v4998 = vpack.c.bf16 %v4977, %v4976
      %v4999 = vpack.c.bf16 %v4979, %v4978
      %v5000 = vpack.c.bf16 %v4981, %v4980
      %v5001 = vpack.c.bf16 %v4983, %v4982
      %v5002 = vpack.c.bf16 %v4985, %v4984
      %v5003 = vpack.c.bf16 %v4987, %v4986
      %s5004 = smul.u32 %s23, 8
      %s5005 = ssub.s32 %s5004, 4
      %v5006 = vstv %s5005
      %v5007 = vadd.s32 %v5006, 1
      %v5008 = vadd.s32 %v5006, 2
      %v5009 = vadd.s32 %v5006, 3
      %v5010 = vadd.s32 %v5006, 4
      %v5011 = vadd.s32 %v5006, 5
      %v5012 = vadd.s32 %v5006, 6
      %v5013 = vadd.s32 %v5006, 7
      %v5014 = vadd.s32 %v5006, 8
      %v5015 = vadd.s32 %v5006, 9
      %v5016 = vadd.s32 %v5006, 10
      %v5017 = vadd.s32 %v5006, 11
      %v5018 = vadd.s32 %v5006, 12
      %v5019 = vadd.s32 %v5006, 13
      %v5020 = vadd.s32 %v5006, 14
      %v5021 = vadd.s32 %v5006, 15
      %vm5022 = vcmp.ge.s32.totalorder %v5006, 0
      %vm5023 = vcmp.ge.s32.totalorder %v5007, 0
      %vm5024 = vcmp.ge.s32.totalorder %v5008, 0
      %vm5025 = vcmp.ge.s32.totalorder %v5009, 0
      %vm5026 = vcmp.ge.s32.totalorder %v5010, 0
      %vm5027 = vcmp.ge.s32.totalorder %v5011, 0
      %vm5028 = vcmp.ge.s32.totalorder %v5012, 0
      %vm5029 = vcmp.ge.s32.totalorder %v5013, 0
      %vm5030 = vcmp.ge.s32.totalorder %v5014, 0
      %vm5031 = vcmp.ge.s32.totalorder %v5015, 0
      %vm5032 = vcmp.ge.s32.totalorder %v5016, 0
      %vm5033 = vcmp.ge.s32.totalorder %v5017, 0
      %vm5034 = vcmp.ge.s32.totalorder %v5018, 0
      %vm5035 = vcmp.ge.s32.totalorder %v5019, 0
      %vm5036 = vcmp.ge.s32.totalorder %v5020, 0
      %vm5037 = vcmp.ge.s32.totalorder %v5021, 0
      %vm5038 = vcmp.lt.s32.totalorder %v5006, 16
      %vm5039 = vcmp.lt.s32.totalorder %v5007, 16
      %vm5040 = vcmp.lt.s32.totalorder %v5008, 16
      %vm5041 = vcmp.lt.s32.totalorder %v5009, 16
      %vm5042 = vcmp.lt.s32.totalorder %v5010, 16
      %vm5043 = vcmp.lt.s32.totalorder %v5011, 16
      %vm5044 = vcmp.lt.s32.totalorder %v5012, 16
      %vm5045 = vcmp.lt.s32.totalorder %v5013, 16
      %vm5046 = vcmp.lt.s32.totalorder %v5014, 16
      %vm5047 = vcmp.lt.s32.totalorder %v5015, 16
      %vm5048 = vcmp.lt.s32.totalorder %v5016, 16
      %vm5049 = vcmp.lt.s32.totalorder %v5017, 16
      %vm5050 = vcmp.lt.s32.totalorder %v5018, 16
      %vm5051 = vcmp.lt.s32.totalorder %v5019, 16
      %vm5052 = vcmp.lt.s32.totalorder %v5020, 16
      %vm5053 = vcmp.lt.s32.totalorder %v5021, 16
      %vm5054 = vmand %vm5022, %vm5038
      %vm5055 = vmand %vm5023, %vm5039
      %vm5056 = vmand %vm5024, %vm5040
      %vm5057 = vmand %vm5025, %vm5041
      %vm5058 = vmand %vm5026, %vm5042
      %vm5059 = vmand %vm5027, %vm5043
      %vm5060 = vmand %vm5028, %vm5044
      %vm5061 = vmand %vm5029, %vm5045
      %vm5062 = vmand %vm5030, %vm5046
      %vm5063 = vmand %vm5031, %vm5047
      %vm5064 = vmand %vm5032, %vm5048
      %vm5065 = vmand %vm5033, %vm5049
      %vm5066 = vmand %vm5034, %vm5050
      %vm5067 = vmand %vm5035, %vm5051
      %vm5068 = vmand %vm5036, %vm5052
      %vm5069 = vmand %vm5037, %vm5053
      %v5070 = vsel %vm5054, 1, 0
      %v5071 = vsel %vm5055, 1, 0
      %v5072 = vsel %vm5056, 1, 0
      %v5073 = vsel %vm5057, 1, 0
      %v5074 = vsel %vm5058, 1, 0
      %v5075 = vsel %vm5059, 1, 0
      %v5076 = vsel %vm5060, 1, 0
      %v5077 = vsel %vm5061, 1, 0
      %v5078 = vsel %vm5062, 1, 0
      %v5079 = vsel %vm5063, 1, 0
      %v5080 = vsel %vm5064, 1, 0
      %v5081 = vsel %vm5065, 1, 0
      %v5082 = vsel %vm5066, 1, 0
      %v5083 = vsel %vm5067, 1, 0
      %v5084 = vsel %vm5068, 1, 0
      %v5085 = vsel %vm5069, 1, 0
      %vm5086 = vcmp.eq.s32.totalorder %v5070, 1
      %vm5087 = vcmp.eq.s32.totalorder %v5071, 1
      %vm5088 = vcmp.eq.s32.totalorder %v5072, 1
      %vm5089 = vcmp.eq.s32.totalorder %v5073, 1
      %vm5090 = vcmp.eq.s32.totalorder %v5074, 1
      %vm5091 = vcmp.eq.s32.totalorder %v5075, 1
      %vm5092 = vcmp.eq.s32.totalorder %v5076, 1
      %vm5093 = vcmp.eq.s32.totalorder %v5077, 1
      %vm5094 = vcmp.eq.s32.totalorder %v5078, 1
      %vm5095 = vcmp.eq.s32.totalorder %v5079, 1
      %vm5096 = vcmp.eq.s32.totalorder %v5080, 1
      %vm5097 = vcmp.eq.s32.totalorder %v5081, 1
      %vm5098 = vcmp.eq.s32.totalorder %v5082, 1
      %vm5099 = vcmp.eq.s32.totalorder %v5083, 1
      %vm5100 = vcmp.eq.s32.totalorder %v5084, 1
      %vm5101 = vcmp.eq.s32.totalorder %v5085, 1
      %v5102 = vsel %vm5086, %v4988, 0
      %v5103 = vsel %vm5087, %v4989, 0
      %v5104 = vsel %vm5088, %v4990, 0
      %v5105 = vsel %vm5089, %v4991, 0
      %v5106 = vsel %vm5090, %v4992, 0
      %v5107 = vsel %vm5091, %v4993, 0
      %v5108 = vsel %vm5092, %v4994, 0
      %v5109 = vsel %vm5093, %v4995, 0
      %v5110 = vsel %vm5094, %v4996, 0
      %v5111 = vsel %vm5095, %v4997, 0
      %v5112 = vsel %vm5096, %v4998, 0
      %v5113 = vsel %vm5097, %v4999, 0
      %v5114 = vsel %vm5098, %v5000, 0
      %v5115 = vsel %vm5099, %v5001, 0
      %v5116 = vsel %vm5100, %v5002, 0
      %v5117 = vsel %vm5101, %v5003, 0
      %v5118 = vmax.bf16 %v5102, %v5103
      %v5119 = vmax.bf16 %v5103, %v5104
      %v5120 = vmax.bf16 %v5104, %v5105
      %v5121 = vmax.bf16 %v5105, %v5106
      %v5122 = vmax.bf16 %v5106, %v5107
      %v5123 = vmax.bf16 %v5107, %v5108
      %v5124 = vmax.bf16 %v5108, %v5109
      %v5125 = vmax.bf16 %v5109, %v5110
      %v5126 = vmax.bf16 %v5110, %v5111
      %v5127 = vmax.bf16 %v5111, %v5112
      %v5128 = vmax.bf16 %v5112, %v5113
      %v5129 = vmax.bf16 %v5113, %v5114
      %v5130 = vmax.bf16 %v5114, %v5115
      %v5131 = vmax.bf16 %v5115, %v5116
      %v5132 = vmax.bf16 %v5118, %v5104
      %v5133 = vmax.bf16 %v5119, %v5105
      %v5134 = vmax.bf16 %v5120, %v5106
      %v5135 = vmax.bf16 %v5121, %v5107
      %v5136 = vmax.bf16 %v5122, %v5108
      %v5137 = vmax.bf16 %v5123, %v5109
      %v5138 = vmax.bf16 %v5124, %v5110
      %v5139 = vmax.bf16 %v5125, %v5111
      %v5140 = vmax.bf16 %v5126, %v5112
      %v5141 = vmax.bf16 %v5127, %v5113
      %v5142 = vmax.bf16 %v5128, %v5114
      %v5143 = vmax.bf16 %v5129, %v5115
      %v5144 = vmax.bf16 %v5130, %v5116
      %v5145 = vmax.bf16 %v5131, %v5117
      %v5147 = vshrl.u32 %v5132, 16
      %v5149 = vrot.slane %v5147, 7
      %v5150 = vshll.u32 %v5132, 16
      %v5152 = vor.u32 %v5149, %v5150
      %v5154 = vshrl.u32 %v5133, 16
      %v5156 = vrot.slane %v5154, 7
      %v5157 = vshll.u32 %v5133, 16
      %v5159 = vor.u32 %v5156, %v5157
      %v5161 = vshrl.u32 %v5134, 16
      %v5163 = vrot.slane %v5161, 7
      %v5164 = vshll.u32 %v5134, 16
      %v5166 = vor.u32 %v5163, %v5164
      %v5168 = vshrl.u32 %v5135, 16
      %v5170 = vrot.slane %v5168, 7
      %v5171 = vshll.u32 %v5135, 16
      %v5173 = vor.u32 %v5170, %v5171
      %v5175 = vshrl.u32 %v5136, 16
      %v5177 = vrot.slane %v5175, 7
      %v5178 = vshll.u32 %v5136, 16
      %v5180 = vor.u32 %v5177, %v5178
      %v5182 = vshrl.u32 %v5137, 16
      %v5184 = vrot.slane %v5182, 7
      %v5185 = vshll.u32 %v5137, 16
      %v5187 = vor.u32 %v5184, %v5185
      %v5189 = vshrl.u32 %v5138, 16
      %v5191 = vrot.slane %v5189, 7
      %v5192 = vshll.u32 %v5138, 16
      %v5194 = vor.u32 %v5191, %v5192
      %v5196 = vshrl.u32 %v5139, 16
      %v5198 = vrot.slane %v5196, 7
      %v5199 = vshll.u32 %v5139, 16
      %v5201 = vor.u32 %v5198, %v5199
      %v5203 = vshrl.u32 %v5140, 16
      %v5205 = vrot.slane %v5203, 7
      %v5206 = vshll.u32 %v5140, 16
      %v5208 = vor.u32 %v5205, %v5206
      %v5210 = vshrl.u32 %v5141, 16
      %v5212 = vrot.slane %v5210, 7
      %v5213 = vshll.u32 %v5141, 16
      %v5215 = vor.u32 %v5212, %v5213
      %v5217 = vshrl.u32 %v5142, 16
      %v5219 = vrot.slane %v5217, 7
      %v5220 = vshll.u32 %v5142, 16
      %v5222 = vor.u32 %v5219, %v5220
      %v5224 = vshrl.u32 %v5143, 16
      %v5226 = vrot.slane %v5224, 7
      %v5227 = vshll.u32 %v5143, 16
      %v5229 = vor.u32 %v5226, %v5227
      %v5231 = vshrl.u32 %v5144, 16
      %v5233 = vrot.slane %v5231, 7
      %v5234 = vshll.u32 %v5144, 16
      %v5236 = vor.u32 %v5233, %v5234
      %v5238 = vshrl.u32 %v5145, 16
      %v5240 = vrot.slane %v5238, 7
      %v5241 = vshll.u32 %v5145, 16
      %v5243 = vor.u32 %v5240, %v5241
      %vm5272 = vcmask 1040384
      %vm5273 = vsmask.f32 256
      %vm5274 = vmand %vm5272, %vm5273
      %v5275 = vsel %vm5274, 0, %v5152
      %v5276 = vsel %vm5274, 0, %v5159
      %v5277 = vsel %vm5274, 0, %v5166
      %v5278 = vsel %vm5274, 0, %v5173
      %v5279 = vsel %vm5274, 0, %v5180
      %v5280 = vsel %vm5274, 0, %v5187
      %v5281 = vsel %vm5274, 0, %v5194
      %v5282 = vsel %vm5274, 0, %v5201
      %v5283 = vsel %vm5274, 0, %v5208
      %v5284 = vsel %vm5274, 0, %v5215
      %v5285 = vsel %vm5274, 0, %v5222
      %v5286 = vsel %vm5274, 0, %v5229
      %v5287 = vsel %vm5274, 0, %v5236
      %v5288 = vsel %vm5274, 0, %v5243
      %v5289 = vsel %vm5274, %v5149, 0
      %v5290 = vsel %vm5274, %v5156, 0
      %v5291 = vsel %vm5274, %v5163, 0
      %v5292 = vsel %vm5274, %v5170, 0
      %v5293 = vsel %vm5274, %v5177, 0
      %v5294 = vsel %vm5274, %v5184, 0
      %v5295 = vsel %vm5274, %v5191, 0
      %v5296 = vsel %vm5274, %v5198, 0
      %v5297 = vsel %vm5274, %v5205, 0
      %v5298 = vsel %vm5274, %v5212, 0
      %v5299 = vsel %vm5274, %v5219, 0
      %v5300 = vsel %vm5274, %v5226, 0
      %v5301 = vsel %vm5274, %v5233, 0
      %v5302 = vsel %vm5274, %v5240, 0
      %v5303 = vmax.bf16 %v5132, %v5275
      %v5304 = vmax.bf16 %v5133, %v5276
      %v5305 = vmax.bf16 %v5134, %v5277
      %v5306 = vmax.bf16 %v5135, %v5278
      %v5307 = vmax.bf16 %v5136, %v5279
      %v5308 = vmax.bf16 %v5137, %v5280
      %v5309 = vmax.bf16 %v5138, %v5281
      %v5310 = vmax.bf16 %v5139, %v5282
      %v5311 = vmax.bf16 %v5140, %v5283
      %v5312 = vmax.bf16 %v5141, %v5284
      %v5313 = vmax.bf16 %v5142, %v5285
      %v5314 = vmax.bf16 %v5143, %v5286
      %v5315 = vmax.bf16 %v5144, %v5287
      %v5316 = vmax.bf16 %v5145, %v5288
      %vm5345 = vcmask 1046528
      %v5346 = vrot.slane %v5275, 1
      %v5347 = vrot.slane %v5289, 1
      %v5348 = vsel %vm5345, %v5346, %v5347
      %v5349 = vrot.slane %v5276, 1
      %v5350 = vrot.slane %v5290, 1
      %v5351 = vsel %vm5345, %v5349, %v5350
      %v5352 = vrot.slane %v5277, 1
      %v5353 = vrot.slane %v5291, 1
      %v5354 = vsel %vm5345, %v5352, %v5353
      %v5355 = vrot.slane %v5278, 1
      %v5356 = vrot.slane %v5292, 1
      %v5357 = vsel %vm5345, %v5355, %v5356
      %v5358 = vrot.slane %v5279, 1
      %v5359 = vrot.slane %v5293, 1
      %v5360 = vsel %vm5345, %v5358, %v5359
      %v5361 = vrot.slane %v5280, 1
      %v5362 = vrot.slane %v5294, 1
      %v5363 = vsel %vm5345, %v5361, %v5362
      %v5364 = vrot.slane %v5281, 1
      %v5365 = vrot.slane %v5295, 1
      %v5366 = vsel %vm5345, %v5364, %v5365
      %v5367 = vrot.slane %v5282, 1
      %v5368 = vrot.slane %v5296, 1
      %v5369 = vsel %vm5345, %v5367, %v5368
      %v5370 = vrot.slane %v5283, 1
      %v5371 = vrot.slane %v5297, 1
      %v5372 = vsel %vm5345, %v5370, %v5371
      %v5373 = vrot.slane %v5284, 1
      %v5374 = vrot.slane %v5298, 1
      %v5375 = vsel %vm5345, %v5373, %v5374
      %v5376 = vrot.slane %v5285, 1
      %v5377 = vrot.slane %v5299, 1
      %v5378 = vsel %vm5345, %v5376, %v5377
      %v5379 = vrot.slane %v5286, 1
      %v5380 = vrot.slane %v5300, 1
      %v5381 = vsel %vm5345, %v5379, %v5380
      %v5382 = vrot.slane %v5287, 1
      %v5383 = vrot.slane %v5301, 1
      %v5384 = vsel %vm5345, %v5382, %v5383
      %v5385 = vrot.slane %v5288, 1
      %v5386 = vrot.slane %v5302, 1
      %v5387 = vsel %vm5345, %v5385, %v5386
      %v5402 = vmax.bf16 %v5303, %v5348
      %v5403 = vmax.bf16 %v5304, %v5351
      %v5404 = vmax.bf16 %v5305, %v5354
      %v5405 = vmax.bf16 %v5306, %v5357
      %v5406 = vmax.bf16 %v5307, %v5360
      %v5407 = vmax.bf16 %v5308, %v5363
      %v5408 = vmax.bf16 %v5309, %v5366
      %v5409 = vmax.bf16 %v5310, %v5369
      %v5410 = vmax.bf16 %v5311, %v5372
      %v5411 = vmax.bf16 %v5312, %v5375
      %v5412 = vmax.bf16 %v5313, %v5378
      %v5413 = vmax.bf16 %v5314, %v5381
      %v5414 = vmax.bf16 %v5315, %v5384
      %v5415 = vmax.bf16 %v5316, %v5387
      %v5416 = vmax.bf16 %v5402, %v5403
      %v5417 = vmax.bf16 %v5403, %v5404
      %v5418 = vmax.bf16 %v5404, %v5405
      %v5419 = vmax.bf16 %v5405, %v5406
      %v5420 = vmax.bf16 %v5406, %v5407
      %v5421 = vmax.bf16 %v5407, %v5408
      %v5422 = vmax.bf16 %v5408, %v5409
      %v5423 = vmax.bf16 %v5409, %v5410
      %v5424 = vmax.bf16 %v5410, %v5411
      %v5425 = vmax.bf16 %v5411, %v5412
      %v5426 = vmax.bf16 %v5412, %v5413
      %v5427 = vmax.bf16 %v5413, %v5414
      %v5428 = vmax.bf16 %v5416, %v5404
      %v5429 = vmax.bf16 %v5417, %v5405
      %v5430 = vmax.bf16 %v5418, %v5406
      %v5431 = vmax.bf16 %v5419, %v5407
      %v5432 = vmax.bf16 %v5420, %v5408
      %v5433 = vmax.bf16 %v5421, %v5409
      %v5434 = vmax.bf16 %v5422, %v5410
      %v5435 = vmax.bf16 %v5423, %v5411
      %v5436 = vmax.bf16 %v5424, %v5412
      %v5437 = vmax.bf16 %v5425, %v5413
      %v5438 = vmax.bf16 %v5426, %v5414
      %v5439 = vmax.bf16 %v5427, %v5415
      %v5441 = vshrl.u32 %v5428, 16
      %v5443 = vrot.slane %v5441, 7
      %v5444 = vshll.u32 %v5428, 16
      %v5446 = vor.u32 %v5443, %v5444
      %v5448 = vshrl.u32 %v5429, 16
      %v5450 = vrot.slane %v5448, 7
      %v5451 = vshll.u32 %v5429, 16
      %v5453 = vor.u32 %v5450, %v5451
      %v5455 = vshrl.u32 %v5430, 16
      %v5457 = vrot.slane %v5455, 7
      %v5458 = vshll.u32 %v5430, 16
      %v5460 = vor.u32 %v5457, %v5458
      %v5462 = vshrl.u32 %v5431, 16
      %v5464 = vrot.slane %v5462, 7
      %v5465 = vshll.u32 %v5431, 16
      %v5467 = vor.u32 %v5464, %v5465
      %v5469 = vshrl.u32 %v5432, 16
      %v5471 = vrot.slane %v5469, 7
      %v5472 = vshll.u32 %v5432, 16
      %v5474 = vor.u32 %v5471, %v5472
      %v5476 = vshrl.u32 %v5433, 16
      %v5478 = vrot.slane %v5476, 7
      %v5479 = vshll.u32 %v5433, 16
      %v5481 = vor.u32 %v5478, %v5479
      %v5483 = vshrl.u32 %v5434, 16
      %v5485 = vrot.slane %v5483, 7
      %v5486 = vshll.u32 %v5434, 16
      %v5488 = vor.u32 %v5485, %v5486
      %v5490 = vshrl.u32 %v5435, 16
      %v5492 = vrot.slane %v5490, 7
      %v5493 = vshll.u32 %v5435, 16
      %v5495 = vor.u32 %v5492, %v5493
      %v5497 = vshrl.u32 %v5436, 16
      %v5499 = vrot.slane %v5497, 7
      %v5500 = vshll.u32 %v5436, 16
      %v5502 = vor.u32 %v5499, %v5500
      %v5504 = vshrl.u32 %v5437, 16
      %v5506 = vrot.slane %v5504, 7
      %v5507 = vshll.u32 %v5437, 16
      %v5509 = vor.u32 %v5506, %v5507
      %v5511 = vshrl.u32 %v5438, 16
      %v5513 = vrot.slane %v5511, 7
      %v5514 = vshll.u32 %v5438, 16
      %v5516 = vor.u32 %v5513, %v5514
      %v5518 = vshrl.u32 %v5439, 16
      %v5520 = vrot.slane %v5518, 7
      %v5521 = vshll.u32 %v5439, 16
      %v5523 = vor.u32 %v5520, %v5521
      %v5548 = vsel %vm5274, 0, %v5446
      %v5549 = vsel %vm5274, 0, %v5453
      %v5550 = vsel %vm5274, 0, %v5460
      %v5551 = vsel %vm5274, 0, %v5467
      %v5552 = vsel %vm5274, 0, %v5474
      %v5553 = vsel %vm5274, 0, %v5481
      %v5554 = vsel %vm5274, 0, %v5488
      %v5555 = vsel %vm5274, 0, %v5495
      %v5556 = vsel %vm5274, 0, %v5502
      %v5557 = vsel %vm5274, 0, %v5509
      %v5558 = vsel %vm5274, 0, %v5516
      %v5559 = vsel %vm5274, 0, %v5523
      %v5560 = vsel %vm5274, %v5443, 0
      %v5561 = vsel %vm5274, %v5450, 0
      %v5562 = vsel %vm5274, %v5457, 0
      %v5563 = vsel %vm5274, %v5464, 0
      %v5564 = vsel %vm5274, %v5471, 0
      %v5565 = vsel %vm5274, %v5478, 0
      %v5566 = vsel %vm5274, %v5485, 0
      %v5567 = vsel %vm5274, %v5492, 0
      %v5568 = vsel %vm5274, %v5499, 0
      %v5569 = vsel %vm5274, %v5506, 0
      %v5570 = vsel %vm5274, %v5513, 0
      %v5571 = vsel %vm5274, %v5520, 0
      %v5572 = vmax.bf16 %v5428, %v5548
      %v5573 = vmax.bf16 %v5429, %v5549
      %v5574 = vmax.bf16 %v5430, %v5550
      %v5575 = vmax.bf16 %v5431, %v5551
      %v5576 = vmax.bf16 %v5432, %v5552
      %v5577 = vmax.bf16 %v5433, %v5553
      %v5578 = vmax.bf16 %v5434, %v5554
      %v5579 = vmax.bf16 %v5435, %v5555
      %v5580 = vmax.bf16 %v5436, %v5556
      %v5581 = vmax.bf16 %v5437, %v5557
      %v5582 = vmax.bf16 %v5438, %v5558
      %v5583 = vmax.bf16 %v5439, %v5559
      %v5608 = vrot.slane %v5548, 1
      %v5609 = vrot.slane %v5560, 1
      %v5610 = vsel %vm5345, %v5608, %v5609
      %v5611 = vrot.slane %v5549, 1
      %v5612 = vrot.slane %v5561, 1
      %v5613 = vsel %vm5345, %v5611, %v5612
      %v5614 = vrot.slane %v5550, 1
      %v5615 = vrot.slane %v5562, 1
      %v5616 = vsel %vm5345, %v5614, %v5615
      %v5617 = vrot.slane %v5551, 1
      %v5618 = vrot.slane %v5563, 1
      %v5619 = vsel %vm5345, %v5617, %v5618
      %v5620 = vrot.slane %v5552, 1
      %v5621 = vrot.slane %v5564, 1
      %v5622 = vsel %vm5345, %v5620, %v5621
      %v5623 = vrot.slane %v5553, 1
      %v5624 = vrot.slane %v5565, 1
      %v5625 = vsel %vm5345, %v5623, %v5624
      %v5626 = vrot.slane %v5554, 1
      %v5627 = vrot.slane %v5566, 1
      %v5628 = vsel %vm5345, %v5626, %v5627
      %v5629 = vrot.slane %v5555, 1
      %v5630 = vrot.slane %v5567, 1
      %v5631 = vsel %vm5345, %v5629, %v5630
      %v5632 = vrot.slane %v5556, 1
      %v5633 = vrot.slane %v5568, 1
      %v5634 = vsel %vm5345, %v5632, %v5633
      %v5635 = vrot.slane %v5557, 1
      %v5636 = vrot.slane %v5569, 1
      %v5637 = vsel %vm5345, %v5635, %v5636
      %v5638 = vrot.slane %v5558, 1
      %v5639 = vrot.slane %v5570, 1
      %v5640 = vsel %vm5345, %v5638, %v5639
      %v5641 = vrot.slane %v5559, 1
      %v5642 = vrot.slane %v5571, 1
      %v5643 = vsel %vm5345, %v5641, %v5642
      %v5656 = vmax.bf16 %v5572, %v5610
      %v5657 = vmax.bf16 %v5573, %v5613
      %v5658 = vmax.bf16 %v5574, %v5616
      %v5659 = vmax.bf16 %v5575, %v5619
      %v5660 = vmax.bf16 %v5576, %v5622
      %v5661 = vmax.bf16 %v5577, %v5625
      %v5662 = vmax.bf16 %v5578, %v5628
      %v5663 = vmax.bf16 %v5579, %v5631
      %v5664 = vmax.bf16 %v5580, %v5634
      %v5665 = vmax.bf16 %v5581, %v5637
      %v5666 = vmax.bf16 %v5582, %v5640
      %v5667 = vmax.bf16 %v5583, %v5643
      %v5668 = vmax.bf16 %v5656, %v5657
      %v5669 = vmax.bf16 %v5657, %v5658
      %v5670 = vmax.bf16 %v5658, %v5659
      %v5671 = vmax.bf16 %v5659, %v5660
      %v5672 = vmax.bf16 %v5660, %v5661
      %v5673 = vmax.bf16 %v5661, %v5662
      %v5674 = vmax.bf16 %v5662, %v5663
      %v5675 = vmax.bf16 %v5663, %v5664
      %v5676 = vmax.bf16 %v5668, %v5658
      %v5677 = vmax.bf16 %v5669, %v5659
      %v5678 = vmax.bf16 %v5670, %v5660
      %v5679 = vmax.bf16 %v5671, %v5661
      %v5680 = vmax.bf16 %v5672, %v5662
      %v5681 = vmax.bf16 %v5673, %v5663
      %v5682 = vmax.bf16 %v5674, %v5664
      %v5683 = vmax.bf16 %v5675, %v5665
      %v5684 = vmax.bf16 %v5676, %v5659
      %v5685 = vmax.bf16 %v5677, %v5660
      %v5686 = vmax.bf16 %v5678, %v5661
      %v5687 = vmax.bf16 %v5679, %v5662
      %v5688 = vmax.bf16 %v5680, %v5663
      %v5689 = vmax.bf16 %v5681, %v5664
      %v5690 = vmax.bf16 %v5682, %v5665
      %v5691 = vmax.bf16 %v5683, %v5666
      %v5692 = vmax.bf16 %v5684, %v5660
      %v5693 = vmax.bf16 %v5685, %v5661
      %v5694 = vmax.bf16 %v5686, %v5662
      %v5695 = vmax.bf16 %v5687, %v5663
      %v5696 = vmax.bf16 %v5688, %v5664
      %v5697 = vmax.bf16 %v5689, %v5665
      %v5698 = vmax.bf16 %v5690, %v5666
      %v5699 = vmax.bf16 %v5691, %v5667
      %v5708 = vrot.slane %v5692, 7
      %v5709 = vrot.slane %v5693, 7
      %v5710 = vrot.slane %v5694, 7
      %v5711 = vrot.slane %v5695, 7
      %v5712 = vrot.slane %v5696, 7
      %v5713 = vrot.slane %v5697, 7
      %v5714 = vrot.slane %v5698, 7
      %v5715 = vrot.slane %v5699, 7
      %vm5716 = vcmask 1040384
      %v5719 = vsel %vm5716, 0, %v5708
      %v5722 = vsel %vm5716, 0, %v5709
      %v5725 = vsel %vm5716, 0, %v5710
      %v5728 = vsel %vm5716, 0, %v5711
      %v5731 = vsel %vm5716, 0, %v5712
      %v5734 = vsel %vm5716, 0, %v5713
      %v5737 = vsel %vm5716, 0, %v5714
      %v5740 = vsel %vm5716, 0, %v5715
      %v5742 = vsel %vm5716, %v5708, 0
      %v5743 = vsel %vm5716, %v5709, 0
      %v5744 = vsel %vm5716, %v5710, 0
      %v5745 = vsel %vm5716, %v5711, 0
      %v5746 = vsel %vm5716, %v5712, 0
      %v5747 = vsel %vm5716, %v5713, 0
      %v5748 = vsel %vm5716, %v5714, 0
      %v5749 = vsel %vm5716, %v5715, 0
      %v5750 = vmax.bf16 %v5692, %v5719
      %v5751 = vmax.bf16 %v5693, %v5722
      %v5752 = vmax.bf16 %v5694, %v5725
      %v5753 = vmax.bf16 %v5695, %v5728
      %v5754 = vmax.bf16 %v5696, %v5731
      %v5755 = vmax.bf16 %v5697, %v5734
      %v5756 = vmax.bf16 %v5698, %v5737
      %v5757 = vmax.bf16 %v5699, %v5740
      %vm5758 = vsmask.f32 7424
      %v5759 = vshrl.u32 %v5719, 16
      %v5761 = vshll.u32 %v5719, 16
      %v5763 = vrot.slane %v5761, 1
      %v5764 = vor.u32 %v5759, %v5763
      %v5765 = vshll.u32 %v5742, 16
      %v5767 = vrot.slane %v5765, 1
      %v5768 = vsel %vm5758, %v5764, %v5767
      %v5769 = vshrl.u32 %v5722, 16
      %v5771 = vshll.u32 %v5722, 16
      %v5773 = vrot.slane %v5771, 1
      %v5774 = vor.u32 %v5769, %v5773
      %v5775 = vshll.u32 %v5743, 16
      %v5777 = vrot.slane %v5775, 1
      %v5778 = vsel %vm5758, %v5774, %v5777
      %v5779 = vshrl.u32 %v5725, 16
      %v5781 = vshll.u32 %v5725, 16
      %v5783 = vrot.slane %v5781, 1
      %v5784 = vor.u32 %v5779, %v5783
      %v5785 = vshll.u32 %v5744, 16
      %v5787 = vrot.slane %v5785, 1
      %v5788 = vsel %vm5758, %v5784, %v5787
      %v5789 = vshrl.u32 %v5728, 16
      %v5791 = vshll.u32 %v5728, 16
      %v5793 = vrot.slane %v5791, 1
      %v5794 = vor.u32 %v5789, %v5793
      %v5795 = vshll.u32 %v5745, 16
      %v5797 = vrot.slane %v5795, 1
      %v5798 = vsel %vm5758, %v5794, %v5797
      %v5799 = vshrl.u32 %v5731, 16
      %v5801 = vshll.u32 %v5731, 16
      %v5803 = vrot.slane %v5801, 1
      %v5804 = vor.u32 %v5799, %v5803
      %v5805 = vshll.u32 %v5746, 16
      %v5807 = vrot.slane %v5805, 1
      %v5808 = vsel %vm5758, %v5804, %v5807
      %v5809 = vshrl.u32 %v5734, 16
      %v5811 = vshll.u32 %v5734, 16
      %v5813 = vrot.slane %v5811, 1
      %v5814 = vor.u32 %v5809, %v5813
      %v5815 = vshll.u32 %v5747, 16
      %v5817 = vrot.slane %v5815, 1
      %v5818 = vsel %vm5758, %v5814, %v5817
      %v5819 = vshrl.u32 %v5737, 16
      %v5821 = vshll.u32 %v5737, 16
      %v5823 = vrot.slane %v5821, 1
      %v5824 = vor.u32 %v5819, %v5823
      %v5825 = vshll.u32 %v5748, 16
      %v5827 = vrot.slane %v5825, 1
      %v5828 = vsel %vm5758, %v5824, %v5827
      %v5829 = vshrl.u32 %v5740, 16
      %v5831 = vshll.u32 %v5740, 16
      %v5833 = vrot.slane %v5831, 1
      %v5834 = vor.u32 %v5829, %v5833
      %v5835 = vshll.u32 %v5749, 16
      %v5837 = vrot.slane %v5835, 1
      %v5838 = vsel %vm5758, %v5834, %v5837
      %v5847 = vmax.bf16 %v5750, %v5768
      %v5848 = vmax.bf16 %v5751, %v5778
      %v5849 = vmax.bf16 %v5752, %v5788
      %v5850 = vmax.bf16 %v5753, %v5798
      %v5851 = vmax.bf16 %v5754, %v5808
      %v5852 = vmax.bf16 %v5755, %v5818
      %v5853 = vmax.bf16 %v5756, %v5828
      %v5854 = vmax.bf16 %v5757, %v5838
      %vm5855 = vsmask.f32 6400
      %v5856 = vrot.slane %v5759, 1
      %v5857 = vrot.slane %v5761, 2
      %v5858 = vor.u32 %v5856, %v5857
      %v5859 = vshrl.u32 %v5742, 16
      %v5861 = vrot.slane %v5859, 1
      %v5862 = vrot.slane %v5765, 2
      %v5863 = vor.u32 %v5861, %v5862
      %v5864 = vsel %vm5855, %v5858, %v5863
      %v5865 = vrot.slane %v5769, 1
      %v5866 = vrot.slane %v5771, 2
      %v5867 = vor.u32 %v5865, %v5866
      %v5868 = vshrl.u32 %v5743, 16
      %v5870 = vrot.slane %v5868, 1
      %v5871 = vrot.slane %v5775, 2
      %v5872 = vor.u32 %v5870, %v5871
      %v5873 = vsel %vm5855, %v5867, %v5872
      %v5874 = vrot.slane %v5779, 1
      %v5875 = vrot.slane %v5781, 2
      %v5876 = vor.u32 %v5874, %v5875
      %v5877 = vshrl.u32 %v5744, 16
      %v5879 = vrot.slane %v5877, 1
      %v5880 = vrot.slane %v5785, 2
      %v5881 = vor.u32 %v5879, %v5880
      %v5882 = vsel %vm5855, %v5876, %v5881
      %v5883 = vrot.slane %v5789, 1
      %v5884 = vrot.slane %v5791, 2
      %v5885 = vor.u32 %v5883, %v5884
      %v5886 = vshrl.u32 %v5745, 16
      %v5888 = vrot.slane %v5886, 1
      %v5889 = vrot.slane %v5795, 2
      %v5890 = vor.u32 %v5888, %v5889
      %v5891 = vsel %vm5855, %v5885, %v5890
      %v5892 = vrot.slane %v5799, 1
      %v5893 = vrot.slane %v5801, 2
      %v5894 = vor.u32 %v5892, %v5893
      %v5895 = vshrl.u32 %v5746, 16
      %v5897 = vrot.slane %v5895, 1
      %v5898 = vrot.slane %v5805, 2
      %v5899 = vor.u32 %v5897, %v5898
      %v5900 = vsel %vm5855, %v5894, %v5899
      %v5901 = vrot.slane %v5809, 1
      %v5902 = vrot.slane %v5811, 2
      %v5903 = vor.u32 %v5901, %v5902
      %v5904 = vshrl.u32 %v5747, 16
      %v5906 = vrot.slane %v5904, 1
      %v5907 = vrot.slane %v5815, 2
      %v5908 = vor.u32 %v5906, %v5907
      %v5909 = vsel %vm5855, %v5903, %v5908
      %v5910 = vrot.slane %v5819, 1
      %v5911 = vrot.slane %v5821, 2
      %v5912 = vor.u32 %v5910, %v5911
      %v5913 = vshrl.u32 %v5748, 16
      %v5915 = vrot.slane %v5913, 1
      %v5916 = vrot.slane %v5825, 2
      %v5917 = vor.u32 %v5915, %v5916
      %v5918 = vsel %vm5855, %v5912, %v5917
      %v5919 = vrot.slane %v5829, 1
      %v5920 = vrot.slane %v5831, 2
      %v5921 = vor.u32 %v5919, %v5920
      %v5922 = vshrl.u32 %v5749, 16
      %v5924 = vrot.slane %v5922, 1
      %v5925 = vrot.slane %v5835, 2
      %v5926 = vor.u32 %v5924, %v5925
      %v5927 = vsel %vm5855, %v5921, %v5926
      %v5936 = vmax.bf16 %v5847, %v5864
      %v5937 = vmax.bf16 %v5848, %v5873
      %v5938 = vmax.bf16 %v5849, %v5882
      %v5939 = vmax.bf16 %v5850, %v5891
      %v5940 = vmax.bf16 %v5851, %v5900
      %v5941 = vmax.bf16 %v5852, %v5909
      %v5942 = vmax.bf16 %v5853, %v5918
      %v5943 = vmax.bf16 %v5854, %v5927
      %vm5960 = vcmask 1045504
      %v5961 = vrot.slane %v5719, 2
      %v5962 = vrot.slane %v5742, 2
      %v5963 = vsel %vm5960, %v5961, %v5962
      %v5964 = vrot.slane %v5722, 2
      %v5965 = vrot.slane %v5743, 2
      %v5966 = vsel %vm5960, %v5964, %v5965
      %v5967 = vrot.slane %v5725, 2
      %v5968 = vrot.slane %v5744, 2
      %v5969 = vsel %vm5960, %v5967, %v5968
      %v5970 = vrot.slane %v5728, 2
      %v5971 = vrot.slane %v5745, 2
      %v5972 = vsel %vm5960, %v5970, %v5971
      %v5973 = vrot.slane %v5731, 2
      %v5974 = vrot.slane %v5746, 2
      %v5975 = vsel %vm5960, %v5973, %v5974
      %v5976 = vrot.slane %v5734, 2
      %v5977 = vrot.slane %v5747, 2
      %v5978 = vsel %vm5960, %v5976, %v5977
      %v5979 = vrot.slane %v5737, 2
      %v5980 = vrot.slane %v5748, 2
      %v5981 = vsel %vm5960, %v5979, %v5980
      %v5982 = vrot.slane %v5740, 2
      %v5983 = vrot.slane %v5749, 2
      %v5984 = vsel %vm5960, %v5982, %v5983
      %v5993 = vmax.bf16 %v5936, %v5963
      %v5994 = vmax.bf16 %v5937, %v5966
      %v5995 = vmax.bf16 %v5938, %v5969
      %v5996 = vmax.bf16 %v5939, %v5972
      %v5997 = vmax.bf16 %v5940, %v5975
      %v5998 = vmax.bf16 %v5941, %v5978
      %v5999 = vmax.bf16 %v5942, %v5981
      %v6000 = vmax.bf16 %v5943, %v5984
      %v6001 = vld [vmem:[%s4] sm:$0x3]
      %s6002 = scalar_lea.vmem %s4, 2
      %v6003 = vld [vmem:[%s6002] sm:$0x3]
      %v6005 = vsel %vm805, %v5405, 0
      %v6008 = vsel %vm805, %v5406, 0
      %v6011 = vsel %vm805, %v5407, 0
      %v6014 = vsel %vm805, %v5408, 0
      %v6017 = vsel %vm805, %v5409, 0
      %v6020 = vsel %vm805, %v5410, 0
      %v6023 = vsel %vm805, %v5411, 0
      %v6026 = vsel %vm805, %v5412, 0
      %v6029 = vsel %vm854, %v6003, 0
      %6031 = vmatprep.subr.bf16.mxu0 0
      %6032 = vmatpush1.bf16.msra.mxu0 %v6029
      %6033 = vmatprep.subr.bf16.mxu0 0
      %6034 = vmatpush1.bf16.msra.mxu0 0
      %6035 = vmatprep.subr.bf16.mxu0 0
      %6036 = vmatpush1.bf16.msra.mxu0 0
      %6037 = vmatprep.subr.bf16.mxu0 0
      %6038 = vmatpush1.bf16.msra.mxu0 0
      %6039 = vmatprep.subr.bf16.mxu0 0
      %6040 = vmatpush1.bf16.msra.mxu0 0
      %6041 = vmatprep.subr.bf16.mxu0 0
      %6042 = vmatpush1.bf16.msra.mxu0 0
      %6043 = vmatprep.subr.bf16.mxu0 0
      %6044 = vmatpush1.bf16.msra.mxu0 0
      %6045 = vmatprep.subr.bf16.mxu0 0
      %6046 = vmatpush1.bf16.msra.mxu0 0
      %6047 = vmatprep.subr.bf16.mxu0 0
      %6048 = vmatpush1.bf16.msra.mxu0 0
      %6049 = vmatprep.subr.bf16.mxu0 0
      %6050 = vmatpush1.bf16.msra.mxu0 0
      %6051 = vmatprep.subr.bf16.mxu0 0
      %6052 = vmatpush1.bf16.msra.mxu0 0
      %6053 = vmatprep.subr.bf16.mxu0 0
      %6054 = vmatpush1.bf16.msra.mxu0 0
      %6055 = vmatprep.subr.bf16.mxu0 0
      %6056 = vmatpush1.bf16.msra.mxu0 0
      %6057 = vmatprep.subr.bf16.mxu0 0
      %6058 = vmatpush1.bf16.msra.mxu0 0
      %6059 = vmatprep.subr.bf16.mxu0 0
      %6060 = vmatpush1.bf16.msra.mxu0 0
      %6061 = vmatprep.subr.bf16.mxu0 0
      %6062 = vmatpush1.bf16.msra.mxu0 0
      %6063 = vmatprep.mubr.bf16.mxu0 0
      %6064 = vmatmul.mubr.bf16.gmra.mrb[0].mxu0 %v6005
      %v6065 = vpop.f32.mrb[0].mxu0
      %v6066 = vadd.f32 0.0, %v6065
      %v6067 = vpop.f32.mrb[0].mxu0
      %v6068 = vpop.f32.mrb[0].mxu0
      %v6069 = vadd.f32 0.0, %v6068
      %v6070 = vpop.f32.mrb[0].mxu0
      %6071 = vmatprep.mubr.bf16.mxu0 0
      %6072 = vmatmul.mubr.bf16.gmra.mrb[0].mxu0 %v6008
      %v6073 = vpop.f32.mrb[0].mxu0
      %v6074 = vadd.f32 0.0, %v6073
      %v6075 = vpop.f32.mrb[0].mxu0
      %v6076 = vpop.f32.mrb[0].mxu0
      %v6077 = vadd.f32 0.0, %v6076
      %v6078 = vpop.f32.mrb[0].mxu0
      %6079 = vmatprep.mubr.bf16.mxu0 0
      %6080 = vmatmul.mubr.bf16.gmra.mrb[0].mxu0 %v6011
      %v6081 = vpop.f32.mrb[0].mxu0
      %v6082 = vadd.f32 0.0, %v6081
      %v6083 = vpop.f32.mrb[0].mxu0
      %v6084 = vpop.f32.mrb[0].mxu0
      %v6085 = vadd.f32 0.0, %v6084
      %v6086 = vpop.f32.mrb[0].mxu0
      %6087 = vmatprep.mubr.bf16.mxu0 0
      %6088 = vmatmul.mubr.bf16.gmra.mrb[0].mxu0 %v6014
      %v6089 = vpop.f32.mrb[0].mxu0
      %v6090 = vadd.f32 0.0, %v6089
      %v6091 = vpop.f32.mrb[0].mxu0
      %v6092 = vpop.f32.mrb[0].mxu0
      %v6093 = vadd.f32 0.0, %v6092
      %v6094 = vpop.f32.mrb[0].mxu0
      %6095 = vmatprep.mubr.bf16.mxu0 0
      %6096 = vmatmul.mubr.bf16.gmra.mrb[0].mxu0 %v6017
      %v6097 = vpop.f32.mrb[0].mxu0
      %v6098 = vadd.f32 0.0, %v6097
      %v6099 = vpop.f32.mrb[0].mxu0
      %v6100 = vpop.f32.mrb[0].mxu0
      %v6101 = vadd.f32 0.0, %v6100
      %v6102 = vpop.f32.mrb[0].mxu0
      %6103 = vmatprep.mubr.bf16.mxu0 0
      %6104 = vmatmul.mubr.bf16.gmra.mrb[0].mxu0 %v6020
      %v6105 = vpop.f32.mrb[0].mxu0
      %v6106 = vadd.f32 0.0, %v6105
      %v6107 = vpop.f32.mrb[0].mxu0
      %v6108 = vpop.f32.mrb[0].mxu0
      %v6109 = vadd.f32 0.0, %v6108
      %v6110 = vpop.f32.mrb[0].mxu0
      %6111 = vmatprep.mubr.bf16.mxu0 0
      %6112 = vmatmul.mubr.bf16.gmra.mrb[0].mxu0 %v6023
      %v6113 = vpop.f32.mrb[0].mxu0
      %v6114 = vadd.f32 0.0, %v6113
      %v6115 = vpop.f32.mrb[0].mxu0
      %v6116 = vpop.f32.mrb[0].mxu0
      %v6117 = vadd.f32 0.0, %v6116
      %v6118 = vpop.f32.mrb[0].mxu0
      %6119 = vmatprep.mubr.bf16.mxu0 0
      %6120 = vmatmul.mubr.bf16.gmra.mrb[0].mxu0 %v6026
      %v6121 = vpop.f32.mrb[0].mxu0
      %v6122 = vadd.f32 0.0, %v6121
      %v6123 = vpop.f32.mrb[0].mxu0
      %v6124 = vpop.f32.mrb[0].mxu0
      %v6125 = vadd.f32 0.0, %v6124
      %v6126 = vpop.f32.mrb[0].mxu0
      %6127 = vdwg.mxu0
      %v6129 = vsel %vm805, %v5106, 0
      %v6132 = vsel %vm805, %v5107, 0
      %v6135 = vsel %vm805, %v5108, 0
      %v6138 = vsel %vm805, %v5109, 0
      %v6141 = vsel %vm805, %v5110, 0
      %v6144 = vsel %vm805, %v5111, 0
      %v6147 = vsel %vm805, %v5112, 0
      %v6150 = vsel %vm805, %v5113, 0
      %v6153 = vsel %vm854, %v6001, 0
      %6155 = vmatprep.subr.bf16.mxu0 0
      %6156 = vmatpush1.bf16.msra.mxu0 %v6153
      %6157 = vmatprep.subr.bf16.mxu0 0
      %6158 = vmatpush1.bf16.msra.mxu0 0
      %6159 = vmatprep.subr.bf16.mxu0 0
      %6160 = vmatpush1.bf16.msra.mxu0 0
      %6161 = vmatprep.subr.bf16.mxu0 0
      %6162 = vmatpush1.bf16.msra.mxu0 0
      %6163 = vmatprep.subr.bf16.mxu0 0
      %6164 = vmatpush1.bf16.msra.mxu0 0
      %6165 = vmatprep.subr.bf16.mxu0 0
      %6166 = vmatpush1.bf16.msra.mxu0 0
      %6167 = vmatprep.subr.bf16.mxu0 0
      %6168 = vmatpush1.bf16.msra.mxu0 0
      %6169 = vmatprep.subr.bf16.mxu0 0
      %6170 = vmatpush1.bf16.msra.mxu0 0
      %6171 = vmatprep.subr.bf16.mxu0 0
      %6172 = vmatpush1.bf16.msra.mxu0 0
      %6173 = vmatprep.subr.bf16.mxu0 0
      %6174 = vmatpush1.bf16.msra.mxu0 0
      %6175 = vmatprep.subr.bf16.mxu0 0
      %6176 = vmatpush1.bf16.msra.mxu0 0
      %6177 = vmatprep.subr.bf16.mxu0 0
      %6178 = vmatpush1.bf16.msra.mxu0 0
      %6179 = vmatprep.subr.bf16.mxu0 0
      %6180 = vmatpush1.bf16.msra.mxu0 0
      %6181 = vmatprep.subr.bf16.mxu0 0
      %6182 = vmatpush1.bf16.msra.mxu0 0
      %6183 = vmatprep.subr.bf16.mxu0 0
      %6184 = vmatpush1.bf16.msra.mxu0 0
      %6185 = vmatprep.subr.bf16.mxu0 0
      %6186 = vmatpush1.bf16.msra.mxu0 0
      %6187 = vmatprep.mubr.bf16.mxu0 0
      %6188 = vmatmul.mubr.bf16.gmra.mrb[0].mxu0 %v6129
      %v6189 = vpop.f32.mrb[0].mxu0
      %v6190 = vadd.f32 %v6066, %v6189
      %v6191 = vpop.f32.mrb[0].mxu0
      %v6192 = vpop.f32.mrb[0].mxu0
      %v6193 = vadd.f32 %v6069, %v6192
      %v6194 = vpop.f32.mrb[0].mxu0
      %6195 = vmatprep.mubr.bf16.mxu0 0
      %6196 = vmatmul.mubr.bf16.gmra.mrb[0].mxu0 %v6132
      %v6197 = vpop.f32.mrb[0].mxu0
      %v6198 = vadd.f32 %v6074, %v6197
      %v6199 = vpop.f32.mrb[0].mxu0
      %v6200 = vpop.f32.mrb[0].mxu0
      %v6201 = vadd.f32 %v6077, %v6200
      %v6202 = vpop.f32.mrb[0].mxu0
      %6203 = vmatprep.mubr.bf16.mxu0 0
      %6204 = vmatmul.mubr.bf16.gmra.mrb[0].mxu0 %v6135
      %v6205 = vpop.f32.mrb[0].mxu0
      %v6206 = vadd.f32 %v6082, %v6205
      %v6207 = vpop.f32.mrb[0].mxu0
      %v6208 = vpop.f32.mrb[0].mxu0
      %v6209 = vadd.f32 %v6085, %v6208
      %v6210 = vpop.f32.mrb[0].mxu0
      %6211 = vmatprep.mubr.bf16.mxu0 0
      %6212 = vmatmul.mubr.bf16.gmra.mrb[0].mxu0 %v6138
      %v6213 = vpop.f32.mrb[0].mxu0
      %v6214 = vadd.f32 %v6090, %v6213
      %v6215 = vpop.f32.mrb[0].mxu0
      %v6216 = vpop.f32.mrb[0].mxu0
      %v6217 = vadd.f32 %v6093, %v6216
      %v6218 = vpop.f32.mrb[0].mxu0
      %6219 = vmatprep.mubr.bf16.mxu0 0
      %6220 = vmatmul.mubr.bf16.gmra.mrb[0].mxu0 %v6141
      %v6221 = vpop.f32.mrb[0].mxu0
      %v6222 = vadd.f32 %v6098, %v6221
      %v6223 = vpop.f32.mrb[0].mxu0
      %v6224 = vpop.f32.mrb[0].mxu0
      %v6225 = vadd.f32 %v6101, %v6224
      %v6226 = vpop.f32.mrb[0].mxu0
      %6227 = vmatprep.mubr.bf16.mxu0 0
      %6228 = vmatmul.mubr.bf16.gmra.mrb[0].mxu0 %v6144
      %v6229 = vpop.f32.mrb[0].mxu0
      %v6230 = vadd.f32 %v6106, %v6229
      %v6231 = vpop.f32.mrb[0].mxu0
      %v6232 = vpop.f32.mrb[0].mxu0
      %v6233 = vadd.f32 %v6109, %v6232
      %v6234 = vpop.f32.mrb[0].mxu0
      %6235 = vmatprep.mubr.bf16.mxu0 0
      %6236 = vmatmul.mubr.bf16.gmra.mrb[0].mxu0 %v6147
      %v6237 = vpop.f32.mrb[0].mxu0
      %v6238 = vadd.f32 %v6114, %v6237
      %v6239 = vpop.f32.mrb[0].mxu0
      %v6240 = vpop.f32.mrb[0].mxu0
      %v6241 = vadd.f32 %v6117, %v6240
      %v6242 = vpop.f32.mrb[0].mxu0
      %6243 = vmatprep.mubr.bf16.mxu0 0
      %6244 = vmatmul.mubr.bf16.gmra.mrb[0].mxu0 %v6150
      %v6245 = vpop.f32.mrb[0].mxu0
      %v6246 = vadd.f32 %v6122, %v6245
      %v6247 = vpop.f32.mrb[0].mxu0
      %v6248 = vpop.f32.mrb[0].mxu0
      %v6249 = vadd.f32 %v6125, %v6248
      %v6250 = vpop.f32.mrb[0].mxu0
      %6251 = vdwg.mxu0
      %s6252 = scalar_lea.vmem %s4, 4
      %v6253 = vld [vmem:[%s6252] sm:$0x3]
      %v6255 = vsel %vm805, %v5658, 0
      %v6258 = vsel %vm805, %v5659, 0
      %v6261 = vsel %vm805, %v5660, 0
      %v6264 = vsel %vm805, %v5661, 0
      %v6267 = vsel %vm805, %v5662, 0
      %v6270 = vsel %vm805, %v5663, 0
      %v6273 = vsel %vm805, %v5664, 0
      %v6276 = vsel %vm805, %v5665, 0
      %v6279 = vsel %vm854, %v6253, 0
      %6281 = vmatprep.subr.bf16.mxu0 0
      %6282 = vmatpush1.bf16.msra.mxu0 %v6279
      %6283 = vmatprep.subr.bf16.mxu0 0
      %6284 = vmatpush1.bf16.msra.mxu0 0
      %6285 = vmatprep.subr.bf16.mxu0 0
      %6286 = vmatpush1.bf16.msra.mxu0 0
      %6287 = vmatprep.subr.bf16.mxu0 0
      %6288 = vmatpush1.bf16.msra.mxu0 0
      %6289 = vmatprep.subr.bf16.mxu0 0
      %6290 = vmatpush1.bf16.msra.mxu0 0
      %6291 = vmatprep.subr.bf16.mxu0 0
      %6292 = vmatpush1.bf16.msra.mxu0 0
      %6293 = vmatprep.subr.bf16.mxu0 0
      %6294 = vmatpush1.bf16.msra.mxu0 0
      %6295 = vmatprep.subr.bf16.mxu0 0
      %6296 = vmatpush1.bf16.msra.mxu0 0
      %6297 = vmatprep.subr.bf16.mxu0 0
      %6298 = vmatpush1.bf16.msra.mxu0 0
      %6299 = vmatprep.subr.bf16.mxu0 0
      %6300 = vmatpush1.bf16.msra.mxu0 0
      %6301 = vmatprep.subr.bf16.mxu0 0
      %6302 = vmatpush1.bf16.msra.mxu0 0
      %6303 = vmatprep.subr.bf16.mxu0 0
      %6304 = vmatpush1.bf16.msra.mxu0 0
      %6305 = vmatprep.subr.bf16.mxu0 0
      %6306 = vmatpush1.bf16.msra.mxu0 0
      %6307 = vmatprep.subr.bf16.mxu0 0
      %6308 = vmatpush1.bf16.msra.mxu0 0
      %6309 = vmatprep.subr.bf16.mxu0 0
      %6310 = vmatpush1.bf16.msra.mxu0 0
      %6311 = vmatprep.subr.bf16.mxu0 0
      %6312 = vmatpush1.bf16.msra.mxu0 0
      %6313 = vmatprep.mubr.bf16.mxu0 0
      %6314 = vmatmul.mubr.bf16.gmra.mrb[0].mxu0 %v6255
      %v6315 = vpop.f32.mrb[0].mxu0
      %v6316 = vadd.f32 0.0, %v6315
      %v6317 = vpop.f32.mrb[0].mxu0
      %v6318 = vpop.f32.mrb[0].mxu0
      %v6319 = vadd.f32 0.0, %v6318
      %v6320 = vpop.f32.mrb[0].mxu0
      %6321 = vmatprep.mubr.bf16.mxu0 0
      %6322 = vmatmul.mubr.bf16.gmra.mrb[0].mxu0 %v6258
      %v6323 = vpop.f32.mrb[0].mxu0
      %v6324 = vadd.f32 0.0, %v6323
      %v6325 = vpop.f32.mrb[0].mxu0
      %v6326 = vpop.f32.mrb[0].mxu0
      %v6327 = vadd.f32 0.0, %v6326
      %v6328 = vpop.f32.mrb[0].mxu0
      %6329 = vmatprep.mubr.bf16.mxu0 0
      %6330 = vmatmul.mubr.bf16.gmra.mrb[0].mxu0 %v6261
      %v6331 = vpop.f32.mrb[0].mxu0
      %v6332 = vadd.f32 0.0, %v6331
      %v6333 = vpop.f32.mrb[0].mxu0
      %v6334 = vpop.f32.mrb[0].mxu0
      %v6335 = vadd.f32 0.0, %v6334
      %v6336 = vpop.f32.mrb[0].mxu0
      %6337 = vmatprep.mubr.bf16.mxu0 0
      %6338 = vmatmul.mubr.bf16.gmra.mrb[0].mxu0 %v6264
      %v6339 = vpop.f32.mrb[0].mxu0
      %v6340 = vadd.f32 0.0, %v6339
      %v6341 = vpop.f32.mrb[0].mxu0
      %v6342 = vpop.f32.mrb[0].mxu0
      %v6343 = vadd.f32 0.0, %v6342
      %v6344 = vpop.f32.mrb[0].mxu0
      %6345 = vmatprep.mubr.bf16.mxu0 0
      %6346 = vmatmul.mubr.bf16.gmra.mrb[0].mxu0 %v6267
      %v6347 = vpop.f32.mrb[0].mxu0
      %v6348 = vadd.f32 0.0, %v6347
      %v6349 = vpop.f32.mrb[0].mxu0
      %v6350 = vpop.f32.mrb[0].mxu0
      %v6351 = vadd.f32 0.0, %v6350
      %v6352 = vpop.f32.mrb[0].mxu0
      %6353 = vmatprep.mubr.bf16.mxu0 0
      %6354 = vmatmul.mubr.bf16.gmra.mrb[0].mxu0 %v6270
      %v6355 = vpop.f32.mrb[0].mxu0
      %v6356 = vadd.f32 0.0, %v6355
      %v6357 = vpop.f32.mrb[0].mxu0
      %v6358 = vpop.f32.mrb[0].mxu0
      %v6359 = vadd.f32 0.0, %v6358
      %v6360 = vpop.f32.mrb[0].mxu0
      %6361 = vmatprep.mubr.bf16.mxu0 0
      %6362 = vmatmul.mubr.bf16.gmra.mrb[0].mxu0 %v6273
      %v6363 = vpop.f32.mrb[0].mxu0
      %v6364 = vadd.f32 0.0, %v6363
      %v6365 = vpop.f32.mrb[0].mxu0
      %v6366 = vpop.f32.mrb[0].mxu0
      %v6367 = vadd.f32 0.0, %v6366
      %v6368 = vpop.f32.mrb[0].mxu0
      %6369 = vmatprep.mubr.bf16.mxu0 0
      %6370 = vmatmul.mubr.bf16.gmra.mrb[0].mxu0 %v6276
      %v6371 = vpop.f32.mrb[0].mxu0
      %v6372 = vadd.f32 0.0, %v6371
      %v6373 = vpop.f32.mrb[0].mxu0
      %v6374 = vpop.f32.mrb[0].mxu0
      %v6375 = vadd.f32 0.0, %v6374
      %v6376 = vpop.f32.mrb[0].mxu0
      %6377 = vdwg.mxu0
      %v6378 = vadd.f32 %v6190, %v6316
      %v6379 = vadd.f32 %v6193, %v6319
      %v6380 = vadd.f32 %v6198, %v6324
      %v6381 = vadd.f32 %v6201, %v6327
      %v6382 = vadd.f32 %v6206, %v6332
      %v6383 = vadd.f32 %v6209, %v6335
      %v6384 = vadd.f32 %v6214, %v6340
      %v6385 = vadd.f32 %v6217, %v6343
      %v6386 = vadd.f32 %v6222, %v6348
      %v6387 = vadd.f32 %v6225, %v6351
      %v6388 = vadd.f32 %v6230, %v6356
      %v6389 = vadd.f32 %v6233, %v6359
      %v6390 = vadd.f32 %v6238, %v6364
      %v6391 = vadd.f32 %v6241, %v6367
      %v6392 = vadd.f32 %v6246, %v6372
      %v6393 = vadd.f32 %v6249, %v6375
      %s6394 = scalar_lea.vmem %s4, 6
      %v6395 = vld [vmem:[%s6394] sm:$0x3]
      %v6397 = vsel %vm805, %v5993, 0
      %v6400 = vsel %vm805, %v5994, 0
      %v6403 = vsel %vm805, %v5995, 0
      %v6406 = vsel %vm805, %v5996, 0
      %v6409 = vsel %vm805, %v5997, 0
      %v6412 = vsel %vm805, %v5998, 0
      %v6415 = vsel %vm805, %v5999, 0
      %v6418 = vsel %vm805, %v6000, 0
      %v6421 = vsel %vm854, %v6395, 0
      %6423 = vmatprep.subr.bf16.mxu0 0
      %6424 = vmatpush1.bf16.msra.mxu0 %v6421
      %6425 = vmatprep.subr.bf16.mxu0 0
      %6426 = vmatpush1.bf16.msra.mxu0 0
      %6427 = vmatprep.subr.bf16.mxu0 0
      %6428 = vmatpush1.bf16.msra.mxu0 0
      %6429 = vmatprep.subr.bf16.mxu0 0
      %6430 = vmatpush1.bf16.msra.mxu0 0
      %6431 = vmatprep.subr.bf16.mxu0 0
      %6432 = vmatpush1.bf16.msra.mxu0 0
      %6433 = vmatprep.subr.bf16.mxu0 0
      %6434 = vmatpush1.bf16.msra.mxu0 0
      %6435 = vmatprep.subr.bf16.mxu0 0
      %6436 = vmatpush1.bf16.msra.mxu0 0
      %6437 = vmatprep.subr.bf16.mxu0 0
      %6438 = vmatpush1.bf16.msra.mxu0 0
      %6439 = vmatprep.subr.bf16.mxu0 0
      %6440 = vmatpush1.bf16.msra.mxu0 0
      %6441 = vmatprep.subr.bf16.mxu0 0
      %6442 = vmatpush1.bf16.msra.mxu0 0
      %6443 = vmatprep.subr.bf16.mxu0 0
      %6444 = vmatpush1.bf16.msra.mxu0 0
      %6445 = vmatprep.subr.bf16.mxu0 0
      %6446 = vmatpush1.bf16.msra.mxu0 0
      %6447 = vmatprep.subr.bf16.mxu0 0
      %6448 = vmatpush1.bf16.msra.mxu0 0
      %6449 = vmatprep.subr.bf16.mxu0 0
      %6450 = vmatpush1.bf16.msra.mxu0 0
      %6451 = vmatprep.subr.bf16.mxu0 0
      %6452 = vmatpush1.bf16.msra.mxu0 0
      %6453 = vmatprep.subr.bf16.mxu0 0
      %6454 = vmatpush1.bf16.msra.mxu0 0
      %6455 = vmatprep.mubr.bf16.mxu0 0
      %6456 = vmatmul.mubr.bf16.gmra.mrb[0].mxu0 %v6397
      %v6457 = vpop.f32.mrb[0].mxu0
      %v6458 = vadd.f32 0.0, %v6457
      %v6459 = vpop.f32.mrb[0].mxu0
      %v6460 = vpop.f32.mrb[0].mxu0
      %v6461 = vadd.f32 0.0, %v6460
      %v6462 = vpop.f32.mrb[0].mxu0
      %6463 = vmatprep.mubr.bf16.mxu0 0
      %6464 = vmatmul.mubr.bf16.gmra.mrb[0].mxu0 %v6400
      %v6465 = vpop.f32.mrb[0].mxu0
      %v6466 = vadd.f32 0.0, %v6465
      %v6467 = vpop.f32.mrb[0].mxu0
      %v6468 = vpop.f32.mrb[0].mxu0
      %v6469 = vadd.f32 0.0, %v6468
      %v6470 = vpop.f32.mrb[0].mxu0
      %6471 = vmatprep.mubr.bf16.mxu0 0
      %6472 = vmatmul.mubr.bf16.gmra.mrb[0].mxu0 %v6403
      %v6473 = vpop.f32.mrb[0].mxu0
      %v6474 = vadd.f32 0.0, %v6473
      %v6475 = vpop.f32.mrb[0].mxu0
      %v6476 = vpop.f32.mrb[0].mxu0
      %v6477 = vadd.f32 0.0, %v6476
      %v6478 = vpop.f32.mrb[0].mxu0
      %6479 = vmatprep.mubr.bf16.mxu0 0
      %6480 = vmatmul.mubr.bf16.gmra.mrb[0].mxu0 %v6406
      %v6481 = vpop.f32.mrb[0].mxu0
      %v6482 = vadd.f32 0.0, %v6481
      %v6483 = vpop.f32.mrb[0].mxu0
      %v6484 = vpop.f32.mrb[0].mxu0
      %v6485 = vadd.f32 0.0, %v6484
      %v6486 = vpop.f32.mrb[0].mxu0
      %6487 = vmatprep.mubr.bf16.mxu0 0
      %6488 = vmatmul.mubr.bf16.gmra.mrb[0].mxu0 %v6409
      %v6489 = vpop.f32.mrb[0].mxu0
      %v6490 = vadd.f32 0.0, %v6489
      %v6491 = vpop.f32.mrb[0].mxu0
      %v6492 = vpop.f32.mrb[0].mxu0
      %v6493 = vadd.f32 0.0, %v6492
      %v6494 = vpop.f32.mrb[0].mxu0
      %6495 = vmatprep.mubr.bf16.mxu0 0
      %6496 = vmatmul.mubr.bf16.gmra.mrb[0].mxu0 %v6412
      %v6497 = vpop.f32.mrb[0].mxu0
      %v6498 = vadd.f32 0.0, %v6497
      %v6499 = vpop.f32.mrb[0].mxu0
      %v6500 = vpop.f32.mrb[0].mxu0
      %v6501 = vadd.f32 0.0, %v6500
      %v6502 = vpop.f32.mrb[0].mxu0
      %6503 = vmatprep.mubr.bf16.mxu0 0
      %6504 = vmatmul.mubr.bf16.gmra.mrb[0].mxu0 %v6415
      %v6505 = vpop.f32.mrb[0].mxu0
      %v6506 = vadd.f32 0.0, %v6505
      %v6507 = vpop.f32.mrb[0].mxu0
      %v6508 = vpop.f32.mrb[0].mxu0
      %v6509 = vadd.f32 0.0, %v6508
      %v6510 = vpop.f32.mrb[0].mxu0
      %6511 = vmatprep.mubr.bf16.mxu0 0
      %6512 = vmatmul.mubr.bf16.gmra.mrb[0].mxu0 %v6418
      %v6513 = vpop.f32.mrb[0].mxu0
      %v6514 = vadd.f32 0.0, %v6513
      %v6515 = vpop.f32.mrb[0].mxu0
      %v6516 = vpop.f32.mrb[0].mxu0
      %v6517 = vadd.f32 0.0, %v6516
      %v6518 = vpop.f32.mrb[0].mxu0
      %6519 = vdwg.mxu0
      %v6520 = vadd.f32 %v6378, %v6458
      %v6521 = vadd.f32 %v6379, %v6461
      %v6522 = vadd.f32 %v6380, %v6466
      %v6523 = vadd.f32 %v6381, %v6469
      %v6524 = vadd.f32 %v6382, %v6474
      %v6525 = vadd.f32 %v6383, %v6477
      %v6526 = vadd.f32 %v6384, %v6482
      %v6527 = vadd.f32 %v6385, %v6485
      %v6528 = vadd.f32 %v6386, %v6490
      %v6529 = vadd.f32 %v6387, %v6493
      %v6530 = vadd.f32 %v6388, %v6498
      %v6531 = vadd.f32 %v6389, %v6501
      %v6532 = vadd.f32 %v6390, %v6506
      %v6533 = vadd.f32 %v6391, %v6509
      %v6534 = vadd.f32 %v6392, %v6514
      %v6535 = vadd.f32 %v6393, %v6517
      %v6536 = vld [vmem:[%s5] sm:$0x1]
      %v6538 = vlaneseq
      %v6539 = vshrl.u32 %v6538, 7
      %v6540 = vsub.s32 0, %v6539
      %v6541 = vrot.slane %v6536, %v6540
      %v6543 = vmul.f32 %v6520, %v6541
      %v6544 = vmul.f32 %v6521, %v6541
      %v6545 = vmul.f32 %v6522, %v6541
      %v6546 = vmul.f32 %v6523, %v6541
      %v6547 = vmul.f32 %v6524, %v6541
      %v6548 = vmul.f32 %v6525, %v6541
      %v6549 = vmul.f32 %v6526, %v6541
      %v6550 = vmul.f32 %v6527, %v6541
      %v6551 = vmul.f32 %v6528, %v6541
      %v6552 = vmul.f32 %v6529, %v6541
      %v6553 = vmul.f32 %v6530, %v6541
      %v6554 = vmul.f32 %v6531, %v6541
      %v6555 = vmul.f32 %v6532, %v6541
      %v6556 = vmul.f32 %v6533, %v6541
      %v6557 = vmul.f32 %v6534, %v6541
      %v6558 = vmul.f32 %v6535, %v6541
      %v6559 = vld [vmem:[%s6] sm:$0x1]
      %v6561 = vlaneseq
      %v6562 = vshrl.u32 %v6561, 7
      %v6563 = vsub.s32 0, %v6562
      %v6564 = vrot.slane %v6559, %v6563
      %v6566 = vadd.f32 %v6543, %v6564
      %v6567 = vadd.f32 %v6544, %v6564
      %v6568 = vadd.f32 %v6545, %v6564
      %v6569 = vadd.f32 %v6546, %v6564
      %v6570 = vadd.f32 %v6547, %v6564
      %v6571 = vadd.f32 %v6548, %v6564
      %v6572 = vadd.f32 %v6549, %v6564
      %v6573 = vadd.f32 %v6550, %v6564
      %v6574 = vadd.f32 %v6551, %v6564
      %v6575 = vadd.f32 %v6552, %v6564
      %v6576 = vadd.f32 %v6553, %v6564
      %v6577 = vadd.f32 %v6554, %v6564
      %v6578 = vadd.f32 %v6555, %v6564
      %v6579 = vadd.f32 %v6556, %v6564
      %v6580 = vadd.f32 %v6557, %v6564
      %v6581 = vadd.f32 %v6558, %v6564
      %v6582 = vmax.f32 %v6566, 0.0
      %v6583 = vmax.f32 %v6567, 0.0
      %v6584 = vmax.f32 %v6568, 0.0
      %v6585 = vmax.f32 %v6569, 0.0
      %v6586 = vmax.f32 %v6570, 0.0
      %v6587 = vmax.f32 %v6571, 0.0
      %v6588 = vmax.f32 %v6572, 0.0
      %v6589 = vmax.f32 %v6573, 0.0
      %v6590 = vmax.f32 %v6574, 0.0
      %v6591 = vmax.f32 %v6575, 0.0
      %v6592 = vmax.f32 %v6576, 0.0
      %v6593 = vmax.f32 %v6577, 0.0
      %v6594 = vmax.f32 %v6578, 0.0
      %v6595 = vmax.f32 %v6579, 0.0
      %v6596 = vmax.f32 %v6580, 0.0
      %v6597 = vmax.f32 %v6581, 0.0
      %6598 = vst.msk [vmem:[%s316] sm:$0xff] %vm805, %v6582
      %6599 = vst.msk [vmem:[%s316 + $0x8] sm:$0xff] %vm805, %v6583
      %6600 = vst.msk [vmem:[%s316 + $0x10] sm:$0xff] %vm805, %v6584
      %6601 = vst.msk [vmem:[%s316 + $0x18] sm:$0xff] %vm805, %v6585
      %6602 = vst.msk [vmem:[%s316 + $0x20] sm:$0xff] %vm805, %v6586
      %6603 = vst.msk [vmem:[%s316 + $0x28] sm:$0xff] %vm805, %v6587
      %6604 = vst.msk [vmem:[%s316 + $0x30] sm:$0xff] %vm805, %v6588
      %6605 = vst.msk [vmem:[%s316 + $0x38] sm:$0xff] %vm805, %v6589
      %6606 = vst.msk [vmem:[%s316 + $0x40] sm:$0xff] %vm805, %v6590
      %6607 = vst.msk [vmem:[%s316 + $0x48] sm:$0xff] %vm805, %v6591
      %6608 = vst.msk [vmem:[%s316 + $0x50] sm:$0xff] %vm805, %v6592
      %6609 = vst.msk [vmem:[%s316 + $0x58] sm:$0xff] %vm805, %v6593
      %6610 = vst.msk [vmem:[%s316 + $0x60] sm:$0xff] %vm805, %v6594
      %6611 = vst.msk [vmem:[%s316 + $0x68] sm:$0xff] %vm805, %v6595
      %6612 = vst.msk [vmem:[%s316 + $0x70] sm:$0xff] %vm805, %v6596
      %6613 = vst.msk [vmem:[%s316 + $0x78] sm:$0xff] %vm805, %v6597
      %s6614 = smul.u32 8, %s23
      %p6615 = scmp.lt.s32.totalorder %s22, 1
      %s6616 = scalar_select %p6615, %s22, 1
      %p6617 = scmp.lt.s32.totalorder %s6614, 15
      %s6618 = scalar_select %p6617, %s6614, 15
      %s6619 = smul.addr %s6618, 2
      %s6620 = smul.addr %s6616, 32
      %s6621 = sadd.s32 %s6619, %s6620
      %s6622 = smul.addr %s6621, 8
      %s6623 = scalar_lea.vmem %s7, %s6622
      // Predicated region
      $region49: #{tpu_custom_call.1} parent=47 // pred_check
        %p6624 = pneg %p206
      $region50: #{tpu_custom_call.1} parent=47 // pred_check_branch
        %6626 = sbr.rel (%p6624) target = $region52
      $region51: #{tpu_custom_call.1} parent=47 // pred_region
        %s6627 = smul.u32 8, %s23
      $region52: #{tpu_custom_call.1} parent=47 // pred_fallthru
        _
    $region48: #{tpu_custom_call.1} parent=5 // pred_fallthru
      _
    %p6628 = scmp.le.s32.totalorder 2, %s13
    // Predicated region
    $region53: #{tpu_custom_call.1} parent=5 // pred_check
      %p6629 = pneg %p6628
    $region54: #{tpu_custom_call.1} parent=5 // pred_check_branch
      %6631 = sbr.rel (%p6629) target = $region56
    $region55: #{tpu_custom_call.1} parent=5 // pred_region
      %s6632 = ssub.s32 %s13, 2
      // Predicated region
      $region57: #{tpu_custom_call.1} parent=55 // pred_check
        %p6633 = pneg %p212
      $region58: #{tpu_custom_call.1} parent=55 // pred_check_branch
        %6635 = sbr.rel (%p6633) target = $region60
      $region59: #{tpu_custom_call.1} parent=55 // pred_region
        %s6636 = smul.u32 8, %s25
        %p6637 = scmp.lt.s32.totalorder %s24, 1
        %s6638 = scalar_select %p6637, %s24, 1
        %p6639 = scmp.lt.s32.totalorder %s6636, 15
        %s6640 = scalar_select %p6639, %s6636, 15
        %s6641 = smul.addr %s6640, 2
        %s6642 = smul.addr %s6638, 32
        %s6643 = sadd.s32 %s6641, %s6642
        %s6644 = smul.addr %s6643, 8
        %s6645 = scalar_lea.vmem %s7, %s6644
      $region60: #{tpu_custom_call.1} parent=55 // pred_fallthru
        _
    $region56: #{tpu_custom_call.1} parent=5 // pred_fallthru
      _
  $region6: #{tpu_custom_call.1} parent=0 // loop_footer
    %s17 = sadd.s32 1, %s13
  $region7: #{tpu_custom_call.1} parent=0 // loop_footer_branch
    %12 = sbr.rel target = $region3
  $region8: #{tpu_custom_call.1} parent=0 // loop_exit
    _

</llo_original>
